<compile_context>
chip_gen: v5e
topology: v5e:2x2
jax: 0.10.0
libtpu: 0.0.40
codegen_flags: <defaults>
</compile_context>

<pallas_src>
import jax
import jax.numpy as jnp
import numpy as np
from jax.experimental import pallas as pl
from jax.experimental.pallas import tpu as pltpu

# Keep host-side folding / reference matmuls in full f32 so the fused-weight path
# matches the unfused reference to tight tolerance.
jax.config.update("jax_default_matmul_precision", "highest")


# ----------------------------- fused Pallas kernel -----------------------------

def _make_decoder_kernel(n_layers, isatt):
    """grid = (vocab_tiles, T).
    At vocab tile 0 (once per decode step t): attention (optional) + n_layers GRU
    cells, carrying the hidden state in VMEM scratch and caching the last-layer
    output for all later vocab tiles.  Every (v, t): one output-head matmul."""

    def kernel(*refs):
        it = iter(refs)
        emb_ref = next(it)                        # (T, B, emb)   f32, VMEM-resident
        enc_ref = next(it) if isatt else None     # (B, SL, 2H)   f32, VMEM-resident
        h0_ref = next(it)                         # (n_layers, B, 2H) f32
        if isatt:
            we_ref, wz_ref, bm_ref = next(it), next(it), next(it)
        gru = []
        for l in range(n_layers):
            if l == 0 and isatt:
                gru.append((next(it), next(it), next(it), next(it), next(it)))
            else:
                wx, wh, bi, bh = next(it), next(it), next(it), next(it)
                gru.append((wx, None, wh, bi, bh))
        wout_ref, bout_ref = next(it), next(it)   # (2H, vt) bf16 tile / (1, vt) f32 tile
        pred_ref, hnew_ref = next(it), next(it)   # (1, B, vt)  /  (n_layers, B, 2H)
        h_scr, li_scr = next(it), next(it)        # (n_layers,B,2H) / (T,B,2H) f32 scratch

        v = pl.program_id(0)   # vocab tile (outer axis: each w_out tile is DMA'd once)
        t = pl.program_id(1)   # decode step (inner axis: hidden carried in h_scr)

        @pl.when((v == 0) & (t == 0))
        def _():
            h_scr[...] = h0_ref[...]

        # ---- attention + GRU stack: executed once per decode step (first vocab tile) ----
        @pl.when(v == 0)
        def _():
            x = emb_ref[t]                                            # (B, emb)
            if isatt:
                enc = enc_ref[...]                                    # (B, SL, 2H) batch-major
                z = h_scr[n_layers - 1]                               # (B, 2H)
                w_e = we_ref[...].astype(jnp.float32)                 # (1, 2H)
                w_z = wz_ref[...].astype(jnp.float32)
                # match_nn = Tanh -> Linear(4H, 1) -> ReLU with the Linear weight split
                # into encoder / decoder-hidden halves (no (SL, B, 4H) concat needed).
                e_score = jnp.sum(jnp.tanh(enc) * w_e[None], axis=-1)            # (B, SL)
                z_score = jnp.sum(jnp.tanh(z) * w_z, axis=-1, keepdims=True)     # (B, 1)
                s = jnp.maximum(e_score + z_score + bm_ref[0, 0], 0.0)           # ReLU
                m = jnp.max(s, axis=1, keepdims=True)                 # softmax over SL
                p = jnp.exp(s - m)
                alphas = p / jnp.sum(p, axis=1, keepdims=True)        # exact reciprocal
                attn = jnp.sum(alphas[:, :, None] * enc, axis=1)      # (B, 2H)

            layer_in = x
            for l in range(n_layers):
                wx_ref, wa_ref, wh_ref, bi_ref, bh_ref = gru[l]
                h = h_scr[l]                                          # (B, 2H)
                hd = h.shape[-1]
                # No zero-padded packing / lane concat: the x-part, attn-part and
                # h-part are separate matmuls sharing the same f32 gate layout.
                gi = jnp.dot(layer_in, wx_ref[...].astype(jnp.float32),
                             preferred_element_type=jnp.float32) + bi_ref[...]
                if wa_ref is not None:
                    gi = gi + jnp.dot(attn, wa_ref[...].astype(jnp.float32),
                                      preferred_element_type=jnp.float32)
                gh = jnp.dot(h, wh_ref[...].astype(jnp.float32),
                             preferred_element_type=jnp.float32) + bh_ref[...]
                r = jax.nn.sigmoid(gi[:, :hd] + gh[:, :hd])
                zg = jax.nn.sigmoid(gi[:, hd:2 * hd] + gh[:, hd:2 * hd])
                n = jnp.tanh(gi[:, 2 * hd:] + r * gh[:, 2 * hd:])
                h_new = (1.0 - zg) * n + zg * h
                h_scr[l] = h_new
                layer_in = h_new     # inter-layer GRU dropout is identity in eval mode
            li_scr[t] = layer_in
            hnew_ref[...] = h_scr[...]   # the final write (t = T-1) is what lands in HBM

        # ---- folded output head (embedding2vocab1@2@3) for this vocab tile ----
        pred_ref[0] = (jnp.dot(li_scr[t], wout_ref[...].astype(jnp.float32),
                               preferred_element_type=jnp.float32)
                       + bout_ref[...])

    return kernel


# ----------------------------- Decoder forward wrappers -----------------------------

def decoder_forward_steps(params, tokens_seq, hidden, encoder_outputs,
                          isatt=True, vocab_tile=2048):
    """Teacher-forced decode of T steps fused into ONE pallas_call: weights are DMA'd
    into VMEM exactly once and reused for every step (review item #1)."""
    T, B = tokens_seq.shape
    n_layers, _, H2 = hidden.shape
    vocab = params["w_out"].shape[1]
    vt = min(vocab_tile, vocab)
    assert vocab % vt == 0, "vocab must be a multiple of the vocab tile"
    n_vt = vocab // vt

    # Embedding lookup + dropout (identity in eval mode): cheap XLA gather glue.
    # TODO(synk): move the row gather into the kernel (scalar-prefetch tokens + manual
    # row DMA) and store the table in bf16 once the gather no longer lives in XLA.
    embedded = jnp.take(params["emb"], tokens_seq.reshape(-1), axis=0)
    embedded = embedded.reshape(T, B, -1).astype(jnp.float32)

    vmem = pl.BlockSpec(memory_space=pltpu.MemorySpace.VMEM)   # whole array, VMEM-resident
    smem = pl.BlockSpec(memory_space=pltpu.MemorySpace.SMEM)   # scalar in SMEM

    args, in_specs = [embedded], [vmem]
    if isatt:
        args += [encoder_outputs]
        in_specs += [vmem]
    hid_idx = len(args)
    args += [hidden]
    in_specs += [vmem]
    if isatt:
        args += [params["w_e"], params["w_z"], params["b_match"]]
        in_specs += [vmem, vmem, smem]
    for layer in params["gru"]:
        for k in ("wih_x", "wih_a", "whh", "bih", "bhh"):
            if k in layer:
                args.append(layer[k])
                in_specs.append(vmem)
    args += [params["w_out"], params["b_out"]]
    in_specs += [pl.BlockSpec((H2, vt), lambda v, t: (0, v)),
                 pl.BlockSpec((1, vt), lambda v, t: (0, v))]

    out_shape = (jax.ShapeDtypeStruct((T, B, vocab), jnp.float32),
                 jax.ShapeDtypeStruct((n_layers, B, H2), jnp.float32))
    out_specs = (pl.BlockSpec((1, B, vt), lambda v, t: (t, 0, v)), vmem)

    kernel = _make_decoder_kernel(n_layers, isatt)
    preds, hidden_new = pl.pallas_call(
        kernel,
        grid_spec=pltpu.PrefetchScalarGridSpec(
            num_scalar_prefetch=0,
            grid=(n_vt, T),        # vocab-tile outer so each w_out tile streams once total
            in_specs=in_specs,
            out_specs=out_specs,
            scratch_shapes=[pltpu.VMEM((n_layers, B, H2), jnp.float32),   # hidden carry
                            pltpu.VMEM((T, B, H2), jnp.float32)]),        # last-layer outs
        out_shape=out_shape,
        compiler_params=pltpu.CompilerParams(
            # Both axes carry state through VMEM scratch, so they must stay sequential.
            # TODO(synk): on v7x, recompute the GRU per vocab tile (or split the head
            # into its own call) so the vocab axis can be "parallel" across both TCs.
            dimension_semantics=("arbitrary", "arbitrary"),
            vmem_limit_bytes=64 * 1024 * 1024),
        input_output_aliases={hid_idx: 1},   # hidden -> new hidden: no extra HBM buffer
    )(*args)
    return preds, hidden_new


def decoder_forward(params, tokens, hidden, encoder_outputs, isatt=True, vocab_tile=2048):
    """Eval-mode Decoder.forward: one decode step -> (prediction (B, vocab), new hidden)."""
    preds, hidden_new = decoder_forward_steps(params, tokens[None, :], hidden,
                                              encoder_outputs, isatt=isatt,
                                              vocab_tile=vocab_tile)
    return preds[0], hidden_new


# ----------------------------- host-side weight packing -----------------------------

def prepare_decoder_params(raw, isatt):
    """One-time re-packing of PyTorch-layout weights for the fused kernel.
    Matrix weights are stored in bf16 (halves weight DMA bytes); biases and all
    in-kernel math/accumulation stay f32 (weights are up-cast in-register)."""
    H2 = raw["gru"][0]["whh_t"].shape[0]
    emb_dim = raw["emb"].shape[1]
    wdt = jnp.bfloat16
    prepared = {
        # Embedding table stays f32: the row gather runs in the XLA wrapper, so the
        # table is never streamed into the kernel (bf16 would buy nothing here).
        "emb": raw["emb"],
        "gru": [],
        # embedding2vocab1/2/3 have no activations between them: fold in f32, then cast.
        "w_out": (raw["w1_t"] @ raw["w2_t"] @ raw["w3_t"]).astype(wdt),
        "b_out": ((raw["b1"] @ raw["w2_t"] + raw["b2"]) @ raw["w3_t"]) + raw["b3"],
    }
    if isatt:
        # match_nn Linear(4H, 1) weight split: encoder part / decoder-hidden part.
        prepared["w_e"] = raw["w_match"][:, :H2].astype(wdt)
        prepared["w_z"] = raw["w_match"][:, H2:].astype(wdt)
        prepared["b_match"] = raw["b_match"]
    for li, layer in enumerate(raw["gru"]):
        entry = {"whh": layer["whh_t"].astype(wdt),
                 "bih": layer["bih"], "bhh": layer["bhh"]}
        if li == 0 and isatt:
            # Split W_ih into embedding rows / attention rows so the kernel never
            # concatenates [embedded | attn] along the lane axis.
            entry["wih_x"] = layer["wih_t"][:emb_dim].astype(wdt)
            entry["wih_a"] = layer["wih_t"][emb_dim:].astype(wdt)
        else:
            entry["wih_x"] = layer["wih_t"].astype(wdt)
        prepared["gru"].append(entry)
    return prepared


# ----------------------------- pure-JAX reference (unfused, PyTorch layout, f32) --------

def reference_forward(raw, tokens, hidden, encoder_outputs, isatt=True):
    embedded = jnp.take(raw["emb"], tokens, axis=0)
    if isatt:
        e = jnp.transpose(encoder_outputs, (1, 0, 2))                 # (SL, B, 2H) like permute
        z = hidden[-1]
        zb = jnp.broadcast_to(z[None, :, :], e.shape[:1] + z.shape)
        t = jnp.tanh(jnp.concatenate([e, zb], axis=-1))
        scores = jnp.maximum(jnp.sum(t * raw["w_match"], axis=-1)
                             + raw["b_match"][0, 0], 0.0)
        alphas = jax.nn.softmax(scores, axis=0)
        attn = jnp.sum(alphas[..., None] * e, axis=0)
        x = jnp.concatenate([embedded, attn], axis=-1)
    else:
        x = embedded

    new_hidden = []
    layer_in = x
    for li, layer in enumerate(raw["gru"]):
        h = hidden[li]
        gi = layer_in @ layer["wih_t"] + layer["bih"]
        gh = h @ layer["whh_t"] + layer["bhh"]
        H2 = h.shape[1]
        r = jax.nn.sigmoid(gi[:, :H2] + gh[:, :H2])
        zz = jax.nn.sigmoid(gi[:, H2:2 * H2] + gh[:, H2:2 * H2])
        n = jnp.tanh(gi[:, 2 * H2:] + r * gh[:, 2 * H2:])
        h_new = (1.0 - zz) * n + zz * h
        new_hidden.append(h_new)
        layer_in = h_new
    hidden_new = jnp.stack(new_hidden, axis=0)

    y = layer_in @ raw["w1_t"] + raw["b1"]
    y = y @ raw["w2_t"] + raw["b2"]
    pred = y @ raw["w3_t"] + raw["b3"]
    return pred, hidden_new


# ----------------------------- deterministic init (PyTorch layout) -----------------------------

def init_params(key, vocab, emb_dim, hid_dim, n_layers, isatt):
    H2 = hid_dim * 2
    H4 = H2 * 2
    H8 = H2 * 4
    input_dim = emb_dim + H2 if isatt else emb_dim
    n_keys = 9 + 4 * n_layers
    keys = iter(jax.random.split(key, n_keys))

    def u(shape, scale=0.1):
        return jax.random.uniform(next(keys), shape, jnp.float32, -scale, scale)

    params = {
        "emb": u((vocab, emb_dim), 0.5),
        # Attention.match_nn Linear(4H, 1): weight (1, 4H), bias (1, 1)
        "w_match": u((1, H4)),
        "b_match": u((1, 1)),
        "gru": [],
        # embedding2vocab{1,2,3} — stored pre-transposed (in, out)
        "w1_t": u((H2, H4)),
        "b1": u((1, H4)),
        "w2_t": u((H4, H8)),
        "b2": u((1, H8)),
        "w3_t": u((H8, vocab)),
        "b3": u((1, vocab)),
    }
    for layer_idx in range(n_layers):
        in_dim = input_dim if layer_idx == 0 else H2
        params["gru"].append({
            "wih_t": u((in_dim, 3 * H2)),   # transposed PyTorch weight_ih (3*2H, in)
            "whh_t": u((H2, 3 * H2)),       # transposed PyTorch weight_hh (3*2H, 2H)
            "bih": u((1, 3 * H2)),
            "bhh": u((1, 3 * H2)),
        })
    return params


# ----------------------------- main -----------------------------

if __name__ == "__main__":
    # Small but lane/sublane-aligned shapes: B=8 (sublane), 2H=128 (lane), vocab mult of 128.
    B, SL, T = 8, 8, 4
    vocab, emb_dim, hid_dim, n_layers = 256, 128, 64, 2
    H2 = hid_dim * 2
    VOCAB_TILE = 128     # exercises the vocab-tiled grid (2 tiles); use 2048-8192 in prod

    key = jax.random.PRNGKey(0)
    kp_a, kp_b, kt, kh, ke = jax.random.split(key, 5)
    tokens_seq = jax.random.randint(kt, (T, B), 0, vocab, dtype=jnp.int32)
    tokens = tokens_seq[0]
    hidden = jax.random.uniform(kh, (n_layers, B, H2), jnp.float32, -0.5, 0.5)
    encoder_outputs = jax.random.uniform(ke, (B, SL, H2), jnp.float32, -0.5, 0.5)

    step_fn = jax.jit(decoder_forward, static_argnames=("isatt", "vocab_tile"))
    seq_fn = jax.jit(decoder_forward_steps, static_argnames=("isatt", "vocab_tile"))

    TOL = dict(rtol=1.5e-2, atol=1.5e-2)   # bf16 weight storage; math/accum stay f32

    for isatt, kp in ((True, kp_a), (False, kp_b)):
        raw = init_params(kp, vocab, emb_dim, hid_dim, n_layers, isatt)
        params = prepare_decoder_params(raw, isatt)

        # --- single decode step (== Decoder.forward) ---
        pred, hid_new = step_fn(params, tokens, hidden, encoder_outputs,
                                isatt=isatt, vocab_tile=VOCAB_TILE)
        pred = jax.block_until_ready(pred)
        hid_new = jax.block_until_ready(hid_new)
        pred_ref, hid_ref = reference_forward(raw, tokens, hidden, encoder_outputs, isatt)
        assert pred.shape == (B, vocab) and hid_new.shape == (n_layers, B, H2)
        assert np.allclose(np.asarray(pred), np.asarray(pred_ref), **TOL), \
            float(np.max(np.abs(np.asarray(pred) - np.asarray(pred_ref))))
        assert np.allclose(np.asarray(hid_new), np.asarray(hid_ref), **TOL), \
            float(np.max(np.abs(np.asarray(hid_new) - np.asarray(hid_ref))))

        # --- T teacher-forced steps fused in ONE pallas_call (weights loaded once) ---
        preds_seq, hid_seq = seq_fn(params, tokens_seq, hidden, encoder_outputs,
                                    isatt=isatt, vocab_tile=VOCAB_TILE)
        preds_seq = jax.block_until_ready(preds_seq)
        hid_seq = jax.block_until_ready(hid_seq)
        h_r = hidden
        preds_r = []
        for step in range(T):
            p_r, h_r = reference_forward(raw, tokens_seq[step], h_r, encoder_outputs, isatt)
            preds_r.append(p_r)
        preds_r = jnp.stack(preds_r, axis=0)
        assert preds_seq.shape == (T, B, vocab) and hid_seq.shape == (n_layers, B, H2)
        assert np.allclose(np.asarray(preds_seq), np.asarray(preds_r), **TOL), \
            float(np.max(np.abs(np.asarray(preds_seq) - np.asarray(preds_r))))
        assert np.allclose(np.asarray(hid_seq), np.asarray(h_r), **TOL), \
            float(np.max(np.abs(np.asarray(hid_seq) - np.asarray(h_r))))

    print("KERNEL_OK")
</pallas_src>

<mosaic_0001>
module attributes {stable_mosaic.version = 11 : i64} {
  func.func @kernel(%arg0: i32, %arg1: i32, %arg2: memref<1x8x128xf32, #tpu.memory_space<vmem>>, %arg3: memref<8x8x128xf32, #tpu.memory_space<vmem>>, %arg4: memref<2x8x128xf32, #tpu.memory_space<vmem>>, %arg5: memref<1x128xbf16, #tpu.memory_space<vmem>>, %arg6: memref<1x128xbf16, #tpu.memory_space<vmem>>, %arg7: memref<1x1xf32, #tpu.memory_space<smem>>, %arg8: memref<128x384xbf16, #tpu.memory_space<vmem>>, %arg9: memref<128x384xbf16, #tpu.memory_space<vmem>>, %arg10: memref<128x384xbf16, #tpu.memory_space<vmem>>, %arg11: memref<1x384xf32, #tpu.memory_space<vmem>>, %arg12: memref<1x384xf32, #tpu.memory_space<vmem>>, %arg13: memref<128x384xbf16, #tpu.memory_space<vmem>>, %arg14: memref<128x384xbf16, #tpu.memory_space<vmem>>, %arg15: memref<1x384xf32, #tpu.memory_space<vmem>>, %arg16: memref<1x384xf32, #tpu.memory_space<vmem>>, %arg17: memref<128x128xbf16, #tpu.memory_space<vmem>>, %arg18: memref<1x128xf32, #tpu.memory_space<vmem>>, %arg19: memref<1x8x128xf32, #tpu.memory_space<vmem>>, %arg20: memref<2x8x128xf32, #tpu.memory_space<vmem>>, %arg21: memref<2x8x128xf32, #tpu.memory_space<vmem>>, %arg22: memref<1x8x128xf32, #tpu.memory_space<vmem>>) attributes {dimension_semantics = [#tpu.dimension_semantics<arbitrary>, #tpu.dimension_semantics<arbitrary>], iteration_bounds = array<i64: 2, 1>, scalar_prefetch = 0 : i64, scratch_operands = 2 : i64, tpu.core_type = #tpu.core_type<tc>, window_params = [{pipeline_mode = #tpu.pipeline_mode<synchronous>, transform_indices = @transform_0, window_bounds = array<i64: 1, 8, 128>}, {pipeline_mode = #tpu.pipeline_mode<synchronous>, transform_indices = @transform_1, window_bounds = array<i64: 8, 8, 128>}, {pipeline_mode = #tpu.pipeline_mode<synchronous>, transform_indices = @transform_2, window_bounds = array<i64: 2, 8, 128>}, {pipeline_mode = #tpu.pipeline_mode<synchronous>, transform_indices = @transform_3, window_bounds = array<i64: 1, 128>}, {pipeline_mode = #tpu.pipeline_mode<synchronous>, transform_indices = @transform_4, window_bounds = array<i64: 1, 128>}, {transform_indices = @transform_5, window_bounds = array<i64: 1, 1>}, {pipeline_mode = #tpu.pipeline_mode<synchronous>, transform_indices = @transform_6, window_bounds = array<i64: 128, 384>}, {pipeline_mode = #tpu.pipeline_mode<synchronous>, transform_indices = @transform_7, window_bounds = array<i64: 128, 384>}, {pipeline_mode = #tpu.pipeline_mode<synchronous>, transform_indices = @transform_8, window_bounds = array<i64: 128, 384>}, {pipeline_mode = #tpu.pipeline_mode<synchronous>, transform_indices = @transform_9, window_bounds = array<i64: 1, 384>}, {pipeline_mode = #tpu.pipeline_mode<synchronous>, transform_indices = @transform_10, window_bounds = array<i64: 1, 384>}, {pipeline_mode = #tpu.pipeline_mode<synchronous>, transform_indices = @transform_11, window_bounds = array<i64: 128, 384>}, {pipeline_mode = #tpu.pipeline_mode<synchronous>, transform_indices = @transform_12, window_bounds = array<i64: 128, 384>}, {pipeline_mode = #tpu.pipeline_mode<synchronous>, transform_indices = @transform_13, window_bounds = array<i64: 1, 384>}, {pipeline_mode = #tpu.pipeline_mode<synchronous>, transform_indices = @transform_14, window_bounds = array<i64: 1, 384>}, {transform_indices = @transform_15, window_bounds = array<i64: 128, 128>}, {transform_indices = @transform_16, window_bounds = array<i64: 1, 128>}, {transform_indices = @transform_17, window_bounds = array<i64: 1, 8, 128>}, {pipeline_mode = #tpu.pipeline_mode<synchronous>, transform_indices = @transform_18, window_bounds = array<i64: 2, 8, 128>}]} {
    %c0_i32 = arith.constant 0 : i32
    %0 = arith.cmpi eq, %arg0, %c0_i32 : i32
    %c0_i32_0 = arith.constant 0 : i32
    %1 = arith.cmpi eq, %arg1, %c0_i32_0 : i32
    %2 = arith.andi %0, %1 : i1
    %3 = arith.extui %2 : i1 to i32
    %c0_i32_1 = arith.constant 0 : i32
    %4 = arith.cmpi ne, %3, %c0_i32_1 : i32
    scf.if %4 {
      %c0_12 = arith.constant 0 : index
      %c0_13 = arith.constant 0 : index
      %c0_14 = arith.constant 0 : index
      %20 = vector.load %arg4[%c0_12, %c0_13, %c0_14] : memref<2x8x128xf32, #tpu.memory_space<vmem>>, vector<2x8x128xf32>
      %c0_15 = arith.constant 0 : index
      %c0_16 = arith.constant 0 : index
      %c0_17 = arith.constant 0 : index
      %21 = vector.load %arg21[%c0_15, %c0_16, %c0_17] : memref<2x8x128xf32, #tpu.memory_space<vmem>>, vector<2x8x128xf32>
      tpu.vector_store %arg21[%c0_15, %c0_16, %c0_17], %20 {strides = array<i32>} : memref<2x8x128xf32, #tpu.memory_space<vmem>>, vector<2x8x128xf32>,
    } else {
    }
    %c0_i32_2 = arith.constant 0 : i32
    %5 = arith.cmpi eq, %arg0, %c0_i32_2 : i32
    %6 = arith.extui %5 : i1 to i32
    %c0_i32_3 = arith.constant 0 : i32
    %7 = arith.cmpi ne, %6, %c0_i32_3 : i32
    scf.if %7 {
      %20 = arith.index_cast %arg1 : i32 to index
      %c0_12 = arith.constant 0 : index
      %c0_13 = arith.constant 0 : index
      %21 = vector.load %arg2[%20, %c0_12, %c0_13] : memref<1x8x128xf32, #tpu.memory_space<vmem>>, vector<1x8x128xf32>
      %22 = vector.shape_cast %21 : vector<1x8x128xf32> to vector<8x128xf32>
      %c0_14 = arith.constant 0 : index
      %c0_15 = arith.constant 0 : index
      %c0_16 = arith.constant 0 : index
      %23 = vector.load %arg3[%c0_14, %c0_15, %c0_16] : memref<8x8x128xf32, #tpu.memory_space<vmem>>, vector<8x8x128xf32>
      %c1 = arith.constant 1 : index
      %c0_17 = arith.constant 0 : index
      %c0_18 = arith.constant 0 : index
      %24 = vector.load %arg21[%c1, %c0_17, %c0_18] : memref<2x8x128xf32, #tpu.memory_space<vmem>>, vector<1x8x128xf32>
      %25 = vector.shape_cast %24 : vector<1x8x128xf32> to vector<8x128xf32>
      %c0_19 = arith.constant 0 : index
      %c0_20 = arith.constant 0 : index
      %26 = vector.load %arg5[%c0_19, %c0_20] : memref<1x128xbf16, #tpu.memory_space<vmem>>, vector<1x128xbf16>
      %27 = arith.extf %26 : vector<1x128xbf16> to vector<1x128xf32>
      %c0_21 = arith.constant 0 : index
      %c0_22 = arith.constant 0 : index
      %28 = vector.load %arg6[%c0_21, %c0_22] : memref<1x128xbf16, #tpu.memory_space<vmem>>, vector<1x128xbf16>
      %29 = arith.extf %28 : vector<1x128xbf16> to vector<1x128xf32>
      %30 = math.tanh %23 : vector<8x8x128xf32>
      %31 = vector.shape_cast %27 : vector<1x128xf32> to vector<1x1x128xf32>
      %32 = vector.broadcast %31 : vector<1x1x128xf32> to vector<8x8x128xf32>
      %33 = arith.mulf %30, %32 : vector<8x8x128xf32>
      %cst_23 = arith.constant dense<0.000000e+00> : vector<8x8xf32>
      %34 = vector.multi_reduction <add>, %33, %cst_23 [2] : vector<8x8x128xf32> to vector<8x8xf32>
      %35 = math.tanh %25 : vector<8x128xf32>
      %36 = vector.broadcast %29 : vector<1x128xf32> to vector<8x128xf32>
      %37 = arith.mulf %35, %36 : vector<8x128xf32>
      %cst_24 = arith.constant dense<0.000000e+00> : vector<8xf32>
      %38 = vector.multi_reduction <add>, %37, %cst_24 [1] : vector<8x128xf32> to vector<8xf32>
      %39 = vector.shape_cast %38 : vector<8xf32> to vector<8x1xf32>
      %40 = vector.broadcast %39 : vector<8x1xf32> to vector<8x8xf32>
      %41 = arith.addf %34, %40 : vector<8x8xf32>
      %c0_25 = arith.constant 0 : index
      %c0_26 = arith.constant 0 : index
      %42 = memref.load %arg7[%c0_25, %c0_26] : memref<1x1xf32, #tpu.memory_space<smem>>
      %43 = vector.broadcast %42 : f32 to vector<8x8xf32>
      %44 = arith.addf %41, %43 : vector<8x8xf32>
      %cst_27 = arith.constant 0.000000e+00 : f32
      %45 = vector.broadcast %cst_27 : f32 to vector<8x8xf32>
      %46 = arith.maximumf %44, %45 : vector<8x8xf32>
      %cst_28 = arith.constant dense<0xFF800000> : vector<8xf32>
      %47 = vector.multi_reduction <maximumf>, %46, %cst_28 [1] : vector<8x8xf32> to vector<8xf32>
      %48 = vector.shape_cast %47 : vector<8xf32> to vector<8x1xf32>
      %49 = vector.broadcast %48 : vector<8x1xf32> to vector<8x8xf32>
      %50 = arith.subf %46, %49 : vector<8x8xf32>
      %51 = math.exp %50 : vector<8x8xf32>
      %cst_29 = arith.constant dense<0.000000e+00> : vector<8xf32>
      %52 = vector.multi_reduction <add>, %51, %cst_29 [1] : vector<8x8xf32> to vector<8xf32>
      %53 = vector.shape_cast %52 : vector<8xf32> to vector<8x1xf32>
      %54 = vector.broadcast %53 : vector<8x1xf32> to vector<8x8xf32>
      %55 = arith.divf %51, %54 : vector<8x8xf32>
      %56 = vector.shape_cast %55 : vector<8x8xf32> to vector<8x8x1xf32>
      %57 = vector.broadcast %56 : vector<8x8x1xf32> to vector<8x8x128xf32>
      %58 = arith.mulf %57, %23 : vector<8x8x128xf32>
      %cst_30 = arith.constant dense<0.000000e+00> : vector<8x128xf32>
      %59 = vector.multi_reduction <add>, %58, %cst_30 [1] : vector<8x8x128xf32> to vector<8x128xf32>
      %c0_31 = arith.constant 0 : index
      %c0_32 = arith.constant 0 : index
      %c0_33 = arith.constant 0 : index
      %60 = vector.load %arg21[%c0_31, %c0_32, %c0_33] : memref<2x8x128xf32, #tpu.memory_space<vmem>>, vector<1x8x128xf32>
      %61 = vector.shape_cast %60 : vector<1x8x128xf32> to vector<8x128xf32>
      %c0_34 = arith.constant 0 : index
      %c0_35 = arith.constant 0 : index
      %62 = vector.load %arg8[%c0_34, %c0_35] : memref<128x384xbf16, #tpu.memory_space<vmem>>, vector<128x384xbf16>
      %63 = arith.extf %62 : vector<128x384xbf16> to vector<128x384xf32>
      %cst_36 = arith.constant dense<0.000000e+00> : vector<8x384xf32>
      %64 = tpu.matmul %22, %63, %cst_36 {dimension_numbers = #tpu.dot_dimension_numbers<[1], [0], [0], [1], [0, 0, 1, 1], [], []>, precision = #tpu.contract_precision<fp32>} : vector<8x128xf32>, vector<128x384xf32>, vector<8x384xf32> -> vector<8x384xf32>
      %c0_37 = arith.constant 0 : index
      %c0_38 = arith.constant 0 : index
      %65 = vector.load %arg11[%c0_37, %c0_38] : memref<1x384xf32, #tpu.memory_space<vmem>>, vector<1x384xf32>
      %66 = vector.broadcast %65 : vector<1x384xf32> to vector<8x384xf32>
      %67 = arith.addf %64, %66 : vector<8x384xf32>
      %c0_39 = arith.constant 0 : index
      %c0_40 = arith.constant 0 : index
      %68 = vector.load %arg9[%c0_39, %c0_40] : memref<128x384xbf16, #tpu.memory_space<vmem>>, vector<128x384xbf16>
      %69 = arith.extf %68 : vector<128x384xbf16> to vector<128x384xf32>
      %cst_41 = arith.constant dense<0.000000e+00> : vector<8x384xf32>
      %70 = tpu.matmul %59, %69, %cst_41 {dimension_numbers = #tpu.dot_dimension_numbers<[1], [0], [0], [1], [0, 0, 1, 1], [], []>, precision = #tpu.contract_precision<fp32>} : vector<8x128xf32>, vector<128x384xf32>, vector<8x384xf32> -> vector<8x384xf32>
      %71 = arith.addf %67, %70 : vector<8x384xf32>
      %c0_42 = arith.constant 0 : index
      %c0_43 = arith.constant 0 : index
      %72 = vector.load %arg10[%c0_42, %c0_43] : memref<128x384xbf16, #tpu.memory_space<vmem>>, vector<128x384xbf16>
      %73 = arith.extf %72 : vector<128x384xbf16> to vector<128x384xf32>
      %cst_44 = arith.constant dense<0.000000e+00> : vector<8x384xf32>
      %74 = tpu.matmul %61, %73, %cst_44 {dimension_numbers = #tpu.dot_dimension_numbers<[1], [0], [0], [1], [0, 0, 1, 1], [], []>, precision = #tpu.contract_precision<fp32>} : vector<8x128xf32>, vector<128x384xf32>, vector<8x384xf32> -> vector<8x384xf32>
      %c0_45 = arith.constant 0 : index
      %c0_46 = arith.constant 0 : index
      %75 = vector.load %arg12[%c0_45, %c0_46] : memref<1x384xf32, #tpu.memory_space<vmem>>, vector<1x384xf32>
      %76 = vector.broadcast %75 : vector<1x384xf32> to vector<8x384xf32>
      %77 = arith.addf %74, %76 : vector<8x384xf32>
      %78 = vector.extract_strided_slice %71 {offsets = [0, 0], sizes = [8, 128], strides = [1, 1]} : vector<8x384xf32> to vector<8x128xf32>
      %79 = vector.extract_strided_slice %77 {offsets = [0, 0], sizes = [8, 128], strides = [1, 1]} : vector<8x384xf32> to vector<8x128xf32>
      %80 = arith.addf %78, %79 : vector<8x128xf32>
      %81 = arith.negf %80 : vector<8x128xf32>
      %82 = math.exp %81 : vector<8x128xf32>
      %cst_47 = arith.constant 1.000000e+00 : f32
      %83 = vector.broadcast %cst_47 : f32 to vector<8x128xf32>
      %84 = arith.addf %83, %82 : vector<8x128xf32>
      %85 = arith.divf %83, %84 : vector<8x128xf32>
      %86 = vector.extract_strided_slice %71 {offsets = [0, 128], sizes = [8, 128], strides = [1, 1]} : vector<8x384xf32> to vector<8x128xf32>
      %87 = vector.extract_strided_slice %77 {offsets = [0, 128], sizes = [8, 128], strides = [1, 1]} : vector<8x384xf32> to vector<8x128xf32>
      %88 = arith.addf %86, %87 : vector<8x128xf32>
      %89 = arith.negf %88 : vector<8x128xf32>
      %90 = math.exp %89 : vector<8x128xf32>
      %cst_48 = arith.constant 1.000000e+00 : f32
      %91 = vector.broadcast %cst_48 : f32 to vector<8x128xf32>
      %92 = arith.addf %91, %90 : vector<8x128xf32>
      %93 = arith.divf %91, %92 : vector<8x128xf32>
      %94 = vector.extract_strided_slice %71 {offsets = [0, 256], sizes = [8, 128], strides = [1, 1]} : vector<8x384xf32> to vector<8x128xf32>
      %95 = vector.extract_strided_slice %77 {offsets = [0, 256], sizes = [8, 128], strides = [1, 1]} : vector<8x384xf32> to vector<8x128xf32>
      %96 = arith.mulf %85, %95 : vector<8x128xf32>
      %97 = arith.addf %94, %96 : vector<8x128xf32>
      %98 = math.tanh %97 : vector<8x128xf32>
      %cst_49 = arith.constant 1.000000e+00 : f32
      %99 = vector.broadcast %cst_49 : f32 to vector<8x128xf32>
      %100 = arith.subf %99, %93 : vector<8x128xf32>
      %101 = arith.mulf %100, %98 : vector<8x128xf32>
      %102 = arith.mulf %93, %61 : vector<8x128xf32>
      %103 = arith.addf %101, %102 : vector<8x128xf32>
      %c0_50 = arith.constant 0 : index
      %c0_51 = arith.constant 0 : index
      %c0_52 = arith.constant 0 : index
      %104 = vector.load %arg21[%c0_50, %c0_51, %c0_52] : memref<2x8x128xf32, #tpu.memory_space<vmem>>, vector<1x8x128xf32>
      %105 = vector.shape_cast %104 : vector<1x8x128xf32> to vector<8x128xf32>
      %106 = vector.shape_cast %103 : vector<8x128xf32> to vector<1x8x128xf32>
      tpu.vector_store %arg21[%c0_50, %c0_51, %c0_52], %106 {strides = array<i32>} : memref<2x8x128xf32, #tpu.memory_space<vmem>>, vector<1x8x128xf32>,
      %c1_53 = arith.constant 1 : index
      %c0_54 = arith.constant 0 : index
      %c0_55 = arith.constant 0 : index
      %107 = vector.load %arg21[%c1_53, %c0_54, %c0_55] : memref<2x8x128xf32, #tpu.memory_space<vmem>>, vector<1x8x128xf32>
      %108 = vector.shape_cast %107 : vector<1x8x128xf32> to vector<8x128xf32>
      %c0_56 = arith.constant 0 : index
      %c0_57 = arith.constant 0 : index
      %109 = vector.load %arg13[%c0_56, %c0_57] : memref<128x384xbf16, #tpu.memory_space<vmem>>, vector<128x384xbf16>
      %110 = arith.extf %109 : vector<128x384xbf16> to vector<128x384xf32>
      %cst_58 = arith.constant dense<0.000000e+00> : vector<8x384xf32>
      %111 = tpu.matmul %103, %110, %cst_58 {dimension_numbers = #tpu.dot_dimension_numbers<[1], [0], [0], [1], [0, 0, 1, 1], [], []>, precision = #tpu.contract_precision<fp32>} : vector<8x128xf32>, vector<128x384xf32>, vector<8x384xf32> -> vector<8x384xf32>
      %c0_59 = arith.constant 0 : index
      %c0_60 = arith.constant 0 : index
      %112 = vector.load %arg15[%c0_59, %c0_60] : memref<1x384xf32, #tpu.memory_space<vmem>>, vector<1x384xf32>
      %113 = vector.broadcast %112 : vector<1x384xf32> to vector<8x384xf32>
      %114 = arith.addf %111, %113 : vector<8x384xf32>
      %c0_61 = arith.constant 0 : index
      %c0_62 = arith.constant 0 : index
      %115 = vector.load %arg14[%c0_61, %c0_62] : memref<128x384xbf16, #tpu.memory_space<vmem>>, vector<128x384xbf16>
      %116 = arith.extf %115 : vector<128x384xbf16> to vector<128x384xf32>
      %cst_63 = arith.constant dense<0.000000e+00> : vector<8x384xf32>
      %117 = tpu.matmul %108, %116, %cst_63 {dimension_numbers = #tpu.dot_dimension_numbers<[1], [0], [0], [1], [0, 0, 1, 1], [], []>, precision = #tpu.contract_precision<fp32>} : vector<8x128xf32>, vector<128x384xf32>, vector<8x384xf32> -> vector<8x384xf32>
      %c0_64 = arith.constant 0 : index
      %c0_65 = arith.constant 0 : index
      %118 = vector.load %arg16[%c0_64, %c0_65] : memref<1x384xf32, #tpu.memory_space<vmem>>, vector<1x384xf32>
      %119 = vector.broadcast %118 : vector<1x384xf32> to vector<8x384xf32>
      %120 = arith.addf %117, %119 : vector<8x384xf32>
      %121 = vector.extract_strided_slice %114 {offsets = [0, 0], sizes = [8, 128], strides = [1, 1]} : vector<8x384xf32> to vector<8x128xf32>
      %122 = vector.extract_strided_slice %120 {offsets = [0, 0], sizes = [8, 128], strides = [1, 1]} : vector<8x384xf32> to vector<8x128xf32>
      %123 = arith.addf %121, %122 : vector<8x128xf32>
      %124 = arith.negf %123 : vector<8x128xf32>
      %125 = math.exp %124 : vector<8x128xf32>
      %cst_66 = arith.constant 1.000000e+00 : f32
      %126 = vector.broadcast %cst_66 : f32 to vector<8x128xf32>
      %127 = arith.addf %126, %125 : vector<8x128xf32>
      %128 = arith.divf %126, %127 : vector<8x128xf32>
      %129 = vector.extract_strided_slice %114 {offsets = [0, 128], sizes = [8, 128], strides = [1, 1]} : vector<8x384xf32> to vector<8x128xf32>
      %130 = vector.extract_strided_slice %120 {offsets = [0, 128], sizes = [8, 128], strides = [1, 1]} : vector<8x384xf32> to vector<8x128xf32>
      %131 = arith.addf %129, %130 : vector<8x128xf32>
      %132 = arith.negf %131 : vector<8x128xf32>
      %133 = math.exp %132 : vector<8x128xf32>
      %cst_67 = arith.constant 1.000000e+00 : f32
      %134 = vector.broadcast %cst_67 : f32 to vector<8x128xf32>
      %135 = arith.addf %134, %133 : vector<8x128xf32>
      %136 = arith.divf %134, %135 : vector<8x128xf32>
      %137 = vector.extract_strided_slice %114 {offsets = [0, 256], sizes = [8, 128], strides = [1, 1]} : vector<8x384xf32> to vector<8x128xf32>
      %138 = vector.extract_strided_slice %120 {offsets = [0, 256], sizes = [8, 128], strides = [1, 1]} : vector<8x384xf32> to vector<8x128xf32>
      %139 = arith.mulf %128, %138 : vector<8x128xf32>
      %140 = arith.addf %137, %139 : vector<8x128xf32>
      %141 = math.tanh %140 : vector<8x128xf32>
      %cst_68 = arith.constant 1.000000e+00 : f32
      %142 = vector.broadcast %cst_68 : f32 to vector<8x128xf32>
      %143 = arith.subf %142, %136 : vector<8x128xf32>
      %144 = arith.mulf %143, %141 : vector<8x128xf32>
      %145 = arith.mulf %136, %108 : vector<8x128xf32>
      %146 = arith.addf %144, %145 : vector<8x128xf32>
      %c1_69 = arith.constant 1 : index
      %c0_70 = arith.constant 0 : index
      %c0_71 = arith.constant 0 : index
      %147 = vector.load %arg21[%c1_69, %c0_70, %c0_71] : memref<2x8x128xf32, #tpu.memory_space<vmem>>, vector<1x8x128xf32>
      %148 = vector.shape_cast %147 : vector<1x8x128xf32> to vector<8x128xf32>
      %149 = vector.shape_cast %146 : vector<8x128xf32> to vector<1x8x128xf32>
      tpu.vector_store %arg21[%c1_69, %c0_70, %c0_71], %149 {strides = array<i32>} : memref<2x8x128xf32, #tpu.memory_space<vmem>>, vector<1x8x128xf32>,
      %150 = arith.index_cast %arg1 : i32 to index
      %c0_72 = arith.constant 0 : index
      %c0_73 = arith.constant 0 : index
      %151 = vector.load %arg22[%150, %c0_72, %c0_73] : memref<1x8x128xf32, #tpu.memory_space<vmem>>, vector<1x8x128xf32>
      %152 = vector.shape_cast %151 : vector<1x8x128xf32> to vector<8x128xf32>
      %153 = vector.shape_cast %146 : vector<8x128xf32> to vector<1x8x128xf32>
      tpu.vector_store %arg22[%150, %c0_72, %c0_73], %153 {strides = array<i32>} : memref<1x8x128xf32, #tpu.memory_space<vmem>>, vector<1x8x128xf32>,
      %c0_74 = arith.constant 0 : index
      %c0_75 = arith.constant 0 : index
      %c0_76 = arith.constant 0 : index
      %154 = vector.load %arg21[%c0_74, %c0_75, %c0_76] : memref<2x8x128xf32, #tpu.memory_space<vmem>>, vector<2x8x128xf32>
      %c0_77 = arith.constant 0 : index
      %c0_78 = arith.constant 0 : index
      %c0_79 = arith.constant 0 : index
      %155 = vector.load %arg20[%c0_77, %c0_78, %c0_79] : memref<2x8x128xf32, #tpu.memory_space<vmem>>, vector<2x8x128xf32>
      tpu.vector_store %arg20[%c0_77, %c0_78, %c0_79], %154 {strides = array<i32>} : memref<2x8x128xf32, #tpu.memory_space<vmem>>, vector<2x8x128xf32>,
    } else {
    }
    %8 = arith.index_cast %arg1 : i32 to index
    %c0 = arith.constant 0 : index
    %c0_4 = arith.constant 0 : index
    %9 = vector.load %arg22[%8, %c0, %c0_4] : memref<1x8x128xf32, #tpu.memory_space<vmem>>, vector<1x8x128xf32>
    %10 = vector.shape_cast %9 : vector<1x8x128xf32> to vector<8x128xf32>
    %c0_5 = arith.constant 0 : index
    %c0_6 = arith.constant 0 : index
    %11 = vector.load %arg17[%c0_5, %c0_6] : memref<128x128xbf16, #tpu.memory_space<vmem>>, vector<128x128xbf16>
    %12 = arith.extf %11 : vector<128x128xbf16> to vector<128x128xf32>
    %cst = arith.constant dense<0.000000e+00> : vector<8x128xf32>
    %13 = tpu.matmul %10, %12, %cst {dimension_numbers = #tpu.dot_dimension_numbers<[1], [0], [0], [1], [0, 0, 1, 1], [], []>, precision = #tpu.contract_precision<fp32>} : vector<8x128xf32>, vector<128x128xf32>, vector<8x128xf32> -> vector<8x128xf32>
    %c0_7 = arith.constant 0 : index
    %c0_8 = arith.constant 0 : index
    %14 = vector.load %arg18[%c0_7, %c0_8] : memref<1x128xf32, #tpu.memory_space<vmem>>, vector<1x128xf32>
    %15 = vector.broadcast %14 : vector<1x128xf32> to vector<8x128xf32>
    %16 = arith.addf %13, %15 : vector<8x128xf32>
    %c0_9 = arith.constant 0 : index
    %c0_10 = arith.constant 0 : index
    %c0_11 = arith.constant 0 : index
    %17 = vector.load %arg19[%c0_9, %c0_10, %c0_11] : memref<1x8x128xf32, #tpu.memory_space<vmem>>, vector<1x8x128xf32>
    %18 = vector.shape_cast %17 : vector<1x8x128xf32> to vector<8x128xf32>
    %19 = vector.shape_cast %16 : vector<8x128xf32> to vector<1x8x128xf32>
    tpu.vector_store %arg19[%c0_9, %c0_10, %c0_11], %19 {strides = array<i32>} : memref<1x8x128xf32, #tpu.memory_space<vmem>>, vector<1x8x128xf32>,
    return
  }
  func.func @transform_0(%arg0: i32, %arg1: i32) -> (i32, i32, i32) {
    %c0_i32 = arith.constant 0 : i32
    %c0_i32_0 = arith.constant 0 : i32
    %c0_i32_1 = arith.constant 0 : i32
    %c0_i32_2 = arith.constant 0 : i32
    return %c0_i32, %c0_i32_0, %c0_i32_1 : i32, i32, i32
  }
  func.func @transform_1(%arg0: i32, %arg1: i32) -> (i32, i32, i32) {
    %c0_i32 = arith.constant 0 : i32
    %c0_i32_0 = arith.constant 0 : i32
    %c0_i32_1 = arith.constant 0 : i32
    %c0_i32_2 = arith.constant 0 : i32
    return %c0_i32, %c0_i32_0, %c0_i32_1 : i32, i32, i32
  }
  func.func @transform_2(%arg0: i32, %arg1: i32) -> (i32, i32, i32) {
    %c0_i32 = arith.constant 0 : i32
    %c0_i32_0 = arith.constant 0 : i32
    %c0_i32_1 = arith.constant 0 : i32
    %c0_i32_2 = arith.constant 0 : i32
    return %c0_i32, %c0_i32_0, %c0_i32_1 : i32, i32, i32
  }
  func.func @transform_3(%arg0: i32, %arg1: i32) -> (i32, i32) {
    %c0_i32 = arith.constant 0 : i32
    %c0_i32_0 = arith.constant 0 : i32
    %c0_i32_1 = arith.constant 0 : i32
    return %c0_i32, %c0_i32_0 : i32, i32
  }
  func.func @transform_4(%arg0: i32, %arg1: i32) -> (i32, i32) {
    %c0_i32 = arith.constant 0 : i32
    %c0_i32_0 = arith.constant 0 : i32
    %c0_i32_1 = arith.constant 0 : i32
    return %c0_i32, %c0_i32_0 : i32, i32
  }
  func.func @transform_5(%arg0: i32, %arg1: i32) -> (i32, i32) {
    %c0_i32 = arith.constant 0 : i32
    %c0_i32_0 = arith.constant 0 : i32
    %c0_i32_1 = arith.constant 0 : i32
    return %c0_i32, %c0_i32_0 : i32, i32
  }
  func.func @transform_6(%arg0: i32, %arg1: i32) -> (i32, i32) {
    %c0_i32 = arith.constant 0 : i32
    %c0_i32_0 = arith.constant 0 : i32
    %c0_i32_1 = arith.constant 0 : i32
    return %c0_i32, %c0_i32_0 : i32, i32
  }
  func.func @transform_7(%arg0: i32, %arg1: i32) -> (i32, i32) {
    %c0_i32 = arith.constant 0 : i32
    %c0_i32_0 = arith.constant 0 : i32
    %c0_i32_1 = arith.constant 0 : i32
    return %c0_i32, %c0_i32_0 : i32, i32
  }
  func.func @transform_8(%arg0: i32, %arg1: i32) -> (i32, i32) {
    %c0_i32 = arith.constant 0 : i32
    %c0_i32_0 = arith.constant 0 : i32
    %c0_i32_1 = arith.constant 0 : i32
    return %c0_i32, %c0_i32_0 : i32, i32
  }
  func.func @transform_9(%arg0: i32, %arg1: i32) -> (i32, i32) {
    %c0_i32 = arith.constant 0 : i32
    %c0_i32_0 = arith.constant 0 : i32
    %c0_i32_1 = arith.constant 0 : i32
    return %c0_i32, %c0_i32_0 : i32, i32
  }
  func.func @transform_10(%arg0: i32, %arg1: i32) -> (i32, i32) {
    %c0_i32 = arith.constant 0 : i32
    %c0_i32_0 = arith.constant 0 : i32
    %c0_i32_1 = arith.constant 0 : i32
    return %c0_i32, %c0_i32_0 : i32, i32
  }
  func.func @transform_11(%arg0: i32, %arg1: i32) -> (i32, i32) {
    %c0_i32 = arith.constant 0 : i32
    %c0_i32_0 = arith.constant 0 : i32
    %c0_i32_1 = arith.constant 0 : i32
    return %c0_i32, %c0_i32_0 : i32, i32
  }
  func.func @transform_12(%arg0: i32, %arg1: i32) -> (i32, i32) {
    %c0_i32 = arith.constant 0 : i32
    %c0_i32_0 = arith.constant 0 : i32
    %c0_i32_1 = arith.constant 0 : i32
    return %c0_i32, %c0_i32_0 : i32, i32
  }
  func.func @transform_13(%arg0: i32, %arg1: i32) -> (i32, i32) {
    %c0_i32 = arith.constant 0 : i32
    %c0_i32_0 = arith.constant 0 : i32
    %c0_i32_1 = arith.constant 0 : i32
    return %c0_i32, %c0_i32_0 : i32, i32
  }
  func.func @transform_14(%arg0: i32, %arg1: i32) -> (i32, i32) {
    %c0_i32 = arith.constant 0 : i32
    %c0_i32_0 = arith.constant 0 : i32
    %c0_i32_1 = arith.constant 0 : i32
    return %c0_i32, %c0_i32_0 : i32, i32
  }
  func.func @transform_15(%arg0: i32, %arg1: i32) -> (i32, i32) {
    %c0_i32 = arith.constant 0 : i32
    %c0_i32_0 = arith.constant 0 : i32
    return %c0_i32, %arg0 : i32, i32
  }
  func.func @transform_16(%arg0: i32, %arg1: i32) -> (i32, i32) {
    %c0_i32 = arith.constant 0 : i32
    %c0_i32_0 = arith.constant 0 : i32
    return %c0_i32, %arg0 : i32, i32
  }
  func.func @transform_17(%arg0: i32, %arg1: i32) -> (i32, i32, i32) {
    %c0_i32 = arith.constant 0 : i32
    %c0_i32_0 = arith.constant 0 : i32
    return %arg1, %c0_i32, %arg0 : i32, i32, i32
  }
  func.func @transform_18(%arg0: i32, %arg1: i32) -> (i32, i32, i32) {
    %c0_i32 = arith.constant 0 : i32
    %c0_i32_0 = arith.constant 0 : i32
    %c0_i32_1 = arith.constant 0 : i32
    %c0_i32_2 = arith.constant 0 : i32
    return %c0_i32, %c0_i32_0, %c0_i32_1 : i32, i32, i32
  }
}

</mosaic_0001>

<llo_original>
// kernel: decoder_forward.1
$region0: #{decoder_forward.1}
  #allocation0 [shape = 'u32[]', space=smem, size = 0x4, offset = 0x4, fixed_abs, tag = 'smem constant byte address 0x4 - core index']
  #allocation1 [shape = 'u32[72,128]{1,0:T(1,128)}', space=vmem, size = 0x9000, scoped, tag = 'internal scratch']
  #allocation2 [shape = 'f32[2,8,128]{2,1,0:T(8,128)}', space=vmem, size = 0x2000, scoped, tag = 'scratch operand']
  #allocation3 [shape = 'f32[1,8,128]{2,1,0:T(8,128)}', space=vmem, size = 0x1000, scoped, tag = 'scratch operand']
  #allocation4 [shape = 'f32[1,1]{1,0:T(1,128)S(6)}', space=smem, size = 0x200, scoped, tag = 'scoped memory for decoder_forward.1']
  %s0 = inlined_call_operand.vmem [shape: f32[1,8,128], index: 0, kind: input, shape index: {}]
  %s1 = inlined_call_operand.vmem [shape: f32[8,8,128], index: 1, kind: input, shape index: {}]
  %s2 = inlined_call_operand.vmem [shape: f32[2,8,128], index: 2, kind: input, shape index: {}, may-alias: {2,18}]
  %s3 = inlined_call_operand.vmem [shape: bf16[1,128], index: 3, kind: input, shape index: {}]
  %s4 = inlined_call_operand.vmem [shape: bf16[1,128], index: 4, kind: input, shape index: {}]
  %s5 = inlined_call_operand.<no memory space> [shape: f32[1,1], index: 5, kind: input, shape index: {}]
  %s6 = inlined_call_operand.hbm [shape: bf16[128,384], index: 6, kind: input, shape index: {}]
  %s7 = inlined_call_operand.hbm [shape: bf16[128,384], index: 7, kind: input, shape index: {}]
  %s8 = inlined_call_operand.hbm [shape: bf16[128,384], index: 8, kind: input, shape index: {}]
  %s9 = inlined_call_operand.vmem [shape: f32[1,384], index: 9, kind: input, shape index: {}]
  %s10 = inlined_call_operand.vmem [shape: f32[1,384], index: 10, kind: input, shape index: {}]
  %s11 = inlined_call_operand.hbm [shape: bf16[128,384], index: 11, kind: input, shape index: {}]
  %s12 = inlined_call_operand.hbm [shape: bf16[128,384], index: 12, kind: input, shape index: {}]
  %s13 = inlined_call_operand.vmem [shape: f32[1,384], index: 13, kind: input, shape index: {}]
  %s14 = inlined_call_operand.vmem [shape: f32[1,384], index: 14, kind: input, shape index: {}]
  %s15 = inlined_call_operand.hbm [shape: bf16[128,256], index: 15, kind: input, shape index: {}]
  %s16 = inlined_call_operand.vmem [shape: f32[1,256], index: 16, kind: input, shape index: {}]
  %s17 = inlined_call_operand.hbm [shape: f32[1,8,256], index: 17, kind: output, shape index: {0}]
  %s18 = inlined_call_operand.vmem [shape: f32[2,8,128], index: 18, kind: output, shape index: {1}, may-alias: {2,18}]
  %19 = xla_tuple %s17, %s18
  %s20 = sld [smem:[#allocation0]]
  $region141: #{decoder_forward.1} parent=0
    _
  %s22 = ssub.s32 1, %s20
  %s23 = scalar_select 0, %s22, %s20
  %24 = sst [smem:[#allocation4]] %s5
  $region1: #{decoder_forward.1} parent=0
    #allocation5 [shape = 'u8[98304]{0}', space=vmem, size = 0x18000, scoped, tag = 'input window, operand 6, single buffered']
    #allocation6 [shape = 's32[2]{0}', space=sflag, size = 0x8, scoped, tag = 'scoped memory for decoder_forward.1']
    #allocation7 [shape = 's32[2]{0}', space=sflag, size = 0x8, scoped, tag = 'scoped memory for decoder_forward.1']
    #allocation8 [shape = 'u8[98304]{0}', space=vmem, size = 0x18000, scoped, tag = 'input window, operand 7, single buffered']
    #allocation9 [shape = 's32[1]{0}', space=sflag, size = 0x4, scoped, tag = 'scoped memory for decoder_forward.1']
    #allocation10 [shape = 'u8[98304]{0}', space=vmem, size = 0x18000, scoped, tag = 'input window, operand 8, single buffered']
    #allocation11 [shape = 'u8[98304]{0}', space=vmem, size = 0x18000, scoped, tag = 'input window, operand 11, single buffered']
    #allocation12 [shape = 's32[1]{0}', space=sflag, size = 0x4, scoped, tag = 'scoped memory for decoder_forward.1']
    #allocation13 [shape = 'u8[98304]{0}', space=vmem, size = 0x18000, scoped, tag = 'input window, operand 12, single buffered']
    #allocation14 [shape = 'u8[65536]{0}', space=vmem, size = 0x10000, scoped, tag = 'input window, operand 15']
    #allocation15 [shape = 's32[2]{0}', space=sflag, size = 0x8, scoped, tag = 'scoped memory for decoder_forward.1']
    #allocation16 [shape = 'u8[8192]{0}', space=vmem, size = 0x2000, scoped, tag = 'output window, operand 0']
    %25 = vsyncpa [#allocation6], 0
    %26 = vsyncpa [#allocation9], 0
    %27 = vsyncpa [#allocation12], 0
    %28 = vsyncpa [#allocation15], 0
    %s29 = scalar_lea.sflag [#allocation15], 1
    %30 = vsyncpa %s29, 0
    %31 = vsyncpa [#allocation7], 0
    %s32 = scalar_lea.sflag [#allocation7], 1
    %33 = vsyncpa %s32, 0
    loop: start=0, step=1, limit=4
    $region2: #{decoder_forward.1} parent=1 // loop_pre_header
      _
    $region3: #{decoder_forward.1} parent=1 // loop_header
      %s35 = sphi 0, %s39
      %p36 = scmp.ge.s32.totalorder %s35, 4
      %s42 = sphi 0, %s54
      %s43 = sphi 0, %s50
      %s44 = sphi 0, %s42
      %s45 = sphi 0, %s43
      %s46 = sphi 0, %s44
      %s47 = sphi 0, %s45
      %s55 = sphi 0, %s55
      %s57 = sphi 0, %s55
      %s58 = sphi 0, %s57
      %s72 = sphi 0, %s58
      %s76 = sphi 0, %s76
      %s78 = sphi 0, %s76
      %s79 = sphi 0, %s78
      %s93 = sphi 0, %s79
      %s97 = sphi 0, %s97
      %s99 = sphi 0, %s97
      %s100 = sphi 0, %s99
      %s114 = sphi 0, %s100
      %s118 = sphi 0, %s118
      %s120 = sphi 0, %s118
      %s121 = sphi 0, %s120
      %s135 = sphi 0, %s121
      %s139 = sphi 0, %s139
      %s141 = sphi 0, %s139
      %s142 = sphi 0, %s141
      %s156 = sphi 0, %s142
      %s160 = sphi 0, %s160
      %s162 = sphi 0, %s160
      %s163 = sphi 0, %s162
      %s177 = sphi 0, %s163
      %s181 = sphi 0, %s181
      %s183 = sphi 0, %s181
      %s184 = sphi 0, %s183
      %s198 = sphi 0, %s184
      %s202 = sphi 0, %s202
      %s204 = sphi 0, %s202
      %s205 = sphi 0, %s204
      %s219 = sphi 0, %s205
      %s223 = sphi 0, %s223
      %s225 = sphi 0, %s223
      %s226 = sphi 0, %s225
      %s240 = sphi 0, %s226
      %s244 = sphi 0, %s244
      %s246 = sphi 0, %s244
      %s247 = sphi 0, %s246
      %s261 = sphi 0, %s247
      %s265 = sphi 0, %s265
      %s267 = sphi 0, %s265
      %s268 = sphi 0, %s267
      %s282 = sphi 0, %s268
      %s286 = sphi 0, %s286
      %s288 = sphi 0, %s286
      %s289 = sphi 0, %s288
      %s303 = sphi 0, %s289
      %s307 = sphi 0, %s307
      %s309 = sphi 0, %s307
      %s310 = sphi 0, %s309
      %s324 = sphi 0, %s310
      %s328 = sphi 0, %s328
      %s330 = sphi 0, %s328
      %s331 = sphi 0, %s330
      %s345 = sphi 0, %s331
      %s349 = sphi 0, %s349
      %s351 = sphi 0, %s349
      %s352 = sphi 0, %s351
      %s366 = sphi 0, %s352
      %s372 = sphi 0, %s374
      %s375 = sphi 0, %s372
      %s376 = sphi 0, %s375
      %s392 = sphi 0, %s376
      %s398 = sphi 0, %s400
      %s401 = sphi 0, %s398
      %s402 = sphi 0, %s401
      %s418 = sphi 0, %s402
      %s426 = sphi 0, %s428
      %s429 = sphi 0, %s426
      %s430 = sphi 0, %s429
      %s446 = sphi 0, %s430
      %s450 = sphi 0, %s450
      %s452 = sphi 0, %s450
      %s453 = sphi 0, %s452
      %s467 = sphi 0, %s453
    $region4: #{decoder_forward.1} parent=1 // loop_header_branch
      %38 = sbr.rel (%p36) target = $region8
    $region5: #{decoder_forward.1} parent=1 // loop_body
      %s40 = ssub.s32 %s35, 1
      %s41 = ssub.s32 %s35, 2
      %s48 = sadd.s32 1, %s43
      %p49 = scmp.ge.s32.totalorder %s48, 1
      %s50 = scalar_select %p49, 0, %s48
      %s51 = sadd.s32 1, %s42
      %s52 = scalar_select %p49, %s51, %s42
      %p53 = scmp.ge.s32.totalorder %s52, 2
      %s54 = scalar_select %p53, 0, %s52
      %s56 = sadd.s32 %s55, 1
      %p59 = scmp.eq.s32.totalorder %s35, 1
      %p60 = scmp.ne.s32.totalorder %s55, %s57
      %p61 = scmp.eq.s32.totalorder %s35, 0
      %p62 = por %p60, %p61
      %p63 = scmp.ne.s32.totalorder %s55, %s57
      %p64 = scmp.eq.s32.totalorder %s40, 1
      %p65 = por %p63, %p64
      %p66 = scmp.ne.s32.totalorder %s57, %s58
      %p67 = scmp.eq.s32.totalorder %s40, 0
      %p68 = por %p66, %p67
      %p69 = scmp.ne.s32.totalorder %s57, %s58
      %p70 = scmp.eq.s32.totalorder %s41, 1
      %p71 = por %p69, %p70
      %p73 = scmp.ne.s32.totalorder %s58, %s72
      %p74 = scmp.eq.s32.totalorder %s41, 0
      %p75 = por %p73, %p74
      %s77 = sadd.s32 %s76, 1
      %p80 = scmp.eq.s32.totalorder %s35, 1
      %p81 = scmp.ne.s32.totalorder %s76, %s78
      %p82 = scmp.eq.s32.totalorder %s35, 0
      %p83 = por %p81, %p82
      %p84 = scmp.ne.s32.totalorder %s76, %s78
      %p85 = scmp.eq.s32.totalorder %s40, 1
      %p86 = por %p84, %p85
      %p87 = scmp.ne.s32.totalorder %s78, %s79
      %p88 = scmp.eq.s32.totalorder %s40, 0
      %p89 = por %p87, %p88
      %p90 = scmp.ne.s32.totalorder %s78, %s79
      %p91 = scmp.eq.s32.totalorder %s41, 1
      %p92 = por %p90, %p91
      %p94 = scmp.ne.s32.totalorder %s79, %s93
      %p95 = scmp.eq.s32.totalorder %s41, 0
      %p96 = por %p94, %p95
      %s98 = sadd.s32 %s97, 1
      %p101 = scmp.eq.s32.totalorder %s35, 1
      %p102 = scmp.ne.s32.totalorder %s97, %s99
      %p103 = scmp.eq.s32.totalorder %s35, 0
      %p104 = por %p102, %p103
      %p105 = scmp.ne.s32.totalorder %s97, %s99
      %p106 = scmp.eq.s32.totalorder %s40, 1
      %p107 = por %p105, %p106
      %p108 = scmp.ne.s32.totalorder %s99, %s100
      %p109 = scmp.eq.s32.totalorder %s40, 0
      %p110 = por %p108, %p109
      %p111 = scmp.ne.s32.totalorder %s99, %s100
      %p112 = scmp.eq.s32.totalorder %s41, 1
      %p113 = por %p111, %p112
      %p115 = scmp.ne.s32.totalorder %s100, %s114
      %p116 = scmp.eq.s32.totalorder %s41, 0
      %p117 = por %p115, %p116
      %s119 = sadd.s32 %s118, 1
      %p122 = scmp.eq.s32.totalorder %s35, 1
      %p123 = scmp.ne.s32.totalorder %s118, %s120
      %p124 = scmp.eq.s32.totalorder %s35, 0
      %p125 = por %p123, %p124
      %p126 = scmp.ne.s32.totalorder %s118, %s120
      %p127 = scmp.eq.s32.totalorder %s40, 1
      %p128 = por %p126, %p127
      %p129 = scmp.ne.s32.totalorder %s120, %s121
      %p130 = scmp.eq.s32.totalorder %s40, 0
      %p131 = por %p129, %p130
      %p132 = scmp.ne.s32.totalorder %s120, %s121
      %p133 = scmp.eq.s32.totalorder %s41, 1
      %p134 = por %p132, %p133
      %p136 = scmp.ne.s32.totalorder %s121, %s135
      %p137 = scmp.eq.s32.totalorder %s41, 0
      %p138 = por %p136, %p137
      %s140 = sadd.s32 %s139, 1
      %p143 = scmp.eq.s32.totalorder %s35, 1
      %p144 = scmp.ne.s32.totalorder %s139, %s141
      %p145 = scmp.eq.s32.totalorder %s35, 0
      %p146 = por %p144, %p145
      %p147 = scmp.ne.s32.totalorder %s139, %s141
      %p148 = scmp.eq.s32.totalorder %s40, 1
      %p149 = por %p147, %p148
      %p150 = scmp.ne.s32.totalorder %s141, %s142
      %p151 = scmp.eq.s32.totalorder %s40, 0
      %p152 = por %p150, %p151
      %p153 = scmp.ne.s32.totalorder %s141, %s142
      %p154 = scmp.eq.s32.totalorder %s41, 1
      %p155 = por %p153, %p154
      %p157 = scmp.ne.s32.totalorder %s142, %s156
      %p158 = scmp.eq.s32.totalorder %s41, 0
      %p159 = por %p157, %p158
      %s161 = sadd.s32 %s160, 1
      %p164 = scmp.eq.s32.totalorder %s35, 1
      %p165 = scmp.ne.s32.totalorder %s160, %s162
      %p166 = scmp.eq.s32.totalorder %s35, 0
      %p167 = por %p165, %p166
      %p168 = scmp.ne.s32.totalorder %s160, %s162
      %p169 = scmp.eq.s32.totalorder %s40, 1
      %p170 = por %p168, %p169
      %p171 = scmp.ne.s32.totalorder %s162, %s163
      %p172 = scmp.eq.s32.totalorder %s40, 0
      %p173 = por %p171, %p172
      %p174 = scmp.ne.s32.totalorder %s162, %s163
      %p175 = scmp.eq.s32.totalorder %s41, 1
      %p176 = por %p174, %p175
      %p178 = scmp.ne.s32.totalorder %s163, %s177
      %p179 = scmp.eq.s32.totalorder %s41, 0
      %p180 = por %p178, %p179
      %s182 = sadd.s32 %s181, 1
      %p185 = scmp.eq.s32.totalorder %s35, 1
      %p186 = scmp.ne.s32.totalorder %s181, %s183
      %p187 = scmp.eq.s32.totalorder %s35, 0
      %p188 = por %p186, %p187
      %p189 = scmp.ne.s32.totalorder %s181, %s183
      %p190 = scmp.eq.s32.totalorder %s40, 1
      %p191 = por %p189, %p190
      %p192 = scmp.ne.s32.totalorder %s183, %s184
      %p193 = scmp.eq.s32.totalorder %s40, 0
      %p194 = por %p192, %p193
      %p195 = scmp.ne.s32.totalorder %s183, %s184
      %p196 = scmp.eq.s32.totalorder %s41, 1
      %p197 = por %p195, %p196
      %p199 = scmp.ne.s32.totalorder %s184, %s198
      %p200 = scmp.eq.s32.totalorder %s41, 0
      %p201 = por %p199, %p200
      %s203 = sadd.s32 %s202, 1
      %p206 = scmp.eq.s32.totalorder %s35, 1
      %p207 = scmp.ne.s32.totalorder %s202, %s204
      %p208 = scmp.eq.s32.totalorder %s35, 0
      %p209 = por %p207, %p208
      %p210 = scmp.ne.s32.totalorder %s202, %s204
      %p211 = scmp.eq.s32.totalorder %s40, 1
      %p212 = por %p210, %p211
      %p213 = scmp.ne.s32.totalorder %s204, %s205
      %p214 = scmp.eq.s32.totalorder %s40, 0
      %p215 = por %p213, %p214
      %p216 = scmp.ne.s32.totalorder %s204, %s205
      %p217 = scmp.eq.s32.totalorder %s41, 1
      %p218 = por %p216, %p217
      %p220 = scmp.ne.s32.totalorder %s205, %s219
      %p221 = scmp.eq.s32.totalorder %s41, 0
      %p222 = por %p220, %p221
      %s224 = sadd.s32 %s223, 1
      %p227 = scmp.eq.s32.totalorder %s35, 1
      %p228 = scmp.ne.s32.totalorder %s223, %s225
      %p229 = scmp.eq.s32.totalorder %s35, 0
      %p230 = por %p228, %p229
      %p231 = scmp.ne.s32.totalorder %s223, %s225
      %p232 = scmp.eq.s32.totalorder %s40, 1
      %p233 = por %p231, %p232
      %p234 = scmp.ne.s32.totalorder %s225, %s226
      %p235 = scmp.eq.s32.totalorder %s40, 0
      %p236 = por %p234, %p235
      %p237 = scmp.ne.s32.totalorder %s225, %s226
      %p238 = scmp.eq.s32.totalorder %s41, 1
      %p239 = por %p237, %p238
      %p241 = scmp.ne.s32.totalorder %s226, %s240
      %p242 = scmp.eq.s32.totalorder %s41, 0
      %p243 = por %p241, %p242
      %s245 = sadd.s32 %s244, 1
      %p248 = scmp.eq.s32.totalorder %s35, 1
      %p249 = scmp.ne.s32.totalorder %s244, %s246
      %p250 = scmp.eq.s32.totalorder %s35, 0
      %p251 = por %p249, %p250
      %p252 = scmp.ne.s32.totalorder %s244, %s246
      %p253 = scmp.eq.s32.totalorder %s40, 1
      %p254 = por %p252, %p253
      %p255 = scmp.ne.s32.totalorder %s246, %s247
      %p256 = scmp.eq.s32.totalorder %s40, 0
      %p257 = por %p255, %p256
      %p258 = scmp.ne.s32.totalorder %s246, %s247
      %p259 = scmp.eq.s32.totalorder %s41, 1
      %p260 = por %p258, %p259
      %p262 = scmp.ne.s32.totalorder %s247, %s261
      %p263 = scmp.eq.s32.totalorder %s41, 0
      %p264 = por %p262, %p263
      %s266 = sadd.s32 %s265, 1
      %p269 = scmp.eq.s32.totalorder %s35, 1
      %p270 = scmp.ne.s32.totalorder %s265, %s267
      %p271 = scmp.eq.s32.totalorder %s35, 0
      %p272 = por %p270, %p271
      %p273 = scmp.ne.s32.totalorder %s265, %s267
      %p274 = scmp.eq.s32.totalorder %s40, 1
      %p275 = por %p273, %p274
      %p276 = scmp.ne.s32.totalorder %s267, %s268
      %p277 = scmp.eq.s32.totalorder %s40, 0
      %p278 = por %p276, %p277
      %p279 = scmp.ne.s32.totalorder %s267, %s268
      %p280 = scmp.eq.s32.totalorder %s41, 1
      %p281 = por %p279, %p280
      %p283 = scmp.ne.s32.totalorder %s268, %s282
      %p284 = scmp.eq.s32.totalorder %s41, 0
      %p285 = por %p283, %p284
      %s287 = sadd.s32 %s286, 1
      %p290 = scmp.eq.s32.totalorder %s35, 1
      %p291 = scmp.ne.s32.totalorder %s286, %s288
      %p292 = scmp.eq.s32.totalorder %s35, 0
      %p293 = por %p291, %p292
      %p294 = scmp.ne.s32.totalorder %s286, %s288
      %p295 = scmp.eq.s32.totalorder %s40, 1
      %p296 = por %p294, %p295
      %p297 = scmp.ne.s32.totalorder %s288, %s289
      %p298 = scmp.eq.s32.totalorder %s40, 0
      %p299 = por %p297, %p298
      %p300 = scmp.ne.s32.totalorder %s288, %s289
      %p301 = scmp.eq.s32.totalorder %s41, 1
      %p302 = por %p300, %p301
      %p304 = scmp.ne.s32.totalorder %s289, %s303
      %p305 = scmp.eq.s32.totalorder %s41, 0
      %p306 = por %p304, %p305
      %s308 = sadd.s32 %s307, 1
      %p311 = scmp.eq.s32.totalorder %s35, 1
      %p312 = scmp.ne.s32.totalorder %s307, %s309
      %p313 = scmp.eq.s32.totalorder %s35, 0
      %p314 = por %p312, %p313
      %p315 = scmp.ne.s32.totalorder %s307, %s309
      %p316 = scmp.eq.s32.totalorder %s40, 1
      %p317 = por %p315, %p316
      %p318 = scmp.ne.s32.totalorder %s309, %s310
      %p319 = scmp.eq.s32.totalorder %s40, 0
      %p320 = por %p318, %p319
      %p321 = scmp.ne.s32.totalorder %s309, %s310
      %p322 = scmp.eq.s32.totalorder %s41, 1
      %p323 = por %p321, %p322
      %p325 = scmp.ne.s32.totalorder %s310, %s324
      %p326 = scmp.eq.s32.totalorder %s41, 0
      %p327 = por %p325, %p326
      %s329 = sadd.s32 %s328, 1
      %p332 = scmp.eq.s32.totalorder %s35, 1
      %p333 = scmp.ne.s32.totalorder %s328, %s330
      %p334 = scmp.eq.s32.totalorder %s35, 0
      %p335 = por %p333, %p334
      %p336 = scmp.ne.s32.totalorder %s328, %s330
      %p337 = scmp.eq.s32.totalorder %s40, 1
      %p338 = por %p336, %p337
      %p339 = scmp.ne.s32.totalorder %s330, %s331
      %p340 = scmp.eq.s32.totalorder %s40, 0
      %p341 = por %p339, %p340
      %p342 = scmp.ne.s32.totalorder %s330, %s331
      %p343 = scmp.eq.s32.totalorder %s41, 1
      %p344 = por %p342, %p343
      %p346 = scmp.ne.s32.totalorder %s331, %s345
      %p347 = scmp.eq.s32.totalorder %s41, 0
      %p348 = por %p346, %p347
      %s350 = sadd.s32 %s349, 1
      %p353 = scmp.eq.s32.totalorder %s35, 1
      %p354 = scmp.ne.s32.totalorder %s349, %s351
      %p355 = scmp.eq.s32.totalorder %s35, 0
      %p356 = por %p354, %p355
      %p357 = scmp.ne.s32.totalorder %s349, %s351
      %p358 = scmp.eq.s32.totalorder %s40, 1
      %p359 = por %p357, %p358
      %p360 = scmp.ne.s32.totalorder %s351, %s352
      %p361 = scmp.eq.s32.totalorder %s40, 0
      %p362 = por %p360, %p361
      %p363 = scmp.ne.s32.totalorder %s351, %s352
      %p364 = scmp.eq.s32.totalorder %s41, 1
      %p365 = por %p363, %p364
      %p367 = scmp.ne.s32.totalorder %s352, %s366
      %p368 = scmp.eq.s32.totalorder %s41, 0
      %p369 = por %p367, %p368
      %s370 = ssub.s32 %s42, %s54
      %p371 = scmp.eq.s32.totalorder %s370, 0
      %s373 = sadd.s32 %s372, 1
      %s374 = scalar_select %p371, %s372, %s373
      %p377 = pneg %p371
      %p378 = scmp.eq.s32.totalorder %s35, 1
      %p379 = por %p377, %p378
      %p380 = scmp.ne.s32.totalorder %s372, %s375
      %p381 = scmp.eq.s32.totalorder %s35, 0
      %p382 = por %p380, %p381
      %p383 = scmp.ne.s32.totalorder %s372, %s375
      %p384 = scmp.eq.s32.totalorder %s40, 1
      %p385 = por %p383, %p384
      %p386 = scmp.ne.s32.totalorder %s375, %s376
      %p387 = scmp.eq.s32.totalorder %s40, 0
      %p388 = por %p386, %p387
      %p389 = scmp.ne.s32.totalorder %s375, %s376
      %p390 = scmp.eq.s32.totalorder %s41, 1
      %p391 = por %p389, %p390
      %p393 = scmp.ne.s32.totalorder %s376, %s392
      %p394 = scmp.eq.s32.totalorder %s41, 0
      %p395 = por %p393, %p394
      %s396 = ssub.s32 %s42, %s54
      %p397 = scmp.eq.s32.totalorder %s396, 0
      %s399 = sadd.s32 %s398, 1
      %s400 = scalar_select %p397, %s398, %s399
      %p403 = pneg %p397
      %p404 = scmp.eq.s32.totalorder %s35, 1
      %p405 = por %p403, %p404
      %p406 = scmp.ne.s32.totalorder %s398, %s401
      %p407 = scmp.eq.s32.totalorder %s35, 0
      %p408 = por %p406, %p407
      %p409 = scmp.ne.s32.totalorder %s398, %s401
      %p410 = scmp.eq.s32.totalorder %s40, 1
      %p411 = por %p409, %p410
      %p412 = scmp.ne.s32.totalorder %s401, %s402
      %p413 = scmp.eq.s32.totalorder %s40, 0
      %p414 = por %p412, %p413
      %p415 = scmp.ne.s32.totalorder %s401, %s402
      %p416 = scmp.eq.s32.totalorder %s41, 1
      %p417 = por %p415, %p416
      %p419 = scmp.ne.s32.totalorder %s402, %s418
      %p420 = scmp.eq.s32.totalorder %s41, 0
      %p421 = por %p419, %p420
      %s422 = ssub.s32 %s43, %s50
      %s423 = ssub.s32 %s42, %s54
      %s424 = sor.u32 %s422, %s423
      %p425 = scmp.eq.s32.totalorder %s424, 0
      %s427 = sadd.s32 %s426, 1
      %s428 = scalar_select %p425, %s426, %s427
      %p431 = pneg %p425
      %p432 = scmp.eq.s32.totalorder %s35, 1
      %p433 = por %p431, %p432
      %p434 = scmp.ne.s32.totalorder %s426, %s429
      %p435 = scmp.eq.s32.totalorder %s35, 0
      %p436 = por %p434, %p435
      %p437 = scmp.ne.s32.totalorder %s426, %s429
      %p438 = scmp.eq.s32.totalorder %s40, 1
      %p439 = por %p437, %p438
      %p440 = scmp.ne.s32.totalorder %s429, %s430
      %p441 = scmp.eq.s32.totalorder %s40, 0
      %p442 = por %p440, %p441
      %p443 = scmp.ne.s32.totalorder %s429, %s430
      %p444 = scmp.eq.s32.totalorder %s41, 1
      %p445 = por %p443, %p444
      %p447 = scmp.ne.s32.totalorder %s430, %s446
      %p448 = scmp.eq.s32.totalorder %s41, 0
      %p449 = por %p447, %p448
      %s451 = sadd.s32 %s450, 1
      %p454 = scmp.eq.s32.totalorder %s35, 1
      %p455 = scmp.ne.s32.totalorder %s450, %s452
      %p456 = scmp.eq.s32.totalorder %s35, 0
      %p457 = por %p455, %p456
      %p458 = scmp.ne.s32.totalorder %s450, %s452
      %p459 = scmp.eq.s32.totalorder %s40, 1
      %p460 = por %p458, %p459
      %p461 = scmp.ne.s32.totalorder %s452, %s453
      %p462 = scmp.eq.s32.totalorder %s40, 0
      %p463 = por %p461, %p462
      %p464 = scmp.ne.s32.totalorder %s452, %s453
      %p465 = scmp.eq.s32.totalorder %s41, 1
      %p466 = por %p464, %p465
      %p468 = scmp.ne.s32.totalorder %s453, %s467
      %p469 = scmp.eq.s32.totalorder %s41, 0
      %p470 = por %p468, %p469
      %p471 = scmp.le.s32.totalorder 1, %s35
      %p472 = scmp.lt.s32.totalorder %s35, 3
      %p473 = pnand %p471, %p472
      %p474 = pneg %p473
      // Predicated region
      $region9: #{decoder_forward.1} parent=5 // pred_check
        _
      $region10: #{decoder_forward.1} parent=5 // pred_check_branch
        %476 = sbr.rel (%p473) target = $region12
      $region11: #{decoder_forward.1} parent=5 // pred_region
        %s477 = ssub.s32 %s35, 1
        // Predicated region
        $region13: #{decoder_forward.1} parent=11 // pred_check
          %p478 = pneg %p68
        $region14: #{decoder_forward.1} parent=11 // pred_check_branch
          %480 = sbr.rel (%p478) target = $region16
        $region15: #{decoder_forward.1} parent=11 // pred_region
          _
        $region16: #{decoder_forward.1} parent=11 // pred_fallthru
          _
        // Predicated region
        $region17: #{decoder_forward.1} parent=11 // pred_check
          %p481 = pneg %p89
        $region18: #{decoder_forward.1} parent=11 // pred_check_branch
          %483 = sbr.rel (%p481) target = $region20
        $region19: #{decoder_forward.1} parent=11 // pred_region
          _
        $region20: #{decoder_forward.1} parent=11 // pred_fallthru
          _
        // Predicated region
        $region21: #{decoder_forward.1} parent=11 // pred_check
          %p484 = pneg %p110
        $region22: #{decoder_forward.1} parent=11 // pred_check_branch
          %486 = sbr.rel (%p484) target = $region24
        $region23: #{decoder_forward.1} parent=11 // pred_region
          _
        $region24: #{decoder_forward.1} parent=11 // pred_fallthru
          _
        // Predicated region
        $region25: #{decoder_forward.1} parent=11 // pred_check
          %p487 = pneg %p131
        $region26: #{decoder_forward.1} parent=11 // pred_check_branch
          %489 = sbr.rel (%p487) target = $region28
        $region27: #{decoder_forward.1} parent=11 // pred_region
          _
        $region28: #{decoder_forward.1} parent=11 // pred_fallthru
          _
        // Predicated region
        $region29: #{decoder_forward.1} parent=11 // pred_check
          %p490 = pneg %p152
        $region30: #{decoder_forward.1} parent=11 // pred_check_branch
          %492 = sbr.rel (%p490) target = $region32
        $region31: #{decoder_forward.1} parent=11 // pred_region
          _
        $region32: #{decoder_forward.1} parent=11 // pred_fallthru
          _
        // Predicated region
        $region33: #{decoder_forward.1} parent=11 // pred_check
          %p493 = pneg %p173
        $region34: #{decoder_forward.1} parent=11 // pred_check_branch
          %495 = sbr.rel (%p493) target = $region36
        $region35: #{decoder_forward.1} parent=11 // pred_region
          _
        $region36: #{decoder_forward.1} parent=11 // pred_fallthru
          _
        // Predicated region
        $region37: #{decoder_forward.1} parent=11 // pred_check
          %p496 = pneg %p194
        $region38: #{decoder_forward.1} parent=11 // pred_check_branch
          %498 = sbr.rel (%p496) target = $region40
        $region39: #{decoder_forward.1} parent=11 // pred_region
          %500 = vsyncadd [#allocation6], 0
          %s501 = sshll.u32 %s6, 4
          %s502 = int_to_ptr.hbm [resolvable:$true] %s501
          %s503 = sshll.u32 [#allocation5], 4
          %s504 = int_to_ptr.vmem [resolvable:$true] %s503
          %509 = dma.hbm_to_vmem [thread:$0]  %s502, 3072, %s504, [#allocation6], 192, 192, 12
        $region40: #{decoder_forward.1} parent=11 // pred_fallthru
          _
        // Predicated region
        $region41: #{decoder_forward.1} parent=11 // pred_check
          %p510 = pneg %p215
        $region42: #{decoder_forward.1} parent=11 // pred_check_branch
          %512 = sbr.rel (%p510) target = $region44
        $region43: #{decoder_forward.1} parent=11 // pred_region
          %514 = vsyncadd [#allocation9], 0
          %s515 = sshll.u32 %s7, 4
          %s516 = int_to_ptr.hbm [resolvable:$true] %s515
          %s517 = sshll.u32 [#allocation8], 4
          %s518 = int_to_ptr.vmem [resolvable:$true] %s517
          %523 = dma.hbm_to_vmem [thread:$0]  %s516, 3072, %s518, [#allocation9], 192, 192, 12
        $region44: #{decoder_forward.1} parent=11 // pred_fallthru
          _
        // Predicated region
        $region45: #{decoder_forward.1} parent=11 // pred_check
          %p524 = pneg %p236
        $region46: #{decoder_forward.1} parent=11 // pred_check_branch
          %526 = sbr.rel (%p524) target = $region48
        $region47: #{decoder_forward.1} parent=11 // pred_region
          %528 = vsyncadd [#allocation9], 0
          %s529 = sshll.u32 %s8, 4
          %s530 = int_to_ptr.hbm [resolvable:$true] %s529
          %s531 = sshll.u32 [#allocation10], 4
          %s532 = int_to_ptr.vmem [resolvable:$true] %s531
          %537 = dma.hbm_to_vmem [thread:$0]  %s530, 3072, %s532, [#allocation9], 192, 192, 12
        $region48: #{decoder_forward.1} parent=11 // pred_fallthru
          _
        // Predicated region
        $region49: #{decoder_forward.1} parent=11 // pred_check
          %p538 = pneg %p257
        $region50: #{decoder_forward.1} parent=11 // pred_check_branch
          %540 = sbr.rel (%p538) target = $region52
        $region51: #{decoder_forward.1} parent=11 // pred_region
          _
        $region52: #{decoder_forward.1} parent=11 // pred_fallthru
          _
        // Predicated region
        $region53: #{decoder_forward.1} parent=11 // pred_check
          %p541 = pneg %p278
        $region54: #{decoder_forward.1} parent=11 // pred_check_branch
          %543 = sbr.rel (%p541) target = $region56
        $region55: #{decoder_forward.1} parent=11 // pred_region
          _
        $region56: #{decoder_forward.1} parent=11 // pred_fallthru
          _
        // Predicated region
        $region57: #{decoder_forward.1} parent=11 // pred_check
          %p544 = pneg %p299
        $region58: #{decoder_forward.1} parent=11 // pred_check_branch
          %546 = sbr.rel (%p544) target = $region60
        $region59: #{decoder_forward.1} parent=11 // pred_region
          %548 = vsyncadd [#allocation12], 0
          %s549 = sshll.u32 %s11, 4
          %s550 = int_to_ptr.hbm [resolvable:$true] %s549
          %s551 = sshll.u32 [#allocation11], 4
          %s552 = int_to_ptr.vmem [resolvable:$true] %s551
          %557 = dma.hbm_to_vmem [thread:$0]  %s550, 3072, %s552, [#allocation12], 192, 192, 12
        $region60: #{decoder_forward.1} parent=11 // pred_fallthru
          _
        // Predicated region
        $region61: #{decoder_forward.1} parent=11 // pred_check
          %p558 = pneg %p320
        $region62: #{decoder_forward.1} parent=11 // pred_check_branch
          %560 = sbr.rel (%p558) target = $region64
        $region63: #{decoder_forward.1} parent=11 // pred_region
          %562 = vsyncadd [#allocation12], 0
          %s563 = sshll.u32 %s12, 4
          %s564 = int_to_ptr.hbm [resolvable:$true] %s563
          %s565 = sshll.u32 [#allocation13], 4
          %s566 = int_to_ptr.vmem [resolvable:$true] %s565
          %571 = dma.hbm_to_vmem [thread:$0]  %s564, 3072, %s566, [#allocation12], 192, 192, 12
        $region64: #{decoder_forward.1} parent=11 // pred_fallthru
          _
        // Predicated region
        $region65: #{decoder_forward.1} parent=11 // pred_check
          %p572 = pneg %p341
        $region66: #{decoder_forward.1} parent=11 // pred_check_branch
          %574 = sbr.rel (%p572) target = $region68
        $region67: #{decoder_forward.1} parent=11 // pred_region
          _
        $region68: #{decoder_forward.1} parent=11 // pred_fallthru
          _
        // Predicated region
        $region69: #{decoder_forward.1} parent=11 // pred_check
          %p575 = pneg %p362
        $region70: #{decoder_forward.1} parent=11 // pred_check_branch
          %577 = sbr.rel (%p575) target = $region72
        $region71: #{decoder_forward.1} parent=11 // pred_region
          _
        $region72: #{decoder_forward.1} parent=11 // pred_fallthru
          _
      $region12: #{decoder_forward.1} parent=5 // pred_fallthru
        _
      %p578 = scmp.lt.s32.totalorder %s35, 2
      // Predicated region
      $region73: #{decoder_forward.1} parent=5 // pred_check
        %p579 = pneg %p578
      $region74: #{decoder_forward.1} parent=5 // pred_check_branch
        %581 = sbr.rel (%p579) target = $region76
      $region75: #{decoder_forward.1} parent=5 // pred_region
        // Predicated region
        $region77: #{decoder_forward.1} parent=75 // pred_check
          %p582 = pneg %p382
        $region78: #{decoder_forward.1} parent=75 // pred_check_branch
          %584 = sbr.rel (%p582) target = $region80
        $region79: #{decoder_forward.1} parent=75 // pred_region
          %s585 = sand.u32 %s372, 1
          %s586 = scalar_lea.sflag [#allocation15], %s585
          %s587 = sand.u32 %s372, 1
          %s588 = smul.addr %s587, 64
          %s589 = scalar_lea.vmem [#allocation14], %s588
          %591 = vsyncadd %s586, 0
          %s592 = smul.addr %s42, 4
          %s593 = scalar_lea.hbm %s15, %s592
          %s594 = sshll.u32 %s593, 4
          %s595 = int_to_ptr.hbm [resolvable:$true] %s594
          %s596 = sshll.u32 %s589, 4
          %s597 = int_to_ptr.vmem [resolvable:$true] %s596
          %602 = dma.hbm_to_vmem [thread:$0]  %s595, 1024, %s597, %s586, 128, 64, 4
        $region80: #{decoder_forward.1} parent=75 // pred_fallthru
          _
        // Predicated region
        $region81: #{decoder_forward.1} parent=75 // pred_check
          %p603 = pneg %p408
        $region82: #{decoder_forward.1} parent=75 // pred_check_branch
          %605 = sbr.rel (%p603) target = $region84
        $region83: #{decoder_forward.1} parent=75 // pred_region
          %p606 = scmp.lt.s32.totalorder %s42, 1
          %s607 = scalar_select %p606, %s42, 1
          %s608 = scalar_lea.vmem %s16, %s607
        $region84: #{decoder_forward.1} parent=75 // pred_fallthru
          _
      $region76: #{decoder_forward.1} parent=5 // pred_fallthru
        _
      %p609 = scmp.le.s32.totalorder 1, %s35
      %p610 = scmp.lt.s32.totalorder %s35, 3
      %p611 = pnand %p609, %p610
      %p612 = pneg %p611
      // Predicated region
      $region85: #{decoder_forward.1} parent=5 // pred_check
        _
      $region86: #{decoder_forward.1} parent=5 // pred_check_branch
        %614 = sbr.rel (%p611) target = $region88
      $region87: #{decoder_forward.1} parent=5 // pred_region
        %s615 = ssub.s32 %s35, 1
        // Predicated region
        $region89: #{decoder_forward.1} parent=87 // pred_check
          %p616 = pneg %p194
        $region90: #{decoder_forward.1} parent=87 // pred_check_branch
          %618 = sbr.rel (%p616) target = $region92
        $region91: #{decoder_forward.1} parent=87 // pred_region
          %620 = dma.done [#allocation6], 3072
        $region92: #{decoder_forward.1} parent=87 // pred_fallthru
          _
        // Predicated region
        $region93: #{decoder_forward.1} parent=87 // pred_check
          %p621 = pneg %p215
        $region94: #{decoder_forward.1} parent=87 // pred_check_branch
          %623 = sbr.rel (%p621) target = $region96
        $region95: #{decoder_forward.1} parent=87 // pred_region
          %625 = dma.done [#allocation9], 3072
        $region96: #{decoder_forward.1} parent=87 // pred_fallthru
          _
        // Predicated region
        $region97: #{decoder_forward.1} parent=87 // pred_check
          %p626 = pneg %p236
        $region98: #{decoder_forward.1} parent=87 // pred_check_branch
          %628 = sbr.rel (%p626) target = $region100
        $region99: #{decoder_forward.1} parent=87 // pred_region
          %630 = dma.done [#allocation9], 3072
        $region100: #{decoder_forward.1} parent=87 // pred_fallthru
          _
        // Predicated region
        $region101: #{decoder_forward.1} parent=87 // pred_check
          %p631 = pneg %p299
        $region102: #{decoder_forward.1} parent=87 // pred_check_branch
          %633 = sbr.rel (%p631) target = $region104
        $region103: #{decoder_forward.1} parent=87 // pred_region
          %635 = dma.done [#allocation12], 3072
        $region104: #{decoder_forward.1} parent=87 // pred_fallthru
          _
        // Predicated region
        $region105: #{decoder_forward.1} parent=87 // pred_check
          %p636 = pneg %p320
        $region106: #{decoder_forward.1} parent=87 // pred_check_branch
          %638 = sbr.rel (%p636) target = $region108
        $region107: #{decoder_forward.1} parent=87 // pred_region
          %640 = dma.done [#allocation12], 3072
        $region108: #{decoder_forward.1} parent=87 // pred_fallthru
          _
        %s641 = sand.u32 %s375, 1
        %s642 = scalar_lea.sflag [#allocation15], %s641
        %s643 = sand.u32 %s375, 1
        %s644 = smul.addr %s643, 64
        %s645 = scalar_lea.vmem [#allocation14], %s644
        // Predicated region
        $region109: #{decoder_forward.1} parent=87 // pred_check
          %p646 = pneg %p388
        $region110: #{decoder_forward.1} parent=87 // pred_check_branch
          %648 = sbr.rel (%p646) target = $region112
        $region111: #{decoder_forward.1} parent=87 // pred_region
          %650 = dma.done %s642, 1024
        $region112: #{decoder_forward.1} parent=87 // pred_fallthru
          _
        %p651 = pneg %p68
        %p652 = pneg %p65
        %p653 = pneg %p89
        %p654 = pneg %p86
        %p655 = pneg %p110
        %p656 = pneg %p107
        %p657 = pneg %p131
        %p658 = pneg %p128
        %p659 = pneg %p152
        %p660 = pneg %p149
        %p661 = pneg %p173
        %p662 = pneg %p170
        %p663 = pneg %p194
        %p664 = pneg %p191
        %p665 = pneg %p215
        %p666 = pneg %p212
        %p667 = pneg %p236
        %p668 = pneg %p233
        %p669 = pneg %p257
        %p670 = pneg %p254
        %p671 = pneg %p278
        %p672 = pneg %p275
        %p673 = pneg %p299
        %p674 = pneg %p296
        %p675 = pneg %p320
        %p676 = pneg %p317
        %p677 = pneg %p341
        %p678 = pneg %p338
        %p679 = pneg %p362
        %p680 = pneg %p359
        %s681 = sand.u32 %s375, 1
        %s682 = scalar_lea.sflag [#allocation15], %s681
        %s683 = sand.u32 %s375, 1
        %s684 = smul.addr %s683, 64
        %s685 = scalar_lea.vmem [#allocation14], %s684
        %p686 = pneg %p388
        %p687 = pneg %p385
        %p688 = scmp.lt.s32.totalorder %s44, 1
        %s689 = scalar_select %p688, %s44, 1
        %s690 = scalar_lea.vmem %s16, %s689
        %p691 = pneg %p414
        %p692 = pneg %p411
        %p693 = pneg %p442
        %p694 = pneg %p439
        %s695 = sand.u32 %s429, 1
        %s696 = scalar_lea.sflag [#allocation7], %s695
        %s697 = sand.u32 %s429, 1
        %s698 = smul.addr %s697, 8
        %s699 = scalar_lea.vmem [#allocation16], %s698
        %p700 = pneg %p463
        %p701 = pneg %p460
        %p702 = scmp.lt.s32.totalorder %s44, 1
        %s703 = scalar_select %p702, %s44, 1
        %s704 = scalar_lea.vmem %s16, %s703
        %p705 = scmp.eq.s32.totalorder %s44, 0
        %p706 = scmp.eq.s32.totalorder %s45, 0
        %p707 = pnand %p705, %p706
        %p708 = pneg %p707
        // Predicated region
        $region113: #{decoder_forward.1} parent=87 // pred_check
          _
        $region114: #{decoder_forward.1} parent=87 // pred_check_branch
          %710 = sbr.rel (%p707) target = $region116
        $region115: #{decoder_forward.1} parent=87 // pred_region
          %v711 = vld [vmem:[%s2] sm:$0xff]
          %v712 = vld [vmem:[%s2 + $0x8] sm:$0xff]
          %713 = vst [vmem:[#allocation2] sm:$0xff] %v711
          %714 = vst [vmem:[#allocation2 + $0x8] sm:$0xff] %v712
        $region116: #{decoder_forward.1} parent=87 // pred_fallthru
          _
        // Predicated region
        $region117: #{decoder_forward.1} parent=87 // pred_check
          %p715 = pneg %p705
        $region118: #{decoder_forward.1} parent=87 // pred_check_branch
          %717 = sbr.rel (%p715) target = $region120
        $region119: #{decoder_forward.1} parent=87 // pred_region
          %s718 = smul.u32 %s45, 8
          %s719 = scalar_lea.vmem %s0, %s718
          %v720 = vld [vmem:[%s719] sm:$0xff]
          %v721 = vld [vmem:[%s1] sm:$0xff]
          %v722 = vld [vmem:[%s1 + $0x8] sm:$0xff]
          %v723 = vld [vmem:[%s1 + $0x10] sm:$0xff]
          %v724 = vld [vmem:[%s1 + $0x18] sm:$0xff]
          %v725 = vld [vmem:[%s1 + $0x20] sm:$0xff]
          %v726 = vld [vmem:[%s1 + $0x28] sm:$0xff]
          %v727 = vld [vmem:[%s1 + $0x30] sm:$0xff]
          %v728 = vld [vmem:[%s1 + $0x38] sm:$0xff]
          %s729 = scalar_lea.vmem [#allocation2], 8
          %v730 = vld [vmem:[%s729] sm:$0xff]
          %v731 = vld [vmem:[%s3] sm:$0x1]
          %v732 = vunpack.c.l.bf16 %v731
          %v733 = vld [vmem:[%s4] sm:$0x1]
          %v734 = vunpack.c.l.bf16 %v733
          %v735 = vtanh.pop %v721
          %v736 = vtanh.pop %v722
          %v737 = vtanh.pop %v723
          %v738 = vtanh.pop %v724
          %v739 = vtanh.pop %v725
          %v740 = vtanh.pop %v726
          %v741 = vtanh.pop %v727
          %v742 = vtanh.pop %v728
          %v743 = vperm.slane %v732, 0
          %v744 = vmul.f32 %v735, %v743
          %v745 = vmul.f32 %v736, %v743
          %v746 = vmul.f32 %v737, %v743
          %v747 = vmul.f32 %v738, %v743
          %v748 = vmul.f32 %v739, %v743
          %v749 = vmul.f32 %v740, %v743
          %v750 = vmul.f32 %v741, %v743
          %v751 = vmul.f32 %v742, %v743
          %752 = vadd.xlane.f32.xlu0 %v744
          %v753 = vpop.xlane.xlu0 %752
          %754 = vadd.xlane.f32.xlu0 %v745
          %v755 = vpop.xlane.xlu0 %754
          %756 = vadd.xlane.f32.xlu0 %v746
          %v757 = vpop.xlane.xlu0 %756
          %758 = vadd.xlane.f32.xlu0 %v747
          %v759 = vpop.xlane.xlu0 %758
          %760 = vadd.xlane.f32.xlu0 %v748
          %v761 = vpop.xlane.xlu0 %760
          %762 = vadd.xlane.f32.xlu0 %v749
          %v763 = vpop.xlane.xlu0 %762
          %764 = vadd.xlane.f32.xlu0 %v750
          %v765 = vpop.xlane.xlu0 %764
          %766 = vadd.xlane.f32.xlu0 %v751
          %v767 = vpop.xlane.xlu0 %766
          %v768 = vtanh.pop %v730
          %v769 = vperm.slane %v734, 0
          %v770 = vmul.f32 %v768, %v769
          %771 = vadd.xlane.f32.xlu0 %v770
          %v772 = vpop.xlane.xlu0 %771
          %v774 = vperm.slane %v772, 0
          %v775 = vperm.slane %v772, 1
          %v776 = vperm.slane %v772, 2
          %v777 = vperm.slane %v772, 3
          %v778 = vperm.slane %v772, 4
          %v779 = vperm.slane %v772, 5
          %v780 = vperm.slane %v772, 6
          %v781 = vperm.slane %v772, 7
          %v790 = vadd.f32 %v753, %v774
          %v791 = vadd.f32 %v755, %v775
          %v792 = vadd.f32 %v757, %v776
          %v793 = vadd.f32 %v759, %v777
          %v794 = vadd.f32 %v761, %v778
          %v795 = vadd.f32 %v763, %v779
          %v796 = vadd.f32 %v765, %v780
          %v797 = vadd.f32 %v767, %v781
          %s798 = sld [smem:[#allocation4]]
          %v799 = vstv %s798
          %v800 = vadd.f32 %v790, %v799
          %v801 = vadd.f32 %v791, %v799
          %v802 = vadd.f32 %v792, %v799
          %v803 = vadd.f32 %v793, %v799
          %v804 = vadd.f32 %v794, %v799
          %v805 = vadd.f32 %v795, %v799
          %v806 = vadd.f32 %v796, %v799
          %v807 = vadd.f32 %v797, %v799
          %v808 = vmax.f32 %v800, 0.0
          %v809 = vmax.f32 %v801, 0.0
          %v810 = vmax.f32 %v802, 0.0
          %v811 = vmax.f32 %v803, 0.0
          %v812 = vmax.f32 %v804, 0.0
          %v813 = vmax.f32 %v805, 0.0
          %v814 = vmax.f32 %v806, 0.0
          %v815 = vmax.f32 %v807, 0.0
          %824 = vset.pattern.permute.xlu0 0
          %825 = vperm.xlu0 %824, %v808
          %v826 = vpop.permute.xlu0 %825
          %827 = vset.pattern.permute.xlu0 0
          %828 = vperm.xlu0 %827, %v809
          %v829 = vpop.permute.xlu0 %828
          %830 = vset.pattern.permute.xlu0 0
          %831 = vperm.xlu0 %830, %v810
          %v832 = vpop.permute.xlu0 %831
          %833 = vset.pattern.permute.xlu0 0
          %834 = vperm.xlu0 %833, %v811
          %v835 = vpop.permute.xlu0 %834
          %836 = vset.pattern.permute.xlu0 0
          %837 = vperm.xlu0 %836, %v812
          %v838 = vpop.permute.xlu0 %837
          %839 = vset.pattern.permute.xlu0 0
          %840 = vperm.xlu0 %839, %v813
          %v841 = vpop.permute.xlu0 %840
          %842 = vset.pattern.permute.xlu0 0
          %843 = vperm.xlu0 %842, %v814
          %v844 = vpop.permute.xlu0 %843
          %845 = vset.pattern.permute.xlu0 0
          %846 = vperm.xlu0 %845, %v815
          %v847 = vpop.permute.xlu0 %846
          %v848 = vlaneseq
          %v849 = vand.u32 %v848, 127
          %v850 = vperm.slane %v826, %v849
          %v851 = vperm.slane %v829, %v849
          %v852 = vperm.slane %v832, %v849
          %v853 = vperm.slane %v835, %v849
          %v854 = vperm.slane %v838, %v849
          %v855 = vperm.slane %v841, %v849
          %v856 = vperm.slane %v844, %v849
          %v857 = vperm.slane %v847, %v849
          %vm858 = vcmask 1041409
          %v859 = vsel %vm858, %v851, %v850
          %vm860 = vcmask 1042434
          %v861 = vsel %vm860, %v852, %v859
          %vm862 = vcmask 1043459
          %v863 = vsel %vm862, %v853, %v861
          %vm864 = vcmask 1044484
          %v865 = vsel %vm864, %v854, %v863
          %vm866 = vcmask 1045509
          %v867 = vsel %vm866, %v855, %v865
          %vm868 = vcmask 1046534
          %v869 = vsel %vm868, %v856, %v867
          %vm870 = vcmask 1047559
          %v871 = vsel %vm870, %v857, %v869
          %vm873 = vcmask 64512
          %v874 = vsel %vm873, %v871, -inf
          %875 = vmax.xlane.f32.xlu0 %v874
          %v876 = vpop.xlane.xlu0 %875
          %v878 = vperm.slane %v876, 0
          %v879 = vperm.slane %v876, 1
          %v880 = vperm.slane %v876, 2
          %v881 = vperm.slane %v876, 3
          %v882 = vperm.slane %v876, 4
          %v883 = vperm.slane %v876, 5
          %v884 = vperm.slane %v876, 6
          %v885 = vperm.slane %v876, 7
          %v894 = vsub.f32 %v808, %v878
          %v895 = vsub.f32 %v809, %v879
          %v896 = vsub.f32 %v810, %v880
          %v897 = vsub.f32 %v811, %v881
          %v898 = vsub.f32 %v812, %v882
          %v899 = vsub.f32 %v813, %v883
          %v900 = vsub.f32 %v814, %v884
          %v901 = vsub.f32 %v815, %v885
          %v902 = vmul.f32 %v894, 1.442695
          %v903 = vpow.pop %v902
          %v904 = vmul.f32 %v895, 1.442695
          %v905 = vpow.pop %v904
          %v906 = vmul.f32 %v896, 1.442695
          %v907 = vpow.pop %v906
          %v908 = vmul.f32 %v897, 1.442695
          %v909 = vpow.pop %v908
          %v910 = vmul.f32 %v898, 1.442695
          %v911 = vpow.pop %v910
          %v912 = vmul.f32 %v899, 1.442695
          %v913 = vpow.pop %v912
          %v914 = vmul.f32 %v900, 1.442695
          %v915 = vpow.pop %v914
          %v916 = vmul.f32 %v901, 1.442695
          %v917 = vpow.pop %v916
          %926 = vset.pattern.permute.xlu0 0
          %927 = vperm.xlu0 %926, %v903
          %v928 = vpop.permute.xlu0 %927
          %929 = vset.pattern.permute.xlu0 0
          %930 = vperm.xlu0 %929, %v905
          %v931 = vpop.permute.xlu0 %930
          %932 = vset.pattern.permute.xlu0 0
          %933 = vperm.xlu0 %932, %v907
          %v934 = vpop.permute.xlu0 %933
          %935 = vset.pattern.permute.xlu0 0
          %936 = vperm.xlu0 %935, %v909
          %v937 = vpop.permute.xlu0 %936
          %938 = vset.pattern.permute.xlu0 0
          %939 = vperm.xlu0 %938, %v911
          %v940 = vpop.permute.xlu0 %939
          %941 = vset.pattern.permute.xlu0 0
          %942 = vperm.xlu0 %941, %v913
          %v943 = vpop.permute.xlu0 %942
          %944 = vset.pattern.permute.xlu0 0
          %945 = vperm.xlu0 %944, %v915
          %v946 = vpop.permute.xlu0 %945
          %947 = vset.pattern.permute.xlu0 0
          %948 = vperm.xlu0 %947, %v917
          %v949 = vpop.permute.xlu0 %948
          %v950 = vperm.slane %v928, %v849
          %v951 = vperm.slane %v931, %v849
          %v952 = vperm.slane %v934, %v849
          %v953 = vperm.slane %v937, %v849
          %v954 = vperm.slane %v940, %v849
          %v955 = vperm.slane %v943, %v849
          %v956 = vperm.slane %v946, %v849
          %v957 = vperm.slane %v949, %v849
          %v958 = vsel %vm858, %v951, %v950
          %v959 = vsel %vm860, %v952, %v958
          %v960 = vsel %vm862, %v953, %v959
          %v961 = vsel %vm864, %v954, %v960
          %v962 = vsel %vm866, %v955, %v961
          %v963 = vsel %vm868, %v956, %v962
          %v964 = vsel %vm870, %v957, %v963
          %v966 = vsel %vm873, %v964, 0.0
          %967 = vadd.xlane.f32.xlu0 %v966
          %v968 = vpop.xlane.xlu0 %967
          %v970 = vperm.slane %v968, 0
          %v971 = vperm.slane %v968, 1
          %v972 = vperm.slane %v968, 2
          %v973 = vperm.slane %v968, 3
          %v974 = vperm.slane %v968, 4
          %v975 = vperm.slane %v968, 5
          %v976 = vperm.slane %v968, 6
          %v977 = vperm.slane %v968, 7
          %v986 = vrcp.pop %v970
          %v987 = vmul.f32 %v970, %v986
          %v988 = vsub.f32 1.0, %v987
          %v989 = vmul.f32 %v986, %v988
          %v990 = vadd.f32 %v986, %v989
          %vm991 = vweird.f32 %v970
          %vm992 = vweird.f32 %v986
          %vm993 = vmor %vm991, %vm992
          %v994 = vsel %vm993, %v986, %v990
          %v995 = vand.u32 2147483647, %v970
          %vm996 = vcmp.eq.f32.partialorder %v995, 8.507059e+37
          %v997 = vand.u32 %v970, 2147483648
          %v998 = vor.u32 1.1754944e-38, %v997
          %v999 = vsel %vm996, %v998, %v994
          %v1000 = vmul.f32 %v903, %v999
          %v1001 = vrcp.pop %v971
          %v1002 = vmul.f32 %v971, %v1001
          %v1003 = vsub.f32 1.0, %v1002
          %v1004 = vmul.f32 %v1001, %v1003
          %v1005 = vadd.f32 %v1001, %v1004
          %vm1006 = vweird.f32 %v971
          %vm1007 = vweird.f32 %v1001
          %vm1008 = vmor %vm1006, %vm1007
          %v1009 = vsel %vm1008, %v1001, %v1005
          %v1010 = vand.u32 2147483647, %v971
          %vm1011 = vcmp.eq.f32.partialorder %v1010, 8.507059e+37
          %v1012 = vand.u32 %v971, 2147483648
          %v1013 = vor.u32 1.1754944e-38, %v1012
          %v1014 = vsel %vm1011, %v1013, %v1009
          %v1015 = vmul.f32 %v905, %v1014
          %v1016 = vrcp.pop %v972
          %v1017 = vmul.f32 %v972, %v1016
          %v1018 = vsub.f32 1.0, %v1017
          %v1019 = vmul.f32 %v1016, %v1018
          %v1020 = vadd.f32 %v1016, %v1019
          %vm1021 = vweird.f32 %v972
          %vm1022 = vweird.f32 %v1016
          %vm1023 = vmor %vm1021, %vm1022
          %v1024 = vsel %vm1023, %v1016, %v1020
          %v1025 = vand.u32 2147483647, %v972
          %vm1026 = vcmp.eq.f32.partialorder %v1025, 8.507059e+37
          %v1027 = vand.u32 %v972, 2147483648
          %v1028 = vor.u32 1.1754944e-38, %v1027
          %v1029 = vsel %vm1026, %v1028, %v1024
          %v1030 = vmul.f32 %v907, %v1029
          %v1031 = vrcp.pop %v973
          %v1032 = vmul.f32 %v973, %v1031
          %v1033 = vsub.f32 1.0, %v1032
          %v1034 = vmul.f32 %v1031, %v1033
          %v1035 = vadd.f32 %v1031, %v1034
          %vm1036 = vweird.f32 %v973
          %vm1037 = vweird.f32 %v1031
          %vm1038 = vmor %vm1036, %vm1037
          %v1039 = vsel %vm1038, %v1031, %v1035
          %v1040 = vand.u32 2147483647, %v973
          %vm1041 = vcmp.eq.f32.partialorder %v1040, 8.507059e+37
          %v1042 = vand.u32 %v973, 2147483648
          %v1043 = vor.u32 1.1754944e-38, %v1042
          %v1044 = vsel %vm1041, %v1043, %v1039
          %v1045 = vmul.f32 %v909, %v1044
          %v1046 = vrcp.pop %v974
          %v1047 = vmul.f32 %v974, %v1046
          %v1048 = vsub.f32 1.0, %v1047
          %v1049 = vmul.f32 %v1046, %v1048
          %v1050 = vadd.f32 %v1046, %v1049
          %vm1051 = vweird.f32 %v974
          %vm1052 = vweird.f32 %v1046
          %vm1053 = vmor %vm1051, %vm1052
          %v1054 = vsel %vm1053, %v1046, %v1050
          %v1055 = vand.u32 2147483647, %v974
          %vm1056 = vcmp.eq.f32.partialorder %v1055, 8.507059e+37
          %v1057 = vand.u32 %v974, 2147483648
          %v1058 = vor.u32 1.1754944e-38, %v1057
          %v1059 = vsel %vm1056, %v1058, %v1054
          %v1060 = vmul.f32 %v911, %v1059
          %v1061 = vrcp.pop %v975
          %v1062 = vmul.f32 %v975, %v1061
          %v1063 = vsub.f32 1.0, %v1062
          %v1064 = vmul.f32 %v1061, %v1063
          %v1065 = vadd.f32 %v1061, %v1064
          %vm1066 = vweird.f32 %v975
          %vm1067 = vweird.f32 %v1061
          %vm1068 = vmor %vm1066, %vm1067
          %v1069 = vsel %vm1068, %v1061, %v1065
          %v1070 = vand.u32 2147483647, %v975
          %vm1071 = vcmp.eq.f32.partialorder %v1070, 8.507059e+37
          %v1072 = vand.u32 %v975, 2147483648
          %v1073 = vor.u32 1.1754944e-38, %v1072
          %v1074 = vsel %vm1071, %v1073, %v1069
          %v1075 = vmul.f32 %v913, %v1074
          %v1076 = vrcp.pop %v976
          %v1077 = vmul.f32 %v976, %v1076
          %v1078 = vsub.f32 1.0, %v1077
          %v1079 = vmul.f32 %v1076, %v1078
          %v1080 = vadd.f32 %v1076, %v1079
          %vm1081 = vweird.f32 %v976
          %vm1082 = vweird.f32 %v1076
          %vm1083 = vmor %vm1081, %vm1082
          %v1084 = vsel %vm1083, %v1076, %v1080
          %v1085 = vand.u32 2147483647, %v976
          %vm1086 = vcmp.eq.f32.partialorder %v1085, 8.507059e+37
          %v1087 = vand.u32 %v976, 2147483648
          %v1088 = vor.u32 1.1754944e-38, %v1087
          %v1089 = vsel %vm1086, %v1088, %v1084
          %v1090 = vmul.f32 %v915, %v1089
          %v1091 = vrcp.pop %v977
          %v1092 = vmul.f32 %v977, %v1091
          %v1093 = vsub.f32 1.0, %v1092
          %v1094 = vmul.f32 %v1091, %v1093
          %v1095 = vadd.f32 %v1091, %v1094
          %vm1096 = vweird.f32 %v977
          %vm1097 = vweird.f32 %v1091
          %vm1098 = vmor %vm1096, %vm1097
          %v1099 = vsel %vm1098, %v1091, %v1095
          %v1100 = vand.u32 2147483647, %v977
          %vm1101 = vcmp.eq.f32.partialorder %v1100, 8.507059e+37
          %v1102 = vand.u32 %v977, 2147483648
          %v1103 = vor.u32 1.1754944e-38, %v1102
          %v1104 = vsel %vm1101, %v1103, %v1099
          %v1105 = vmul.f32 %v917, %v1104
          %1107 = vset.pattern.permute.xlu0 0
          %1108 = vperm.xlu0 %1107, %v1000
          %v1109 = vpop.permute.xlu0 %1108
          %1112 = vset.pattern.permute.xlu0 0
          %1113 = vperm.xlu0 %1112, %v1015
          %v1114 = vpop.permute.xlu0 %1113
          %1117 = vset.pattern.permute.xlu0 0
          %1118 = vperm.xlu0 %1117, %v1030
          %v1119 = vpop.permute.xlu0 %1118
          %1122 = vset.pattern.permute.xlu0 0
          %1123 = vperm.xlu0 %1122, %v1045
          %v1124 = vpop.permute.xlu0 %1123
          %1127 = vset.pattern.permute.xlu0 0
          %1128 = vperm.xlu0 %1127, %v1060
          %v1129 = vpop.permute.xlu0 %1128
          %1132 = vset.pattern.permute.xlu0 0
          %1133 = vperm.xlu0 %1132, %v1075
          %v1134 = vpop.permute.xlu0 %1133
          %1137 = vset.pattern.permute.xlu0 0
          %1138 = vperm.xlu0 %1137, %v1090
          %v1139 = vpop.permute.xlu0 %1138
          %1142 = vset.pattern.permute.xlu0 0
          %1143 = vperm.xlu0 %1142, %v1105
          %v1144 = vpop.permute.xlu0 %1143
          %v1146 = vmul.f32 %v1109, %v721
          %v1147 = vmul.f32 %v1114, %v722
          %v1148 = vmul.f32 %v1119, %v723
          %v1149 = vmul.f32 %v1124, %v724
          %v1150 = vmul.f32 %v1129, %v725
          %v1151 = vmul.f32 %v1134, %v726
          %v1152 = vmul.f32 %v1139, %v727
          %v1153 = vmul.f32 %v1144, %v728
          %v1154 = vrot.slane %v1146, 4
          %v1155 = vadd.f32 %v1146, %v1154
          %v1156 = vrot.slane %v1155, 2
          %v1157 = vadd.f32 %v1155, %v1156
          %v1158 = vrot.slane %v1157, 1
          %v1159 = vadd.f32 %v1157, %v1158
          %v1160 = vrot.slane %v1147, 4
          %v1161 = vadd.f32 %v1147, %v1160
          %v1162 = vrot.slane %v1161, 2
          %v1163 = vadd.f32 %v1161, %v1162
          %v1164 = vrot.slane %v1163, 1
          %v1165 = vadd.f32 %v1163, %v1164
          %v1166 = vrot.slane %v1148, 4
          %v1167 = vadd.f32 %v1148, %v1166
          %v1168 = vrot.slane %v1167, 2
          %v1169 = vadd.f32 %v1167, %v1168
          %v1170 = vrot.slane %v1169, 1
          %v1171 = vadd.f32 %v1169, %v1170
          %v1172 = vrot.slane %v1149, 4
          %v1173 = vadd.f32 %v1149, %v1172
          %v1174 = vrot.slane %v1173, 2
          %v1175 = vadd.f32 %v1173, %v1174
          %v1176 = vrot.slane %v1175, 1
          %v1177 = vadd.f32 %v1175, %v1176
          %v1178 = vrot.slane %v1150, 4
          %v1179 = vadd.f32 %v1150, %v1178
          %v1180 = vrot.slane %v1179, 2
          %v1181 = vadd.f32 %v1179, %v1180
          %v1182 = vrot.slane %v1181, 1
          %v1183 = vadd.f32 %v1181, %v1182
          %v1184 = vrot.slane %v1151, 4
          %v1185 = vadd.f32 %v1151, %v1184
          %v1186 = vrot.slane %v1185, 2
          %v1187 = vadd.f32 %v1185, %v1186
          %v1188 = vrot.slane %v1187, 1
          %v1189 = vadd.f32 %v1187, %v1188
          %v1190 = vrot.slane %v1152, 4
          %v1191 = vadd.f32 %v1152, %v1190
          %v1192 = vrot.slane %v1191, 2
          %v1193 = vadd.f32 %v1191, %v1192
          %v1194 = vrot.slane %v1193, 1
          %v1195 = vadd.f32 %v1193, %v1194
          %v1196 = vrot.slane %v1153, 4
          %v1197 = vadd.f32 %v1153, %v1196
          %v1198 = vrot.slane %v1197, 2
          %v1199 = vadd.f32 %v1197, %v1198
          %v1200 = vrot.slane %v1199, 1
          %v1201 = vadd.f32 %v1199, %v1200
          %v1202 = vld [vmem:[#allocation2] sm:$0xff]
          %v1203 = vld [vmem:[#allocation5] sm:$0xff]
          %v1204 = vld [vmem:[#allocation5 + $0x8] sm:$0xf]
          %v1205 = vld [vmem:[#allocation5 + $0xc] sm:$0xff]
          %v1206 = vld [vmem:[#allocation5 + $0x14] sm:$0xf]
          %v1207 = vld [vmem:[#allocation5 + $0x18] sm:$0xff]
          %v1208 = vld [vmem:[#allocation5 + $0x20] sm:$0xf]
          %v1209 = vld [vmem:[#allocation5 + $0x24] sm:$0xff]
          %v1210 = vld [vmem:[#allocation5 + $0x2c] sm:$0xf]
          %v1211 = vld [vmem:[#allocation5 + $0x30] sm:$0xff]
          %v1212 = vld [vmem:[#allocation5 + $0x38] sm:$0xf]
          %v1213 = vld [vmem:[#allocation5 + $0x3c] sm:$0xff]
          %v1214 = vld [vmem:[#allocation5 + $0x44] sm:$0xf]
          %v1215 = vld [vmem:[#allocation5 + $0x48] sm:$0xff]
          %v1216 = vld [vmem:[#allocation5 + $0x50] sm:$0xf]
          %v1217 = vld [vmem:[#allocation5 + $0x54] sm:$0xff]
          %v1218 = vld [vmem:[#allocation5 + $0x5c] sm:$0xf]
          %v1219 = vld [vmem:[#allocation5 + $0x60] sm:$0xff]
          %v1220 = vld [vmem:[#allocation5 + $0x68] sm:$0xf]
          %v1221 = vld [vmem:[#allocation5 + $0x6c] sm:$0xff]
          %v1222 = vld [vmem:[#allocation5 + $0x74] sm:$0xf]
          %v1223 = vld [vmem:[#allocation5 + $0x78] sm:$0xff]
          %v1224 = vld [vmem:[#allocation5 + $0x80] sm:$0xf]
          %v1225 = vld [vmem:[#allocation5 + $0x84] sm:$0xff]
          %v1226 = vld [vmem:[#allocation5 + $0x8c] sm:$0xf]
          %v1227 = vld [vmem:[#allocation5 + $0x90] sm:$0xff]
          %v1228 = vld [vmem:[#allocation5 + $0x98] sm:$0xf]
          %v1229 = vld [vmem:[#allocation5 + $0x9c] sm:$0xff]
          %v1230 = vld [vmem:[#allocation5 + $0xa4] sm:$0xf]
          %v1231 = vld [vmem:[#allocation5 + $0xa8] sm:$0xff]
          %v1232 = vld [vmem:[#allocation5 + $0xb0] sm:$0xf]
          %v1233 = vld [vmem:[#allocation5 + $0xb4] sm:$0xff]
          %v1234 = vld [vmem:[#allocation5 + $0xbc] sm:$0xf]
          %v1235 = vunpack.c.l.bf16 %v1203
          %v1236 = vunpack.c.h.bf16 %v1203
          %v1237 = vunpack.c.l.bf16 %v1204
          %v1238 = vunpack.c.l.bf16 %v1205
          %v1239 = vunpack.c.h.bf16 %v1205
          %v1240 = vunpack.c.l.bf16 %v1206
          %v1241 = vunpack.c.l.bf16 %v1207
          %v1242 = vunpack.c.h.bf16 %v1207
          %v1243 = vunpack.c.l.bf16 %v1208
          %v1244 = vunpack.c.l.bf16 %v1209
          %v1245 = vunpack.c.h.bf16 %v1209
          %v1246 = vunpack.c.l.bf16 %v1210
          %v1247 = vunpack.c.l.bf16 %v1211
          %v1248 = vunpack.c.h.bf16 %v1211
          %v1249 = vunpack.c.l.bf16 %v1212
          %v1250 = vunpack.c.l.bf16 %v1213
          %v1251 = vunpack.c.h.bf16 %v1213
          %v1252 = vunpack.c.l.bf16 %v1214
          %v1253 = vunpack.c.l.bf16 %v1215
          %v1254 = vunpack.c.h.bf16 %v1215
          %v1255 = vunpack.c.l.bf16 %v1216
          %v1256 = vunpack.c.l.bf16 %v1217
          %v1257 = vunpack.c.h.bf16 %v1217
          %v1258 = vunpack.c.l.bf16 %v1218
          %v1259 = vunpack.c.l.bf16 %v1219
          %v1260 = vunpack.c.h.bf16 %v1219
          %v1261 = vunpack.c.l.bf16 %v1220
          %v1262 = vunpack.c.l.bf16 %v1221
          %v1263 = vunpack.c.h.bf16 %v1221
          %v1264 = vunpack.c.l.bf16 %v1222
          %v1265 = vunpack.c.l.bf16 %v1223
          %v1266 = vunpack.c.h.bf16 %v1223
          %v1267 = vunpack.c.l.bf16 %v1224
          %v1268 = vunpack.c.l.bf16 %v1225
          %v1269 = vunpack.c.h.bf16 %v1225
          %v1270 = vunpack.c.l.bf16 %v1226
          %v1271 = vunpack.c.l.bf16 %v1227
          %v1272 = vunpack.c.h.bf16 %v1227
          %v1273 = vunpack.c.l.bf16 %v1228
          %v1274 = vunpack.c.l.bf16 %v1229
          %v1275 = vunpack.c.h.bf16 %v1229
          %v1276 = vunpack.c.l.bf16 %v1230
          %v1277 = vunpack.c.l.bf16 %v1231
          %v1278 = vunpack.c.h.bf16 %v1231
          %v1279 = vunpack.c.l.bf16 %v1232
          %v1280 = vunpack.c.l.bf16 %v1233
          %v1281 = vunpack.c.h.bf16 %v1233
          %v1282 = vunpack.c.l.bf16 %v1234
          %v1283 = vld [vmem:[%s9] sm:$0x7]
          %v1285 = vperm.slane %v1283, 0
          %v1286 = vperm.slane %v1283, 1
          %v1287 = vperm.slane %v1283, 2
          %1291 = vmatpush.msra.mxu0 %v1280
          %1292 = vmatpush.msra.mxu0 %v1277
          %1293 = vmatpush.msra.mxu0 %v1274
          %1294 = vmatpush.msra.mxu0 %v1271
          %1295 = vmatpush.msra.mxu0 %v1268
          %1296 = vmatpush.msra.mxu0 %v1265
          %1297 = vmatpush.msra.mxu0 %v1262
          %1298 = vmatpush.msra.mxu0 %v1259
          %1299 = vmatpush.msra.mxu0 %v1256
          %1300 = vmatpush.msra.mxu0 %v1253
          %1301 = vmatpush.msra.mxu0 %v1250
          %1302 = vmatpush.msra.mxu0 %v1247
          %1303 = vmatpush.msra.mxu0 %v1244
          %1304 = vmatpush.msra.mxu0 %v1241
          %1305 = vmatpush.msra.mxu0 %v1238
          %1306 = vmatpush.msra.mxu0 %v1235
          %v1307 = vand.u32 %v720, 4294901760
          %v1308 = vsub.f32 %v720, %v1307
          %v1309 = vand.u32 %v1308, 4294901760
          %v1310 = vsub.f32 %v1308, %v1309
          %v1311 = vand.u32 %v1310, 4294901760
          %1312 = vmatmul.f32.gmra.mxu0 %v1311
          %v1313 = vpop.f32.mrf.mxu0
          %v1314 = vadd.f32 %v1285, %v1313
          %1315 = vdwg.mxu0
          %v1316 = vsub.f32 %v1280, %v1280
          %v1317 = vand.u32 %v1316, 4294901760
          %v1318 = vsub.f32 %v1316, %v1317
          %v1319 = vand.u32 %v1318, 4294901760
          %1320 = vmatpush.msra.mxu0 %v1319
          %v1321 = vsub.f32 %v1277, %v1277
          %v1322 = vand.u32 %v1321, 4294901760
          %v1323 = vsub.f32 %v1321, %v1322
          %v1324 = vand.u32 %v1323, 4294901760
          %1325 = vmatpush.msra.mxu0 %v1324
          %v1326 = vsub.f32 %v1274, %v1274
          %v1327 = vand.u32 %v1326, 4294901760
          %v1328 = vsub.f32 %v1326, %v1327
          %v1329 = vand.u32 %v1328, 4294901760
          %1330 = vmatpush.msra.mxu0 %v1329
          %v1331 = vsub.f32 %v1271, %v1271
          %v1332 = vand.u32 %v1331, 4294901760
          %v1333 = vsub.f32 %v1331, %v1332
          %v1334 = vand.u32 %v1333, 4294901760
          %1335 = vmatpush.msra.mxu0 %v1334
          %v1336 = vsub.f32 %v1268, %v1268
          %v1337 = vand.u32 %v1336, 4294901760
          %v1338 = vsub.f32 %v1336, %v1337
          %v1339 = vand.u32 %v1338, 4294901760
          %1340 = vmatpush.msra.mxu0 %v1339
          %v1341 = vsub.f32 %v1265, %v1265
          %v1342 = vand.u32 %v1341, 4294901760
          %v1343 = vsub.f32 %v1341, %v1342
          %v1344 = vand.u32 %v1343, 4294901760
          %1345 = vmatpush.msra.mxu0 %v1344
          %v1346 = vsub.f32 %v1262, %v1262
          %v1347 = vand.u32 %v1346, 4294901760
          %v1348 = vsub.f32 %v1346, %v1347
          %v1349 = vand.u32 %v1348, 4294901760
          %1350 = vmatpush.msra.mxu0 %v1349
          %v1351 = vsub.f32 %v1259, %v1259
          %v1352 = vand.u32 %v1351, 4294901760
          %v1353 = vsub.f32 %v1351, %v1352
          %v1354 = vand.u32 %v1353, 4294901760
          %1355 = vmatpush.msra.mxu0 %v1354
          %v1356 = vsub.f32 %v1256, %v1256
          %v1357 = vand.u32 %v1356, 4294901760
          %v1358 = vsub.f32 %v1356, %v1357
          %v1359 = vand.u32 %v1358, 4294901760
          %1360 = vmatpush.msra.mxu0 %v1359
          %v1361 = vsub.f32 %v1253, %v1253
          %v1362 = vand.u32 %v1361, 4294901760
          %v1363 = vsub.f32 %v1361, %v1362
          %v1364 = vand.u32 %v1363, 4294901760
          %1365 = vmatpush.msra.mxu0 %v1364
          %v1366 = vsub.f32 %v1250, %v1250
          %v1367 = vand.u32 %v1366, 4294901760
          %v1368 = vsub.f32 %v1366, %v1367
          %v1369 = vand.u32 %v1368, 4294901760
          %1370 = vmatpush.msra.mxu0 %v1369
          %v1371 = vsub.f32 %v1247, %v1247
          %v1372 = vand.u32 %v1371, 4294901760
          %v1373 = vsub.f32 %v1371, %v1372
          %v1374 = vand.u32 %v1373, 4294901760
          %1375 = vmatpush.msra.mxu0 %v1374
          %v1376 = vsub.f32 %v1244, %v1244
          %v1377 = vand.u32 %v1376, 4294901760
          %v1378 = vsub.f32 %v1376, %v1377
          %v1379 = vand.u32 %v1378, 4294901760
          %1380 = vmatpush.msra.mxu0 %v1379
          %v1381 = vsub.f32 %v1241, %v1241
          %v1382 = vand.u32 %v1381, 4294901760
          %v1383 = vsub.f32 %v1381, %v1382
          %v1384 = vand.u32 %v1383, 4294901760
          %1385 = vmatpush.msra.mxu0 %v1384
          %v1386 = vsub.f32 %v1238, %v1238
          %v1387 = vand.u32 %v1386, 4294901760
          %v1388 = vsub.f32 %v1386, %v1387
          %v1389 = vand.u32 %v1388, 4294901760
          %1390 = vmatpush.msra.mxu0 %v1389
          %v1391 = vsub.f32 %v1235, %v1235
          %v1392 = vand.u32 %v1391, 4294901760
          %v1393 = vsub.f32 %v1391, %v1392
          %v1394 = vand.u32 %v1393, 4294901760
          %1395 = vmatpush.msra.mxu0 %v1394
          %v1396 = vand.u32 %v720, 4294901760
          %1397 = vmatmul.f32.gmra.mxu0 %v1396
          %v1398 = vpop.f32.mrf.mxu0
          %v1399 = vadd.f32 %v1314, %v1398
          %1400 = vdwg.mxu0
          %v1401 = vsub.f32 %v1280, %v1280
          %1402 = vmatpush.msra.mxu0 %v1401
          %v1403 = vsub.f32 %v1277, %v1277
          %1404 = vmatpush.msra.mxu0 %v1403
          %v1405 = vsub.f32 %v1274, %v1274
          %1406 = vmatpush.msra.mxu0 %v1405
          %v1407 = vsub.f32 %v1271, %v1271
          %1408 = vmatpush.msra.mxu0 %v1407
          %v1409 = vsub.f32 %v1268, %v1268
          %1410 = vmatpush.msra.mxu0 %v1409
          %v1411 = vsub.f32 %v1265, %v1265
          %1412 = vmatpush.msra.mxu0 %v1411
          %v1413 = vsub.f32 %v1262, %v1262
          %1414 = vmatpush.msra.mxu0 %v1413
          %v1415 = vsub.f32 %v1259, %v1259
          %1416 = vmatpush.msra.mxu0 %v1415
          %v1417 = vsub.f32 %v1256, %v1256
          %1418 = vmatpush.msra.mxu0 %v1417
          %v1419 = vsub.f32 %v1253, %v1253
          %1420 = vmatpush.msra.mxu0 %v1419
          %v1421 = vsub.f32 %v1250, %v1250
          %1422 = vmatpush.msra.mxu0 %v1421
          %v1423 = vsub.f32 %v1247, %v1247
          %1424 = vmatpush.msra.mxu0 %v1423
          %v1425 = vsub.f32 %v1244, %v1244
          %1426 = vmatpush.msra.mxu0 %v1425
          %v1427 = vsub.f32 %v1241, %v1241
          %1428 = vmatpush.msra.mxu0 %v1427
          %v1429 = vsub.f32 %v1238, %v1238
          %1430 = vmatpush.msra.mxu0 %v1429
          %v1431 = vsub.f32 %v1235, %v1235
          %1432 = vmatpush.msra.mxu0 %v1431
          %v1433 = vand.u32 %v720, 4294901760
          %v1434 = vsub.f32 %v720, %v1433
          %1435 = vmatmul.f32.gmra.mxu0 %v1434
          %v1436 = vpop.f32.mrf.mxu0
          %v1437 = vadd.f32 %v1399, %v1436
          %1438 = vdwg.mxu0
          %1439 = vmatpush.msra.mxu0 %v1280
          %1440 = vmatpush.msra.mxu0 %v1277
          %1441 = vmatpush.msra.mxu0 %v1274
          %1442 = vmatpush.msra.mxu0 %v1271
          %1443 = vmatpush.msra.mxu0 %v1268
          %1444 = vmatpush.msra.mxu0 %v1265
          %1445 = vmatpush.msra.mxu0 %v1262
          %1446 = vmatpush.msra.mxu0 %v1259
          %1447 = vmatpush.msra.mxu0 %v1256
          %1448 = vmatpush.msra.mxu0 %v1253
          %1449 = vmatpush.msra.mxu0 %v1250
          %1450 = vmatpush.msra.mxu0 %v1247
          %1451 = vmatpush.msra.mxu0 %v1244
          %1452 = vmatpush.msra.mxu0 %v1241
          %1453 = vmatpush.msra.mxu0 %v1238
          %1454 = vmatpush.msra.mxu0 %v1235
          %v1455 = vand.u32 %v720, 4294901760
          %v1456 = vsub.f32 %v720, %v1455
          %v1457 = vand.u32 %v1456, 4294901760
          %1458 = vmatmul.f32.gmra.mxu0 %v1457
          %v1459 = vpop.f32.mrf.mxu0
          %v1460 = vadd.f32 %v1437, %v1459
          %1461 = vdwg.mxu0
          %v1462 = vsub.f32 %v1280, %v1280
          %v1463 = vand.u32 %v1462, 4294901760
          %1464 = vmatpush.msra.mxu0 %v1463
          %v1465 = vsub.f32 %v1277, %v1277
          %v1466 = vand.u32 %v1465, 4294901760
          %1467 = vmatpush.msra.mxu0 %v1466
          %v1468 = vsub.f32 %v1274, %v1274
          %v1469 = vand.u32 %v1468, 4294901760
          %1470 = vmatpush.msra.mxu0 %v1469
          %v1471 = vsub.f32 %v1271, %v1271
          %v1472 = vand.u32 %v1471, 4294901760
          %1473 = vmatpush.msra.mxu0 %v1472
          %v1474 = vsub.f32 %v1268, %v1268
          %v1475 = vand.u32 %v1474, 4294901760
          %1476 = vmatpush.msra.mxu0 %v1475
          %v1477 = vsub.f32 %v1265, %v1265
          %v1478 = vand.u32 %v1477, 4294901760
          %1479 = vmatpush.msra.mxu0 %v1478
          %v1480 = vsub.f32 %v1262, %v1262
          %v1481 = vand.u32 %v1480, 4294901760
          %1482 = vmatpush.msra.mxu0 %v1481
          %v1483 = vsub.f32 %v1259, %v1259
          %v1484 = vand.u32 %v1483, 4294901760
          %1485 = vmatpush.msra.mxu0 %v1484
          %v1486 = vsub.f32 %v1256, %v1256
          %v1487 = vand.u32 %v1486, 4294901760
          %1488 = vmatpush.msra.mxu0 %v1487
          %v1489 = vsub.f32 %v1253, %v1253
          %v1490 = vand.u32 %v1489, 4294901760
          %1491 = vmatpush.msra.mxu0 %v1490
          %v1492 = vsub.f32 %v1250, %v1250
          %v1493 = vand.u32 %v1492, 4294901760
          %1494 = vmatpush.msra.mxu0 %v1493
          %v1495 = vsub.f32 %v1247, %v1247
          %v1496 = vand.u32 %v1495, 4294901760
          %1497 = vmatpush.msra.mxu0 %v1496
          %v1498 = vsub.f32 %v1244, %v1244
          %v1499 = vand.u32 %v1498, 4294901760
          %1500 = vmatpush.msra.mxu0 %v1499
          %v1501 = vsub.f32 %v1241, %v1241
          %v1502 = vand.u32 %v1501, 4294901760
          %1503 = vmatpush.msra.mxu0 %v1502
          %v1504 = vsub.f32 %v1238, %v1238
          %v1505 = vand.u32 %v1504, 4294901760
          %1506 = vmatpush.msra.mxu0 %v1505
          %v1507 = vsub.f32 %v1235, %v1235
          %v1508 = vand.u32 %v1507, 4294901760
          %1509 = vmatpush.msra.mxu0 %v1508
          %v1510 = vand.u32 %v720, 4294901760
          %1511 = vmatmul.f32.gmra.mxu0 %v1510
          %v1512 = vpop.f32.mrf.mxu0
          %v1513 = vadd.f32 %v1460, %v1512
          %1514 = vdwg.mxu0
          %1515 = vmatpush.msra.mxu0 %v1280
          %1516 = vmatpush.msra.mxu0 %v1277
          %1517 = vmatpush.msra.mxu0 %v1274
          %1518 = vmatpush.msra.mxu0 %v1271
          %1519 = vmatpush.msra.mxu0 %v1268
          %1520 = vmatpush.msra.mxu0 %v1265
          %1521 = vmatpush.msra.mxu0 %v1262
          %1522 = vmatpush.msra.mxu0 %v1259
          %1523 = vmatpush.msra.mxu0 %v1256
          %1524 = vmatpush.msra.mxu0 %v1253
          %1525 = vmatpush.msra.mxu0 %v1250
          %1526 = vmatpush.msra.mxu0 %v1247
          %1527 = vmatpush.msra.mxu0 %v1244
          %1528 = vmatpush.msra.mxu0 %v1241
          %1529 = vmatpush.msra.mxu0 %v1238
          %1530 = vmatpush.msra.mxu0 %v1235
          %v1531 = vand.u32 %v720, 4294901760
          %1532 = vmatmul.f32.gmra.mxu0 %v1531
          %v1533 = vpop.f32.mrf.mxu0
          %v1534 = vadd.f32 %v1513, %v1533
          %1535 = vdwg.mxu0
          %1536 = vmatpush.msra.mxu0 %v1281
          %1537 = vmatpush.msra.mxu0 %v1278
          %1538 = vmatpush.msra.mxu0 %v1275
          %1539 = vmatpush.msra.mxu0 %v1272
          %1540 = vmatpush.msra.mxu0 %v1269
          %1541 = vmatpush.msra.mxu0 %v1266
          %1542 = vmatpush.msra.mxu0 %v1263
          %1543 = vmatpush.msra.mxu0 %v1260
          %1544 = vmatpush.msra.mxu0 %v1257
          %1545 = vmatpush.msra.mxu0 %v1254
          %1546 = vmatpush.msra.mxu0 %v1251
          %1547 = vmatpush.msra.mxu0 %v1248
          %1548 = vmatpush.msra.mxu0 %v1245
          %1549 = vmatpush.msra.mxu0 %v1242
          %1550 = vmatpush.msra.mxu0 %v1239
          %1551 = vmatpush.msra.mxu0 %v1236
          %v1552 = vand.u32 %v720, 4294901760
          %v1553 = vsub.f32 %v720, %v1552
          %v1554 = vand.u32 %v1553, 4294901760
          %v1555 = vsub.f32 %v1553, %v1554
          %v1556 = vand.u32 %v1555, 4294901760
          %1557 = vmatmul.f32.gmra.mxu0 %v1556
          %v1558 = vpop.f32.mrf.mxu0
          %v1559 = vadd.f32 %v1286, %v1558
          %1560 = vdwg.mxu0
          %v1561 = vsub.f32 %v1281, %v1281
          %v1562 = vand.u32 %v1561, 4294901760
          %v1563 = vsub.f32 %v1561, %v1562
          %v1564 = vand.u32 %v1563, 4294901760
          %1565 = vmatpush.msra.mxu0 %v1564
          %v1566 = vsub.f32 %v1278, %v1278
          %v1567 = vand.u32 %v1566, 4294901760
          %v1568 = vsub.f32 %v1566, %v1567
          %v1569 = vand.u32 %v1568, 4294901760
          %1570 = vmatpush.msra.mxu0 %v1569
          %v1571 = vsub.f32 %v1275, %v1275
          %v1572 = vand.u32 %v1571, 4294901760
          %v1573 = vsub.f32 %v1571, %v1572
          %v1574 = vand.u32 %v1573, 4294901760
          %1575 = vmatpush.msra.mxu0 %v1574
          %v1576 = vsub.f32 %v1272, %v1272
          %v1577 = vand.u32 %v1576, 4294901760
          %v1578 = vsub.f32 %v1576, %v1577
          %v1579 = vand.u32 %v1578, 4294901760
          %1580 = vmatpush.msra.mxu0 %v1579
          %v1581 = vsub.f32 %v1269, %v1269
          %v1582 = vand.u32 %v1581, 4294901760
          %v1583 = vsub.f32 %v1581, %v1582
          %v1584 = vand.u32 %v1583, 4294901760
          %1585 = vmatpush.msra.mxu0 %v1584
          %v1586 = vsub.f32 %v1266, %v1266
          %v1587 = vand.u32 %v1586, 4294901760
          %v1588 = vsub.f32 %v1586, %v1587
          %v1589 = vand.u32 %v1588, 4294901760
          %1590 = vmatpush.msra.mxu0 %v1589
          %v1591 = vsub.f32 %v1263, %v1263
          %v1592 = vand.u32 %v1591, 4294901760
          %v1593 = vsub.f32 %v1591, %v1592
          %v1594 = vand.u32 %v1593, 4294901760
          %1595 = vmatpush.msra.mxu0 %v1594
          %v1596 = vsub.f32 %v1260, %v1260
          %v1597 = vand.u32 %v1596, 4294901760
          %v1598 = vsub.f32 %v1596, %v1597
          %v1599 = vand.u32 %v1598, 4294901760
          %1600 = vmatpush.msra.mxu0 %v1599
          %v1601 = vsub.f32 %v1257, %v1257
          %v1602 = vand.u32 %v1601, 4294901760
          %v1603 = vsub.f32 %v1601, %v1602
          %v1604 = vand.u32 %v1603, 4294901760
          %1605 = vmatpush.msra.mxu0 %v1604
          %v1606 = vsub.f32 %v1254, %v1254
          %v1607 = vand.u32 %v1606, 4294901760
          %v1608 = vsub.f32 %v1606, %v1607
          %v1609 = vand.u32 %v1608, 4294901760
          %1610 = vmatpush.msra.mxu0 %v1609
          %v1611 = vsub.f32 %v1251, %v1251
          %v1612 = vand.u32 %v1611, 4294901760
          %v1613 = vsub.f32 %v1611, %v1612
          %v1614 = vand.u32 %v1613, 4294901760
          %1615 = vmatpush.msra.mxu0 %v1614
          %v1616 = vsub.f32 %v1248, %v1248
          %v1617 = vand.u32 %v1616, 4294901760
          %v1618 = vsub.f32 %v1616, %v1617
          %v1619 = vand.u32 %v1618, 4294901760
          %1620 = vmatpush.msra.mxu0 %v1619
          %v1621 = vsub.f32 %v1245, %v1245
          %v1622 = vand.u32 %v1621, 4294901760
          %v1623 = vsub.f32 %v1621, %v1622
          %v1624 = vand.u32 %v1623, 4294901760
          %1625 = vmatpush.msra.mxu0 %v1624
          %v1626 = vsub.f32 %v1242, %v1242
          %v1627 = vand.u32 %v1626, 4294901760
          %v1628 = vsub.f32 %v1626, %v1627
          %v1629 = vand.u32 %v1628, 4294901760
          %1630 = vmatpush.msra.mxu0 %v1629
          %v1631 = vsub.f32 %v1239, %v1239
          %v1632 = vand.u32 %v1631, 4294901760
          %v1633 = vsub.f32 %v1631, %v1632
          %v1634 = vand.u32 %v1633, 4294901760
          %1635 = vmatpush.msra.mxu0 %v1634
          %v1636 = vsub.f32 %v1236, %v1236
          %v1637 = vand.u32 %v1636, 4294901760
          %v1638 = vsub.f32 %v1636, %v1637
          %v1639 = vand.u32 %v1638, 4294901760
          %1640 = vmatpush.msra.mxu0 %v1639
          %v1641 = vand.u32 %v720, 4294901760
          %1642 = vmatmul.f32.gmra.mxu0 %v1641
          %v1643 = vpop.f32.mrf.mxu0
          %v1644 = vadd.f32 %v1559, %v1643
          %1645 = vdwg.mxu0
          %v1646 = vsub.f32 %v1281, %v1281
          %1647 = vmatpush.msra.mxu0 %v1646
          %v1648 = vsub.f32 %v1278, %v1278
          %1649 = vmatpush.msra.mxu0 %v1648
          %v1650 = vsub.f32 %v1275, %v1275
          %1651 = vmatpush.msra.mxu0 %v1650
          %v1652 = vsub.f32 %v1272, %v1272
          %1653 = vmatpush.msra.mxu0 %v1652
          %v1654 = vsub.f32 %v1269, %v1269
          %1655 = vmatpush.msra.mxu0 %v1654
          %v1656 = vsub.f32 %v1266, %v1266
          %1657 = vmatpush.msra.mxu0 %v1656
          %v1658 = vsub.f32 %v1263, %v1263
          %1659 = vmatpush.msra.mxu0 %v1658
          %v1660 = vsub.f32 %v1260, %v1260
          %1661 = vmatpush.msra.mxu0 %v1660
          %v1662 = vsub.f32 %v1257, %v1257
          %1663 = vmatpush.msra.mxu0 %v1662
          %v1664 = vsub.f32 %v1254, %v1254
          %1665 = vmatpush.msra.mxu0 %v1664
          %v1666 = vsub.f32 %v1251, %v1251
          %1667 = vmatpush.msra.mxu0 %v1666
          %v1668 = vsub.f32 %v1248, %v1248
          %1669 = vmatpush.msra.mxu0 %v1668
          %v1670 = vsub.f32 %v1245, %v1245
          %1671 = vmatpush.msra.mxu0 %v1670
          %v1672 = vsub.f32 %v1242, %v1242
          %1673 = vmatpush.msra.mxu0 %v1672
          %v1674 = vsub.f32 %v1239, %v1239
          %1675 = vmatpush.msra.mxu0 %v1674
          %v1676 = vsub.f32 %v1236, %v1236
          %1677 = vmatpush.msra.mxu0 %v1676
          %v1678 = vand.u32 %v720, 4294901760
          %v1679 = vsub.f32 %v720, %v1678
          %1680 = vmatmul.f32.gmra.mxu0 %v1679
          %v1681 = vpop.f32.mrf.mxu0
          %v1682 = vadd.f32 %v1644, %v1681
          %1683 = vdwg.mxu0
          %1684 = vmatpush.msra.mxu0 %v1281
          %1685 = vmatpush.msra.mxu0 %v1278
          %1686 = vmatpush.msra.mxu0 %v1275
          %1687 = vmatpush.msra.mxu0 %v1272
          %1688 = vmatpush.msra.mxu0 %v1269
          %1689 = vmatpush.msra.mxu0 %v1266
          %1690 = vmatpush.msra.mxu0 %v1263
          %1691 = vmatpush.msra.mxu0 %v1260
          %1692 = vmatpush.msra.mxu0 %v1257
          %1693 = vmatpush.msra.mxu0 %v1254
          %1694 = vmatpush.msra.mxu0 %v1251
          %1695 = vmatpush.msra.mxu0 %v1248
          %1696 = vmatpush.msra.mxu0 %v1245
          %1697 = vmatpush.msra.mxu0 %v1242
          %1698 = vmatpush.msra.mxu0 %v1239
          %1699 = vmatpush.msra.mxu0 %v1236
          %v1700 = vand.u32 %v720, 4294901760
          %v1701 = vsub.f32 %v720, %v1700
          %v1702 = vand.u32 %v1701, 4294901760
          %1703 = vmatmul.f32.gmra.mxu0 %v1702
          %v1704 = vpop.f32.mrf.mxu0
          %v1705 = vadd.f32 %v1682, %v1704
          %1706 = vdwg.mxu0
          %v1707 = vsub.f32 %v1281, %v1281
          %v1708 = vand.u32 %v1707, 4294901760
          %1709 = vmatpush.msra.mxu0 %v1708
          %v1710 = vsub.f32 %v1278, %v1278
          %v1711 = vand.u32 %v1710, 4294901760
          %1712 = vmatpush.msra.mxu0 %v1711
          %v1713 = vsub.f32 %v1275, %v1275
          %v1714 = vand.u32 %v1713, 4294901760
          %1715 = vmatpush.msra.mxu0 %v1714
          %v1716 = vsub.f32 %v1272, %v1272
          %v1717 = vand.u32 %v1716, 4294901760
          %1718 = vmatpush.msra.mxu0 %v1717
          %v1719 = vsub.f32 %v1269, %v1269
          %v1720 = vand.u32 %v1719, 4294901760
          %1721 = vmatpush.msra.mxu0 %v1720
          %v1722 = vsub.f32 %v1266, %v1266
          %v1723 = vand.u32 %v1722, 4294901760
          %1724 = vmatpush.msra.mxu0 %v1723
          %v1725 = vsub.f32 %v1263, %v1263
          %v1726 = vand.u32 %v1725, 4294901760
          %1727 = vmatpush.msra.mxu0 %v1726
          %v1728 = vsub.f32 %v1260, %v1260
          %v1729 = vand.u32 %v1728, 4294901760
          %1730 = vmatpush.msra.mxu0 %v1729
          %v1731 = vsub.f32 %v1257, %v1257
          %v1732 = vand.u32 %v1731, 4294901760
          %1733 = vmatpush.msra.mxu0 %v1732
          %v1734 = vsub.f32 %v1254, %v1254
          %v1735 = vand.u32 %v1734, 4294901760
          %1736 = vmatpush.msra.mxu0 %v1735
          %v1737 = vsub.f32 %v1251, %v1251
          %v1738 = vand.u32 %v1737, 4294901760
          %1739 = vmatpush.msra.mxu0 %v1738
          %v1740 = vsub.f32 %v1248, %v1248
          %v1741 = vand.u32 %v1740, 4294901760
          %1742 = vmatpush.msra.mxu0 %v1741
          %v1743 = vsub.f32 %v1245, %v1245
          %v1744 = vand.u32 %v1743, 4294901760
          %1745 = vmatpush.msra.mxu0 %v1744
          %v1746 = vsub.f32 %v1242, %v1242
          %v1747 = vand.u32 %v1746, 4294901760
          %1748 = vmatpush.msra.mxu0 %v1747
          %v1749 = vsub.f32 %v1239, %v1239
          %v1750 = vand.u32 %v1749, 4294901760
          %1751 = vmatpush.msra.mxu0 %v1750
          %v1752 = vsub.f32 %v1236, %v1236
          %v1753 = vand.u32 %v1752, 4294901760
          %1754 = vmatpush.msra.mxu0 %v1753
          %v1755 = vand.u32 %v720, 4294901760
          %1756 = vmatmul.f32.gmra.mxu0 %v1755
          %v1757 = vpop.f32.mrf.mxu0
          %v1758 = vadd.f32 %v1705, %v1757
          %1759 = vdwg.mxu0
          %1760 = vmatpush.msra.mxu0 %v1281
          %1761 = vmatpush.msra.mxu0 %v1278
          %1762 = vmatpush.msra.mxu0 %v1275
          %1763 = vmatpush.msra.mxu0 %v1272
          %1764 = vmatpush.msra.mxu0 %v1269
          %1765 = vmatpush.msra.mxu0 %v1266
          %1766 = vmatpush.msra.mxu0 %v1263
          %1767 = vmatpush.msra.mxu0 %v1260
          %1768 = vmatpush.msra.mxu0 %v1257
          %1769 = vmatpush.msra.mxu0 %v1254
          %1770 = vmatpush.msra.mxu0 %v1251
          %1771 = vmatpush.msra.mxu0 %v1248
          %1772 = vmatpush.msra.mxu0 %v1245
          %1773 = vmatpush.msra.mxu0 %v1242
          %1774 = vmatpush.msra.mxu0 %v1239
          %1775 = vmatpush.msra.mxu0 %v1236
          %v1776 = vand.u32 %v720, 4294901760
          %1777 = vmatmul.f32.gmra.mxu0 %v1776
          %v1778 = vpop.f32.mrf.mxu0
          %v1779 = vadd.f32 %v1758, %v1778
          %1780 = vdwg.mxu0
          %1781 = vmatpush.msra.mxu0 %v1282
          %1782 = vmatpush.msra.mxu0 %v1279
          %1783 = vmatpush.msra.mxu0 %v1276
          %1784 = vmatpush.msra.mxu0 %v1273
          %1785 = vmatpush.msra.mxu0 %v1270
          %1786 = vmatpush.msra.mxu0 %v1267
          %1787 = vmatpush.msra.mxu0 %v1264
          %1788 = vmatpush.msra.mxu0 %v1261
          %1789 = vmatpush.msra.mxu0 %v1258
          %1790 = vmatpush.msra.mxu0 %v1255
          %1791 = vmatpush.msra.mxu0 %v1252
          %1792 = vmatpush.msra.mxu0 %v1249
          %1793 = vmatpush.msra.mxu0 %v1246
          %1794 = vmatpush.msra.mxu0 %v1243
          %1795 = vmatpush.msra.mxu0 %v1240
          %1796 = vmatpush.msra.mxu0 %v1237
          %v1797 = vand.u32 %v720, 4294901760
          %v1798 = vsub.f32 %v720, %v1797
          %v1799 = vand.u32 %v1798, 4294901760
          %v1800 = vsub.f32 %v1798, %v1799
          %v1801 = vand.u32 %v1800, 4294901760
          %1802 = vmatmul.f32.gmra.mxu0 %v1801
          %v1803 = vpop.f32.mrf.mxu0
          %v1804 = vadd.f32 %v1287, %v1803
          %1805 = vdwg.mxu0
          %v1806 = vsub.f32 %v1282, %v1282
          %v1807 = vand.u32 %v1806, 4294901760
          %v1808 = vsub.f32 %v1806, %v1807
          %v1809 = vand.u32 %v1808, 4294901760
          %1810 = vmatpush.msra.mxu0 %v1809
          %v1811 = vsub.f32 %v1279, %v1279
          %v1812 = vand.u32 %v1811, 4294901760
          %v1813 = vsub.f32 %v1811, %v1812
          %v1814 = vand.u32 %v1813, 4294901760
          %1815 = vmatpush.msra.mxu0 %v1814
          %v1816 = vsub.f32 %v1276, %v1276
          %v1817 = vand.u32 %v1816, 4294901760
          %v1818 = vsub.f32 %v1816, %v1817
          %v1819 = vand.u32 %v1818, 4294901760
          %1820 = vmatpush.msra.mxu0 %v1819
          %v1821 = vsub.f32 %v1273, %v1273
          %v1822 = vand.u32 %v1821, 4294901760
          %v1823 = vsub.f32 %v1821, %v1822
          %v1824 = vand.u32 %v1823, 4294901760
          %1825 = vmatpush.msra.mxu0 %v1824
          %v1826 = vsub.f32 %v1270, %v1270
          %v1827 = vand.u32 %v1826, 4294901760
          %v1828 = vsub.f32 %v1826, %v1827
          %v1829 = vand.u32 %v1828, 4294901760
          %1830 = vmatpush.msra.mxu0 %v1829
          %v1831 = vsub.f32 %v1267, %v1267
          %v1832 = vand.u32 %v1831, 4294901760
          %v1833 = vsub.f32 %v1831, %v1832
          %v1834 = vand.u32 %v1833, 4294901760
          %1835 = vmatpush.msra.mxu0 %v1834
          %v1836 = vsub.f32 %v1264, %v1264
          %v1837 = vand.u32 %v1836, 4294901760
          %v1838 = vsub.f32 %v1836, %v1837
          %v1839 = vand.u32 %v1838, 4294901760
          %1840 = vmatpush.msra.mxu0 %v1839
          %v1841 = vsub.f32 %v1261, %v1261
          %v1842 = vand.u32 %v1841, 4294901760
          %v1843 = vsub.f32 %v1841, %v1842
          %v1844 = vand.u32 %v1843, 4294901760
          %1845 = vmatpush.msra.mxu0 %v1844
          %v1846 = vsub.f32 %v1258, %v1258
          %v1847 = vand.u32 %v1846, 4294901760
          %v1848 = vsub.f32 %v1846, %v1847
          %v1849 = vand.u32 %v1848, 4294901760
          %1850 = vmatpush.msra.mxu0 %v1849
          %v1851 = vsub.f32 %v1255, %v1255
          %v1852 = vand.u32 %v1851, 4294901760
          %v1853 = vsub.f32 %v1851, %v1852
          %v1854 = vand.u32 %v1853, 4294901760
          %1855 = vmatpush.msra.mxu0 %v1854
          %v1856 = vsub.f32 %v1252, %v1252
          %v1857 = vand.u32 %v1856, 4294901760
          %v1858 = vsub.f32 %v1856, %v1857
          %v1859 = vand.u32 %v1858, 4294901760
          %1860 = vmatpush.msra.mxu0 %v1859
          %v1861 = vsub.f32 %v1249, %v1249
          %v1862 = vand.u32 %v1861, 4294901760
          %v1863 = vsub.f32 %v1861, %v1862
          %v1864 = vand.u32 %v1863, 4294901760
          %1865 = vmatpush.msra.mxu0 %v1864
          %v1866 = vsub.f32 %v1246, %v1246
          %v1867 = vand.u32 %v1866, 4294901760
          %v1868 = vsub.f32 %v1866, %v1867
          %v1869 = vand.u32 %v1868, 4294901760
          %1870 = vmatpush.msra.mxu0 %v1869
          %v1871 = vsub.f32 %v1243, %v1243
          %v1872 = vand.u32 %v1871, 4294901760
          %v1873 = vsub.f32 %v1871, %v1872
          %v1874 = vand.u32 %v1873, 4294901760
          %1875 = vmatpush.msra.mxu0 %v1874
          %v1876 = vsub.f32 %v1240, %v1240
          %v1877 = vand.u32 %v1876, 4294901760
          %v1878 = vsub.f32 %v1876, %v1877
          %v1879 = vand.u32 %v1878, 4294901760
          %1880 = vmatpush.msra.mxu0 %v1879
          %v1881 = vsub.f32 %v1237, %v1237
          %v1882 = vand.u32 %v1881, 4294901760
          %v1883 = vsub.f32 %v1881, %v1882
          %v1884 = vand.u32 %v1883, 4294901760
          %1885 = vmatpush.msra.mxu0 %v1884
          %v1886 = vand.u32 %v720, 4294901760
          %1887 = vmatmul.f32.gmra.mxu0 %v1886
          %v1888 = vpop.f32.mrf.mxu0
          %v1889 = vadd.f32 %v1804, %v1888
          %1890 = vdwg.mxu0
          %v1891 = vsub.f32 %v1282, %v1282
          %1892 = vmatpush.msra.mxu0 %v1891
          %v1893 = vsub.f32 %v1279, %v1279
          %1894 = vmatpush.msra.mxu0 %v1893
          %v1895 = vsub.f32 %v1276, %v1276
          %1896 = vmatpush.msra.mxu0 %v1895
          %v1897 = vsub.f32 %v1273, %v1273
          %1898 = vmatpush.msra.mxu0 %v1897
          %v1899 = vsub.f32 %v1270, %v1270
          %1900 = vmatpush.msra.mxu0 %v1899
          %v1901 = vsub.f32 %v1267, %v1267
          %1902 = vmatpush.msra.mxu0 %v1901
          %v1903 = vsub.f32 %v1264, %v1264
          %1904 = vmatpush.msra.mxu0 %v1903
          %v1905 = vsub.f32 %v1261, %v1261
          %1906 = vmatpush.msra.mxu0 %v1905
          %v1907 = vsub.f32 %v1258, %v1258
          %1908 = vmatpush.msra.mxu0 %v1907
          %v1909 = vsub.f32 %v1255, %v1255
          %1910 = vmatpush.msra.mxu0 %v1909
          %v1911 = vsub.f32 %v1252, %v1252
          %1912 = vmatpush.msra.mxu0 %v1911
          %v1913 = vsub.f32 %v1249, %v1249
          %1914 = vmatpush.msra.mxu0 %v1913
          %v1915 = vsub.f32 %v1246, %v1246
          %1916 = vmatpush.msra.mxu0 %v1915
          %v1917 = vsub.f32 %v1243, %v1243
          %1918 = vmatpush.msra.mxu0 %v1917
          %v1919 = vsub.f32 %v1240, %v1240
          %1920 = vmatpush.msra.mxu0 %v1919
          %v1921 = vsub.f32 %v1237, %v1237
          %1922 = vmatpush.msra.mxu0 %v1921
          %v1923 = vand.u32 %v720, 4294901760
          %v1924 = vsub.f32 %v720, %v1923
          %1925 = vmatmul.f32.gmra.mxu0 %v1924
          %v1926 = vpop.f32.mrf.mxu0
          %v1927 = vadd.f32 %v1889, %v1926
          %1928 = vdwg.mxu0
          %1929 = vmatpush.msra.mxu0 %v1282
          %1930 = vmatpush.msra.mxu0 %v1279
          %1931 = vmatpush.msra.mxu0 %v1276
          %1932 = vmatpush.msra.mxu0 %v1273
          %1933 = vmatpush.msra.mxu0 %v1270
          %1934 = vmatpush.msra.mxu0 %v1267
          %1935 = vmatpush.msra.mxu0 %v1264
          %1936 = vmatpush.msra.mxu0 %v1261
          %1937 = vmatpush.msra.mxu0 %v1258
          %1938 = vmatpush.msra.mxu0 %v1255
          %1939 = vmatpush.msra.mxu0 %v1252
          %1940 = vmatpush.msra.mxu0 %v1249
          %1941 = vmatpush.msra.mxu0 %v1246
          %1942 = vmatpush.msra.mxu0 %v1243
          %1943 = vmatpush.msra.mxu0 %v1240
          %1944 = vmatpush.msra.mxu0 %v1237
          %v1945 = vand.u32 %v720, 4294901760
          %v1946 = vsub.f32 %v720, %v1945
          %v1947 = vand.u32 %v1946, 4294901760
          %1948 = vmatmul.f32.gmra.mxu0 %v1947
          %v1949 = vpop.f32.mrf.mxu0
          %v1950 = vadd.f32 %v1927, %v1949
          %1951 = vdwg.mxu0
          %v1952 = vsub.f32 %v1282, %v1282
          %v1953 = vand.u32 %v1952, 4294901760
          %1954 = vmatpush.msra.mxu0 %v1953
          %v1955 = vsub.f32 %v1279, %v1279
          %v1956 = vand.u32 %v1955, 4294901760
          %1957 = vmatpush.msra.mxu0 %v1956
          %v1958 = vsub.f32 %v1276, %v1276
          %v1959 = vand.u32 %v1958, 4294901760
          %1960 = vmatpush.msra.mxu0 %v1959
          %v1961 = vsub.f32 %v1273, %v1273
          %v1962 = vand.u32 %v1961, 4294901760
          %1963 = vmatpush.msra.mxu0 %v1962
          %v1964 = vsub.f32 %v1270, %v1270
          %v1965 = vand.u32 %v1964, 4294901760
          %1966 = vmatpush.msra.mxu0 %v1965
          %v1967 = vsub.f32 %v1267, %v1267
          %v1968 = vand.u32 %v1967, 4294901760
          %1969 = vmatpush.msra.mxu0 %v1968
          %v1970 = vsub.f32 %v1264, %v1264
          %v1971 = vand.u32 %v1970, 4294901760
          %1972 = vmatpush.msra.mxu0 %v1971
          %v1973 = vsub.f32 %v1261, %v1261
          %v1974 = vand.u32 %v1973, 4294901760
          %1975 = vmatpush.msra.mxu0 %v1974
          %v1976 = vsub.f32 %v1258, %v1258
          %v1977 = vand.u32 %v1976, 4294901760
          %1978 = vmatpush.msra.mxu0 %v1977
          %v1979 = vsub.f32 %v1255, %v1255
          %v1980 = vand.u32 %v1979, 4294901760
          %1981 = vmatpush.msra.mxu0 %v1980
          %v1982 = vsub.f32 %v1252, %v1252
          %v1983 = vand.u32 %v1982, 4294901760
          %1984 = vmatpush.msra.mxu0 %v1983
          %v1985 = vsub.f32 %v1249, %v1249
          %v1986 = vand.u32 %v1985, 4294901760
          %1987 = vmatpush.msra.mxu0 %v1986
          %v1988 = vsub.f32 %v1246, %v1246
          %v1989 = vand.u32 %v1988, 4294901760
          %1990 = vmatpush.msra.mxu0 %v1989
          %v1991 = vsub.f32 %v1243, %v1243
          %v1992 = vand.u32 %v1991, 4294901760
          %1993 = vmatpush.msra.mxu0 %v1992
          %v1994 = vsub.f32 %v1240, %v1240
          %v1995 = vand.u32 %v1994, 4294901760
          %1996 = vmatpush.msra.mxu0 %v1995
          %v1997 = vsub.f32 %v1237, %v1237
          %v1998 = vand.u32 %v1997, 4294901760
          %1999 = vmatpush.msra.mxu0 %v1998
          %v2000 = vand.u32 %v720, 4294901760
          %2001 = vmatmul.f32.gmra.mxu0 %v2000
          %v2002 = vpop.f32.mrf.mxu0
          %v2003 = vadd.f32 %v1950, %v2002
          %2004 = vdwg.mxu0
          %2005 = vmatpush.msra.mxu0 %v1282
          %2006 = vmatpush.msra.mxu0 %v1279
          %2007 = vmatpush.msra.mxu0 %v1276
          %2008 = vmatpush.msra.mxu0 %v1273
          %2009 = vmatpush.msra.mxu0 %v1270
          %2010 = vmatpush.msra.mxu0 %v1267
          %2011 = vmatpush.msra.mxu0 %v1264
          %2012 = vmatpush.msra.mxu0 %v1261
          %2013 = vmatpush.msra.mxu0 %v1258
          %2014 = vmatpush.msra.mxu0 %v1255
          %2015 = vmatpush.msra.mxu0 %v1252
          %2016 = vmatpush.msra.mxu0 %v1249
          %2017 = vmatpush.msra.mxu0 %v1246
          %2018 = vmatpush.msra.mxu0 %v1243
          %2019 = vmatpush.msra.mxu0 %v1240
          %2020 = vmatpush.msra.mxu0 %v1237
          %v2021 = vand.u32 %v720, 4294901760
          %2022 = vmatmul.f32.gmra.mxu0 %v2021
          %v2023 = vpop.f32.mrf.mxu0
          %v2024 = vadd.f32 %v2003, %v2023
          %2025 = vdwg.mxu0
          %v2026 = vld [vmem:[#allocation8] sm:$0xff]
          %v2027 = vld [vmem:[#allocation8 + $0x8] sm:$0xf]
          %v2028 = vld [vmem:[#allocation8 + $0xc] sm:$0xff]
          %v2029 = vld [vmem:[#allocation8 + $0x14] sm:$0xf]
          %v2030 = vld [vmem:[#allocation8 + $0x18] sm:$0xff]
          %v2031 = vld [vmem:[#allocation8 + $0x20] sm:$0xf]
          %v2032 = vld [vmem:[#allocation8 + $0x24] sm:$0xff]
          %v2033 = vld [vmem:[#allocation8 + $0x2c] sm:$0xf]
          %v2034 = vld [vmem:[#allocation8 + $0x30] sm:$0xff]
          %v2035 = vld [vmem:[#allocation8 + $0x38] sm:$0xf]
          %v2036 = vld [vmem:[#allocation8 + $0x3c] sm:$0xff]
          %v2037 = vld [vmem:[#allocation8 + $0x44] sm:$0xf]
          %v2038 = vld [vmem:[#allocation8 + $0x48] sm:$0xff]
          %v2039 = vld [vmem:[#allocation8 + $0x50] sm:$0xf]
          %v2040 = vld [vmem:[#allocation8 + $0x54] sm:$0xff]
          %v2041 = vld [vmem:[#allocation8 + $0x5c] sm:$0xf]
          %v2042 = vld [vmem:[#allocation8 + $0x60] sm:$0xff]
          %v2043 = vld [vmem:[#allocation8 + $0x68] sm:$0xf]
          %v2044 = vld [vmem:[#allocation8 + $0x6c] sm:$0xff]
          %v2045 = vld [vmem:[#allocation8 + $0x74] sm:$0xf]
          %v2046 = vld [vmem:[#allocation8 + $0x78] sm:$0xff]
          %v2047 = vld [vmem:[#allocation8 + $0x80] sm:$0xf]
          %v2048 = vld [vmem:[#allocation8 + $0x84] sm:$0xff]
          %v2049 = vld [vmem:[#allocation8 + $0x8c] sm:$0xf]
          %v2050 = vld [vmem:[#allocation8 + $0x90] sm:$0xff]
          %v2051 = vld [vmem:[#allocation8 + $0x98] sm:$0xf]
          %v2052 = vld [vmem:[#allocation8 + $0x9c] sm:$0xff]
          %v2053 = vld [vmem:[#allocation8 + $0xa4] sm:$0xf]
          %v2054 = vld [vmem:[#allocation8 + $0xa8] sm:$0xff]
          %v2055 = vld [vmem:[#allocation8 + $0xb0] sm:$0xf]
          %v2056 = vld [vmem:[#allocation8 + $0xb4] sm:$0xff]
          %v2057 = vld [vmem:[#allocation8 + $0xbc] sm:$0xf]
          %v2058 = vunpack.c.l.bf16 %v2026
          %v2059 = vunpack.c.h.bf16 %v2026
          %v2060 = vunpack.c.l.bf16 %v2027
          %v2061 = vunpack.c.l.bf16 %v2028
          %v2062 = vunpack.c.h.bf16 %v2028
          %v2063 = vunpack.c.l.bf16 %v2029
          %v2064 = vunpack.c.l.bf16 %v2030
          %v2065 = vunpack.c.h.bf16 %v2030
          %v2066 = vunpack.c.l.bf16 %v2031
          %v2067 = vunpack.c.l.bf16 %v2032
          %v2068 = vunpack.c.h.bf16 %v2032
          %v2069 = vunpack.c.l.bf16 %v2033
          %v2070 = vunpack.c.l.bf16 %v2034
          %v2071 = vunpack.c.h.bf16 %v2034
          %v2072 = vunpack.c.l.bf16 %v2035
          %v2073 = vunpack.c.l.bf16 %v2036
          %v2074 = vunpack.c.h.bf16 %v2036
          %v2075 = vunpack.c.l.bf16 %v2037
          %v2076 = vunpack.c.l.bf16 %v2038
          %v2077 = vunpack.c.h.bf16 %v2038
          %v2078 = vunpack.c.l.bf16 %v2039
          %v2079 = vunpack.c.l.bf16 %v2040
          %v2080 = vunpack.c.h.bf16 %v2040
          %v2081 = vunpack.c.l.bf16 %v2041
          %v2082 = vunpack.c.l.bf16 %v2042
          %v2083 = vunpack.c.h.bf16 %v2042
          %v2084 = vunpack.c.l.bf16 %v2043
          %v2085 = vunpack.c.l.bf16 %v2044
          %v2086 = vunpack.c.h.bf16 %v2044
          %v2087 = vunpack.c.l.bf16 %v2045
          %v2088 = vunpack.c.l.bf16 %v2046
          %v2089 = vunpack.c.h.bf16 %v2046
          %v2090 = vunpack.c.l.bf16 %v2047
          %v2091 = vunpack.c.l.bf16 %v2048
          %v2092 = vunpack.c.h.bf16 %v2048
          %v2093 = vunpack.c.l.bf16 %v2049
          %v2094 = vunpack.c.l.bf16 %v2050
          %v2095 = vunpack.c.h.bf16 %v2050
          %v2096 = vunpack.c.l.bf16 %v2051
          %v2097 = vunpack.c.l.bf16 %v2052
          %v2098 = vunpack.c.h.bf16 %v2052
          %v2099 = vunpack.c.l.bf16 %v2053
          %v2100 = vunpack.c.l.bf16 %v2054
          %v2101 = vunpack.c.h.bf16 %v2054
          %v2102 = vunpack.c.l.bf16 %v2055
          %v2103 = vunpack.c.l.bf16 %v2056
          %v2104 = vunpack.c.h.bf16 %v2056
          %v2105 = vunpack.c.l.bf16 %v2057
          %v2114 = vsel %vm858, %v1165, %v1159
          %v2115 = vsel %vm860, %v1171, %v2114
          %v2116 = vsel %vm862, %v1177, %v2115
          %v2117 = vsel %vm864, %v1183, %v2116
          %v2118 = vsel %vm866, %v1189, %v2117
          %v2119 = vsel %vm868, %v1195, %v2118
          %v2120 = vsel %vm870, %v1201, %v2119
          %2122 = vmatpush.msra.mxu0 %v2103
          %2123 = vmatpush.msra.mxu0 %v2100
          %2124 = vmatpush.msra.mxu0 %v2097
          %2125 = vmatpush.msra.mxu0 %v2094
          %2126 = vmatpush.msra.mxu0 %v2091
          %2127 = vmatpush.msra.mxu0 %v2088
          %2128 = vmatpush.msra.mxu0 %v2085
          %2129 = vmatpush.msra.mxu0 %v2082
          %2130 = vmatpush.msra.mxu0 %v2079
          %2131 = vmatpush.msra.mxu0 %v2076
          %2132 = vmatpush.msra.mxu0 %v2073
          %2133 = vmatpush.msra.mxu0 %v2070
          %2134 = vmatpush.msra.mxu0 %v2067
          %2135 = vmatpush.msra.mxu0 %v2064
          %2136 = vmatpush.msra.mxu0 %v2061
          %2137 = vmatpush.msra.mxu0 %v2058
          %v2138 = vand.u32 %v2120, 4294901760
          %v2139 = vsub.f32 %v2120, %v2138
          %v2140 = vand.u32 %v2139, 4294901760
          %v2141 = vsub.f32 %v2139, %v2140
          %v2142 = vand.u32 %v2141, 4294901760
          %2143 = vmatmul.f32.gmra.mxu0 %v2142
          %v2144 = vpop.f32.mrf.mxu0
          %v2145 = vadd.f32 0.0, %v2144
          %2146 = vdwg.mxu0
          %v2147 = vsub.f32 %v2103, %v2103
          %v2148 = vand.u32 %v2147, 4294901760
          %v2149 = vsub.f32 %v2147, %v2148
          %v2150 = vand.u32 %v2149, 4294901760
          %2151 = vmatpush.msra.mxu0 %v2150
          %v2152 = vsub.f32 %v2100, %v2100
          %v2153 = vand.u32 %v2152, 4294901760
          %v2154 = vsub.f32 %v2152, %v2153
          %v2155 = vand.u32 %v2154, 4294901760
          %2156 = vmatpush.msra.mxu0 %v2155
          %v2157 = vsub.f32 %v2097, %v2097
          %v2158 = vand.u32 %v2157, 4294901760
          %v2159 = vsub.f32 %v2157, %v2158
          %v2160 = vand.u32 %v2159, 4294901760
          %2161 = vmatpush.msra.mxu0 %v2160
          %v2162 = vsub.f32 %v2094, %v2094
          %v2163 = vand.u32 %v2162, 4294901760
          %v2164 = vsub.f32 %v2162, %v2163
          %v2165 = vand.u32 %v2164, 4294901760
          %2166 = vmatpush.msra.mxu0 %v2165
          %v2167 = vsub.f32 %v2091, %v2091
          %v2168 = vand.u32 %v2167, 4294901760
          %v2169 = vsub.f32 %v2167, %v2168
          %v2170 = vand.u32 %v2169, 4294901760
          %2171 = vmatpush.msra.mxu0 %v2170
          %v2172 = vsub.f32 %v2088, %v2088
          %v2173 = vand.u32 %v2172, 4294901760
          %v2174 = vsub.f32 %v2172, %v2173
          %v2175 = vand.u32 %v2174, 4294901760
          %2176 = vmatpush.msra.mxu0 %v2175
          %v2177 = vsub.f32 %v2085, %v2085
          %v2178 = vand.u32 %v2177, 4294901760
          %v2179 = vsub.f32 %v2177, %v2178
          %v2180 = vand.u32 %v2179, 4294901760
          %2181 = vmatpush.msra.mxu0 %v2180
          %v2182 = vsub.f32 %v2082, %v2082
          %v2183 = vand.u32 %v2182, 4294901760
          %v2184 = vsub.f32 %v2182, %v2183
          %v2185 = vand.u32 %v2184, 4294901760
          %2186 = vmatpush.msra.mxu0 %v2185
          %v2187 = vsub.f32 %v2079, %v2079
          %v2188 = vand.u32 %v2187, 4294901760
          %v2189 = vsub.f32 %v2187, %v2188
          %v2190 = vand.u32 %v2189, 4294901760
          %2191 = vmatpush.msra.mxu0 %v2190
          %v2192 = vsub.f32 %v2076, %v2076
          %v2193 = vand.u32 %v2192, 4294901760
          %v2194 = vsub.f32 %v2192, %v2193
          %v2195 = vand.u32 %v2194, 4294901760
          %2196 = vmatpush.msra.mxu0 %v2195
          %v2197 = vsub.f32 %v2073, %v2073
          %v2198 = vand.u32 %v2197, 4294901760
          %v2199 = vsub.f32 %v2197, %v2198
          %v2200 = vand.u32 %v2199, 4294901760
          %2201 = vmatpush.msra.mxu0 %v2200
          %v2202 = vsub.f32 %v2070, %v2070
          %v2203 = vand.u32 %v2202, 4294901760
          %v2204 = vsub.f32 %v2202, %v2203
          %v2205 = vand.u32 %v2204, 4294901760
          %2206 = vmatpush.msra.mxu0 %v2205
          %v2207 = vsub.f32 %v2067, %v2067
          %v2208 = vand.u32 %v2207, 4294901760
          %v2209 = vsub.f32 %v2207, %v2208
          %v2210 = vand.u32 %v2209, 4294901760
          %2211 = vmatpush.msra.mxu0 %v2210
          %v2212 = vsub.f32 %v2064, %v2064
          %v2213 = vand.u32 %v2212, 4294901760
          %v2214 = vsub.f32 %v2212, %v2213
          %v2215 = vand.u32 %v2214, 4294901760
          %2216 = vmatpush.msra.mxu0 %v2215
          %v2217 = vsub.f32 %v2061, %v2061
          %v2218 = vand.u32 %v2217, 4294901760
          %v2219 = vsub.f32 %v2217, %v2218
          %v2220 = vand.u32 %v2219, 4294901760
          %2221 = vmatpush.msra.mxu0 %v2220
          %v2222 = vsub.f32 %v2058, %v2058
          %v2223 = vand.u32 %v2222, 4294901760
          %v2224 = vsub.f32 %v2222, %v2223
          %v2225 = vand.u32 %v2224, 4294901760
          %2226 = vmatpush.msra.mxu0 %v2225
          %v2227 = vand.u32 %v2120, 4294901760
          %2228 = vmatmul.f32.gmra.mxu0 %v2227
          %v2229 = vpop.f32.mrf.mxu0
          %v2230 = vadd.f32 %v2145, %v2229
          %2231 = vdwg.mxu0
          %v2232 = vsub.f32 %v2103, %v2103
          %2233 = vmatpush.msra.mxu0 %v2232
          %v2234 = vsub.f32 %v2100, %v2100
          %2235 = vmatpush.msra.mxu0 %v2234
          %v2236 = vsub.f32 %v2097, %v2097
          %2237 = vmatpush.msra.mxu0 %v2236
          %v2238 = vsub.f32 %v2094, %v2094
          %2239 = vmatpush.msra.mxu0 %v2238
          %v2240 = vsub.f32 %v2091, %v2091
          %2241 = vmatpush.msra.mxu0 %v2240
          %v2242 = vsub.f32 %v2088, %v2088
          %2243 = vmatpush.msra.mxu0 %v2242
          %v2244 = vsub.f32 %v2085, %v2085
          %2245 = vmatpush.msra.mxu0 %v2244
          %v2246 = vsub.f32 %v2082, %v2082
          %2247 = vmatpush.msra.mxu0 %v2246
          %v2248 = vsub.f32 %v2079, %v2079
          %2249 = vmatpush.msra.mxu0 %v2248
          %v2250 = vsub.f32 %v2076, %v2076
          %2251 = vmatpush.msra.mxu0 %v2250
          %v2252 = vsub.f32 %v2073, %v2073
          %2253 = vmatpush.msra.mxu0 %v2252
          %v2254 = vsub.f32 %v2070, %v2070
          %2255 = vmatpush.msra.mxu0 %v2254
          %v2256 = vsub.f32 %v2067, %v2067
          %2257 = vmatpush.msra.mxu0 %v2256
          %v2258 = vsub.f32 %v2064, %v2064
          %2259 = vmatpush.msra.mxu0 %v2258
          %v2260 = vsub.f32 %v2061, %v2061
          %2261 = vmatpush.msra.mxu0 %v2260
          %v2262 = vsub.f32 %v2058, %v2058
          %2263 = vmatpush.msra.mxu0 %v2262
          %v2264 = vand.u32 %v2120, 4294901760
          %v2265 = vsub.f32 %v2120, %v2264
          %2266 = vmatmul.f32.gmra.mxu0 %v2265
          %v2267 = vpop.f32.mrf.mxu0
          %v2268 = vadd.f32 %v2230, %v2267
          %2269 = vdwg.mxu0
          %2270 = vmatpush.msra.mxu0 %v2103
          %2271 = vmatpush.msra.mxu0 %v2100
          %2272 = vmatpush.msra.mxu0 %v2097
          %2273 = vmatpush.msra.mxu0 %v2094
          %2274 = vmatpush.msra.mxu0 %v2091
          %2275 = vmatpush.msra.mxu0 %v2088
          %2276 = vmatpush.msra.mxu0 %v2085
          %2277 = vmatpush.msra.mxu0 %v2082
          %2278 = vmatpush.msra.mxu0 %v2079
          %2279 = vmatpush.msra.mxu0 %v2076
          %2280 = vmatpush.msra.mxu0 %v2073
          %2281 = vmatpush.msra.mxu0 %v2070
          %2282 = vmatpush.msra.mxu0 %v2067
          %2283 = vmatpush.msra.mxu0 %v2064
          %2284 = vmatpush.msra.mxu0 %v2061
          %2285 = vmatpush.msra.mxu0 %v2058
          %v2286 = vand.u32 %v2120, 4294901760
          %v2287 = vsub.f32 %v2120, %v2286
          %v2288 = vand.u32 %v2287, 4294901760
          %2289 = vmatmul.f32.gmra.mxu0 %v2288
          %v2290 = vpop.f32.mrf.mxu0
          %v2291 = vadd.f32 %v2268, %v2290
          %2292 = vdwg.mxu0
          %v2293 = vsub.f32 %v2103, %v2103
          %v2294 = vand.u32 %v2293, 4294901760
          %2295 = vmatpush.msra.mxu0 %v2294
          %v2296 = vsub.f32 %v2100, %v2100
          %v2297 = vand.u32 %v2296, 4294901760
          %2298 = vmatpush.msra.mxu0 %v2297
          %v2299 = vsub.f32 %v2097, %v2097
          %v2300 = vand.u32 %v2299, 4294901760
          %2301 = vmatpush.msra.mxu0 %v2300
          %v2302 = vsub.f32 %v2094, %v2094
          %v2303 = vand.u32 %v2302, 4294901760
          %2304 = vmatpush.msra.mxu0 %v2303
          %v2305 = vsub.f32 %v2091, %v2091
          %v2306 = vand.u32 %v2305, 4294901760
          %2307 = vmatpush.msra.mxu0 %v2306
          %v2308 = vsub.f32 %v2088, %v2088
          %v2309 = vand.u32 %v2308, 4294901760
          %2310 = vmatpush.msra.mxu0 %v2309
          %v2311 = vsub.f32 %v2085, %v2085
          %v2312 = vand.u32 %v2311, 4294901760
          %2313 = vmatpush.msra.mxu0 %v2312
          %v2314 = vsub.f32 %v2082, %v2082
          %v2315 = vand.u32 %v2314, 4294901760
          %2316 = vmatpush.msra.mxu0 %v2315
          %v2317 = vsub.f32 %v2079, %v2079
          %v2318 = vand.u32 %v2317, 4294901760
          %2319 = vmatpush.msra.mxu0 %v2318
          %v2320 = vsub.f32 %v2076, %v2076
          %v2321 = vand.u32 %v2320, 4294901760
          %2322 = vmatpush.msra.mxu0 %v2321
          %v2323 = vsub.f32 %v2073, %v2073
          %v2324 = vand.u32 %v2323, 4294901760
          %2325 = vmatpush.msra.mxu0 %v2324
          %v2326 = vsub.f32 %v2070, %v2070
          %v2327 = vand.u32 %v2326, 4294901760
          %2328 = vmatpush.msra.mxu0 %v2327
          %v2329 = vsub.f32 %v2067, %v2067
          %v2330 = vand.u32 %v2329, 4294901760
          %2331 = vmatpush.msra.mxu0 %v2330
          %v2332 = vsub.f32 %v2064, %v2064
          %v2333 = vand.u32 %v2332, 4294901760
          %2334 = vmatpush.msra.mxu0 %v2333
          %v2335 = vsub.f32 %v2061, %v2061
          %v2336 = vand.u32 %v2335, 4294901760
          %2337 = vmatpush.msra.mxu0 %v2336
          %v2338 = vsub.f32 %v2058, %v2058
          %v2339 = vand.u32 %v2338, 4294901760
          %2340 = vmatpush.msra.mxu0 %v2339
          %v2341 = vand.u32 %v2120, 4294901760
          %2342 = vmatmul.f32.gmra.mxu0 %v2341
          %v2343 = vpop.f32.mrf.mxu0
          %v2344 = vadd.f32 %v2291, %v2343
          %2345 = vdwg.mxu0
          %2346 = vmatpush.msra.mxu0 %v2103
          %2347 = vmatpush.msra.mxu0 %v2100
          %2348 = vmatpush.msra.mxu0 %v2097
          %2349 = vmatpush.msra.mxu0 %v2094
          %2350 = vmatpush.msra.mxu0 %v2091
          %2351 = vmatpush.msra.mxu0 %v2088
          %2352 = vmatpush.msra.mxu0 %v2085
          %2353 = vmatpush.msra.mxu0 %v2082
          %2354 = vmatpush.msra.mxu0 %v2079
          %2355 = vmatpush.msra.mxu0 %v2076
          %2356 = vmatpush.msra.mxu0 %v2073
          %2357 = vmatpush.msra.mxu0 %v2070
          %2358 = vmatpush.msra.mxu0 %v2067
          %2359 = vmatpush.msra.mxu0 %v2064
          %2360 = vmatpush.msra.mxu0 %v2061
          %2361 = vmatpush.msra.mxu0 %v2058
          %v2362 = vand.u32 %v2120, 4294901760
          %2363 = vmatmul.f32.gmra.mxu0 %v2362
          %v2364 = vpop.f32.mrf.mxu0
          %v2365 = vadd.f32 %v2344, %v2364
          %2366 = vdwg.mxu0
          %2367 = vmatpush.msra.mxu0 %v2104
          %2368 = vmatpush.msra.mxu0 %v2101
          %2369 = vmatpush.msra.mxu0 %v2098
          %2370 = vmatpush.msra.mxu0 %v2095
          %2371 = vmatpush.msra.mxu0 %v2092
          %2372 = vmatpush.msra.mxu0 %v2089
          %2373 = vmatpush.msra.mxu0 %v2086
          %2374 = vmatpush.msra.mxu0 %v2083
          %2375 = vmatpush.msra.mxu0 %v2080
          %2376 = vmatpush.msra.mxu0 %v2077
          %2377 = vmatpush.msra.mxu0 %v2074
          %2378 = vmatpush.msra.mxu0 %v2071
          %2379 = vmatpush.msra.mxu0 %v2068
          %2380 = vmatpush.msra.mxu0 %v2065
          %2381 = vmatpush.msra.mxu0 %v2062
          %2382 = vmatpush.msra.mxu0 %v2059
          %v2383 = vand.u32 %v2120, 4294901760
          %v2384 = vsub.f32 %v2120, %v2383
          %v2385 = vand.u32 %v2384, 4294901760
          %v2386 = vsub.f32 %v2384, %v2385
          %v2387 = vand.u32 %v2386, 4294901760
          %2388 = vmatmul.f32.gmra.mxu0 %v2387
          %v2389 = vpop.f32.mrf.mxu0
          %v2390 = vadd.f32 0.0, %v2389
          %2391 = vdwg.mxu0
          %v2392 = vsub.f32 %v2104, %v2104
          %v2393 = vand.u32 %v2392, 4294901760
          %v2394 = vsub.f32 %v2392, %v2393
          %v2395 = vand.u32 %v2394, 4294901760
          %2396 = vmatpush.msra.mxu0 %v2395
          %v2397 = vsub.f32 %v2101, %v2101
          %v2398 = vand.u32 %v2397, 4294901760
          %v2399 = vsub.f32 %v2397, %v2398
          %v2400 = vand.u32 %v2399, 4294901760
          %2401 = vmatpush.msra.mxu0 %v2400
          %v2402 = vsub.f32 %v2098, %v2098
          %v2403 = vand.u32 %v2402, 4294901760
          %v2404 = vsub.f32 %v2402, %v2403
          %v2405 = vand.u32 %v2404, 4294901760
          %2406 = vmatpush.msra.mxu0 %v2405
          %v2407 = vsub.f32 %v2095, %v2095
          %v2408 = vand.u32 %v2407, 4294901760
          %v2409 = vsub.f32 %v2407, %v2408
          %v2410 = vand.u32 %v2409, 4294901760
          %2411 = vmatpush.msra.mxu0 %v2410
          %v2412 = vsub.f32 %v2092, %v2092
          %v2413 = vand.u32 %v2412, 4294901760
          %v2414 = vsub.f32 %v2412, %v2413
          %v2415 = vand.u32 %v2414, 4294901760
          %2416 = vmatpush.msra.mxu0 %v2415
          %v2417 = vsub.f32 %v2089, %v2089
          %v2418 = vand.u32 %v2417, 4294901760
          %v2419 = vsub.f32 %v2417, %v2418
          %v2420 = vand.u32 %v2419, 4294901760
          %2421 = vmatpush.msra.mxu0 %v2420
          %v2422 = vsub.f32 %v2086, %v2086
          %v2423 = vand.u32 %v2422, 4294901760
          %v2424 = vsub.f32 %v2422, %v2423
          %v2425 = vand.u32 %v2424, 4294901760
          %2426 = vmatpush.msra.mxu0 %v2425
          %v2427 = vsub.f32 %v2083, %v2083
          %v2428 = vand.u32 %v2427, 4294901760
          %v2429 = vsub.f32 %v2427, %v2428
          %v2430 = vand.u32 %v2429, 4294901760
          %2431 = vmatpush.msra.mxu0 %v2430
          %v2432 = vsub.f32 %v2080, %v2080
          %v2433 = vand.u32 %v2432, 4294901760
          %v2434 = vsub.f32 %v2432, %v2433
          %v2435 = vand.u32 %v2434, 4294901760
          %2436 = vmatpush.msra.mxu0 %v2435
          %v2437 = vsub.f32 %v2077, %v2077
          %v2438 = vand.u32 %v2437, 4294901760
          %v2439 = vsub.f32 %v2437, %v2438
          %v2440 = vand.u32 %v2439, 4294901760
          %2441 = vmatpush.msra.mxu0 %v2440
          %v2442 = vsub.f32 %v2074, %v2074
          %v2443 = vand.u32 %v2442, 4294901760
          %v2444 = vsub.f32 %v2442, %v2443
          %v2445 = vand.u32 %v2444, 4294901760
          %2446 = vmatpush.msra.mxu0 %v2445
          %v2447 = vsub.f32 %v2071, %v2071
          %v2448 = vand.u32 %v2447, 4294901760
          %v2449 = vsub.f32 %v2447, %v2448
          %v2450 = vand.u32 %v2449, 4294901760
          %2451 = vmatpush.msra.mxu0 %v2450
          %v2452 = vsub.f32 %v2068, %v2068
          %v2453 = vand.u32 %v2452, 4294901760
          %v2454 = vsub.f32 %v2452, %v2453
          %v2455 = vand.u32 %v2454, 4294901760
          %2456 = vmatpush.msra.mxu0 %v2455
          %v2457 = vsub.f32 %v2065, %v2065
          %v2458 = vand.u32 %v2457, 4294901760
          %v2459 = vsub.f32 %v2457, %v2458
          %v2460 = vand.u32 %v2459, 4294901760
          %2461 = vmatpush.msra.mxu0 %v2460
          %v2462 = vsub.f32 %v2062, %v2062
          %v2463 = vand.u32 %v2462, 4294901760
          %v2464 = vsub.f32 %v2462, %v2463
          %v2465 = vand.u32 %v2464, 4294901760
          %2466 = vmatpush.msra.mxu0 %v2465
          %v2467 = vsub.f32 %v2059, %v2059
          %v2468 = vand.u32 %v2467, 4294901760
          %v2469 = vsub.f32 %v2467, %v2468
          %v2470 = vand.u32 %v2469, 4294901760
          %2471 = vmatpush.msra.mxu0 %v2470
          %v2472 = vand.u32 %v2120, 4294901760
          %2473 = vmatmul.f32.gmra.mxu0 %v2472
          %v2474 = vpop.f32.mrf.mxu0
          %v2475 = vadd.f32 %v2390, %v2474
          %2476 = vdwg.mxu0
          %v2477 = vsub.f32 %v2104, %v2104
          %2478 = vmatpush.msra.mxu0 %v2477
          %v2479 = vsub.f32 %v2101, %v2101
          %2480 = vmatpush.msra.mxu0 %v2479
          %v2481 = vsub.f32 %v2098, %v2098
          %2482 = vmatpush.msra.mxu0 %v2481
          %v2483 = vsub.f32 %v2095, %v2095
          %2484 = vmatpush.msra.mxu0 %v2483
          %v2485 = vsub.f32 %v2092, %v2092
          %2486 = vmatpush.msra.mxu0 %v2485
          %v2487 = vsub.f32 %v2089, %v2089
          %2488 = vmatpush.msra.mxu0 %v2487
          %v2489 = vsub.f32 %v2086, %v2086
          %2490 = vmatpush.msra.mxu0 %v2489
          %v2491 = vsub.f32 %v2083, %v2083
          %2492 = vmatpush.msra.mxu0 %v2491
          %v2493 = vsub.f32 %v2080, %v2080
          %2494 = vmatpush.msra.mxu0 %v2493
          %v2495 = vsub.f32 %v2077, %v2077
          %2496 = vmatpush.msra.mxu0 %v2495
          %v2497 = vsub.f32 %v2074, %v2074
          %2498 = vmatpush.msra.mxu0 %v2497
          %v2499 = vsub.f32 %v2071, %v2071
          %2500 = vmatpush.msra.mxu0 %v2499
          %v2501 = vsub.f32 %v2068, %v2068
          %2502 = vmatpush.msra.mxu0 %v2501
          %v2503 = vsub.f32 %v2065, %v2065
          %2504 = vmatpush.msra.mxu0 %v2503
          %v2505 = vsub.f32 %v2062, %v2062
          %2506 = vmatpush.msra.mxu0 %v2505
          %v2507 = vsub.f32 %v2059, %v2059
          %2508 = vmatpush.msra.mxu0 %v2507
          %v2509 = vand.u32 %v2120, 4294901760
          %v2510 = vsub.f32 %v2120, %v2509
          %2511 = vmatmul.f32.gmra.mxu0 %v2510
          %v2512 = vpop.f32.mrf.mxu0
          %v2513 = vadd.f32 %v2475, %v2512
          %2514 = vdwg.mxu0
          %2515 = vmatpush.msra.mxu0 %v2104
          %2516 = vmatpush.msra.mxu0 %v2101
          %2517 = vmatpush.msra.mxu0 %v2098
          %2518 = vmatpush.msra.mxu0 %v2095
          %2519 = vmatpush.msra.mxu0 %v2092
          %2520 = vmatpush.msra.mxu0 %v2089
          %2521 = vmatpush.msra.mxu0 %v2086
          %2522 = vmatpush.msra.mxu0 %v2083
          %2523 = vmatpush.msra.mxu0 %v2080
          %2524 = vmatpush.msra.mxu0 %v2077
          %2525 = vmatpush.msra.mxu0 %v2074
          %2526 = vmatpush.msra.mxu0 %v2071
          %2527 = vmatpush.msra.mxu0 %v2068
          %2528 = vmatpush.msra.mxu0 %v2065
          %2529 = vmatpush.msra.mxu0 %v2062
          %2530 = vmatpush.msra.mxu0 %v2059
          %v2531 = vand.u32 %v2120, 4294901760
          %v2532 = vsub.f32 %v2120, %v2531
          %v2533 = vand.u32 %v2532, 4294901760
          %2534 = vmatmul.f32.gmra.mxu0 %v2533
          %v2535 = vpop.f32.mrf.mxu0
          %v2536 = vadd.f32 %v2513, %v2535
          %2537 = vdwg.mxu0
          %v2538 = vsub.f32 %v2104, %v2104
          %v2539 = vand.u32 %v2538, 4294901760
          %2540 = vmatpush.msra.mxu0 %v2539
          %v2541 = vsub.f32 %v2101, %v2101
          %v2542 = vand.u32 %v2541, 4294901760
          %2543 = vmatpush.msra.mxu0 %v2542
          %v2544 = vsub.f32 %v2098, %v2098
          %v2545 = vand.u32 %v2544, 4294901760
          %2546 = vmatpush.msra.mxu0 %v2545
          %v2547 = vsub.f32 %v2095, %v2095
          %v2548 = vand.u32 %v2547, 4294901760
          %2549 = vmatpush.msra.mxu0 %v2548
          %v2550 = vsub.f32 %v2092, %v2092
          %v2551 = vand.u32 %v2550, 4294901760
          %2552 = vmatpush.msra.mxu0 %v2551
          %v2553 = vsub.f32 %v2089, %v2089
          %v2554 = vand.u32 %v2553, 4294901760
          %2555 = vmatpush.msra.mxu0 %v2554
          %v2556 = vsub.f32 %v2086, %v2086
          %v2557 = vand.u32 %v2556, 4294901760
          %2558 = vmatpush.msra.mxu0 %v2557
          %v2559 = vsub.f32 %v2083, %v2083
          %v2560 = vand.u32 %v2559, 4294901760
          %2561 = vmatpush.msra.mxu0 %v2560
          %v2562 = vsub.f32 %v2080, %v2080
          %v2563 = vand.u32 %v2562, 4294901760
          %2564 = vmatpush.msra.mxu0 %v2563
          %v2565 = vsub.f32 %v2077, %v2077
          %v2566 = vand.u32 %v2565, 4294901760
          %2567 = vmatpush.msra.mxu0 %v2566
          %v2568 = vsub.f32 %v2074, %v2074
          %v2569 = vand.u32 %v2568, 4294901760
          %2570 = vmatpush.msra.mxu0 %v2569
          %v2571 = vsub.f32 %v2071, %v2071
          %v2572 = vand.u32 %v2571, 4294901760
          %2573 = vmatpush.msra.mxu0 %v2572
          %v2574 = vsub.f32 %v2068, %v2068
          %v2575 = vand.u32 %v2574, 4294901760
          %2576 = vmatpush.msra.mxu0 %v2575
          %v2577 = vsub.f32 %v2065, %v2065
          %v2578 = vand.u32 %v2577, 4294901760
          %2579 = vmatpush.msra.mxu0 %v2578
          %v2580 = vsub.f32 %v2062, %v2062
          %v2581 = vand.u32 %v2580, 4294901760
          %2582 = vmatpush.msra.mxu0 %v2581
          %v2583 = vsub.f32 %v2059, %v2059
          %v2584 = vand.u32 %v2583, 4294901760
          %2585 = vmatpush.msra.mxu0 %v2584
          %v2586 = vand.u32 %v2120, 4294901760
          %2587 = vmatmul.f32.gmra.mxu0 %v2586
          %v2588 = vpop.f32.mrf.mxu0
          %v2589 = vadd.f32 %v2536, %v2588
          %2590 = vdwg.mxu0
          %2591 = vmatpush.msra.mxu0 %v2104
          %2592 = vmatpush.msra.mxu0 %v2101
          %2593 = vmatpush.msra.mxu0 %v2098
          %2594 = vmatpush.msra.mxu0 %v2095
          %2595 = vmatpush.msra.mxu0 %v2092
          %2596 = vmatpush.msra.mxu0 %v2089
          %2597 = vmatpush.msra.mxu0 %v2086
          %2598 = vmatpush.msra.mxu0 %v2083
          %2599 = vmatpush.msra.mxu0 %v2080
          %2600 = vmatpush.msra.mxu0 %v2077
          %2601 = vmatpush.msra.mxu0 %v2074
          %2602 = vmatpush.msra.mxu0 %v2071
          %2603 = vmatpush.msra.mxu0 %v2068
          %2604 = vmatpush.msra.mxu0 %v2065
          %2605 = vmatpush.msra.mxu0 %v2062
          %2606 = vmatpush.msra.mxu0 %v2059
          %v2607 = vand.u32 %v2120, 4294901760
          %2608 = vmatmul.f32.gmra.mxu0 %v2607
          %v2609 = vpop.f32.mrf.mxu0
          %v2610 = vadd.f32 %v2589, %v2609
          %2611 = vdwg.mxu0
          %2612 = vmatpush.msra.mxu0 %v2105
          %2613 = vmatpush.msra.mxu0 %v2102
          %2614 = vmatpush.msra.mxu0 %v2099
          %2615 = vmatpush.msra.mxu0 %v2096
          %2616 = vmatpush.msra.mxu0 %v2093
          %2617 = vmatpush.msra.mxu0 %v2090
          %2618 = vmatpush.msra.mxu0 %v2087
          %2619 = vmatpush.msra.mxu0 %v2084
          %2620 = vmatpush.msra.mxu0 %v2081
          %2621 = vmatpush.msra.mxu0 %v2078
          %2622 = vmatpush.msra.mxu0 %v2075
          %2623 = vmatpush.msra.mxu0 %v2072
          %2624 = vmatpush.msra.mxu0 %v2069
          %2625 = vmatpush.msra.mxu0 %v2066
          %2626 = vmatpush.msra.mxu0 %v2063
          %2627 = vmatpush.msra.mxu0 %v2060
          %v2628 = vand.u32 %v2120, 4294901760
          %v2629 = vsub.f32 %v2120, %v2628
          %v2630 = vand.u32 %v2629, 4294901760
          %v2631 = vsub.f32 %v2629, %v2630
          %v2632 = vand.u32 %v2631, 4294901760
          %2633 = vmatmul.f32.gmra.mxu0 %v2632
          %v2634 = vpop.f32.mrf.mxu0
          %v2635 = vadd.f32 0.0, %v2634
          %2636 = vdwg.mxu0
          %v2637 = vsub.f32 %v2105, %v2105
          %v2638 = vand.u32 %v2637, 4294901760
          %v2639 = vsub.f32 %v2637, %v2638
          %v2640 = vand.u32 %v2639, 4294901760
          %2641 = vmatpush.msra.mxu0 %v2640
          %v2642 = vsub.f32 %v2102, %v2102
          %v2643 = vand.u32 %v2642, 4294901760
          %v2644 = vsub.f32 %v2642, %v2643
          %v2645 = vand.u32 %v2644, 4294901760
          %2646 = vmatpush.msra.mxu0 %v2645
          %v2647 = vsub.f32 %v2099, %v2099
          %v2648 = vand.u32 %v2647, 4294901760
          %v2649 = vsub.f32 %v2647, %v2648
          %v2650 = vand.u32 %v2649, 4294901760
          %2651 = vmatpush.msra.mxu0 %v2650
          %v2652 = vsub.f32 %v2096, %v2096
          %v2653 = vand.u32 %v2652, 4294901760
          %v2654 = vsub.f32 %v2652, %v2653
          %v2655 = vand.u32 %v2654, 4294901760
          %2656 = vmatpush.msra.mxu0 %v2655
          %v2657 = vsub.f32 %v2093, %v2093
          %v2658 = vand.u32 %v2657, 4294901760
          %v2659 = vsub.f32 %v2657, %v2658
          %v2660 = vand.u32 %v2659, 4294901760
          %2661 = vmatpush.msra.mxu0 %v2660
          %v2662 = vsub.f32 %v2090, %v2090
          %v2663 = vand.u32 %v2662, 4294901760
          %v2664 = vsub.f32 %v2662, %v2663
          %v2665 = vand.u32 %v2664, 4294901760
          %2666 = vmatpush.msra.mxu0 %v2665
          %v2667 = vsub.f32 %v2087, %v2087
          %v2668 = vand.u32 %v2667, 4294901760
          %v2669 = vsub.f32 %v2667, %v2668
          %v2670 = vand.u32 %v2669, 4294901760
          %2671 = vmatpush.msra.mxu0 %v2670
          %v2672 = vsub.f32 %v2084, %v2084
          %v2673 = vand.u32 %v2672, 4294901760
          %v2674 = vsub.f32 %v2672, %v2673
          %v2675 = vand.u32 %v2674, 4294901760
          %2676 = vmatpush.msra.mxu0 %v2675
          %v2677 = vsub.f32 %v2081, %v2081
          %v2678 = vand.u32 %v2677, 4294901760
          %v2679 = vsub.f32 %v2677, %v2678
          %v2680 = vand.u32 %v2679, 4294901760
          %2681 = vmatpush.msra.mxu0 %v2680
          %v2682 = vsub.f32 %v2078, %v2078
          %v2683 = vand.u32 %v2682, 4294901760
          %v2684 = vsub.f32 %v2682, %v2683
          %v2685 = vand.u32 %v2684, 4294901760
          %2686 = vmatpush.msra.mxu0 %v2685
          %v2687 = vsub.f32 %v2075, %v2075
          %v2688 = vand.u32 %v2687, 4294901760
          %v2689 = vsub.f32 %v2687, %v2688
          %v2690 = vand.u32 %v2689, 4294901760
          %2691 = vmatpush.msra.mxu0 %v2690
          %v2692 = vsub.f32 %v2072, %v2072
          %v2693 = vand.u32 %v2692, 4294901760
          %v2694 = vsub.f32 %v2692, %v2693
          %v2695 = vand.u32 %v2694, 4294901760
          %2696 = vmatpush.msra.mxu0 %v2695
          %v2697 = vsub.f32 %v2069, %v2069
          %v2698 = vand.u32 %v2697, 4294901760
          %v2699 = vsub.f32 %v2697, %v2698
          %v2700 = vand.u32 %v2699, 4294901760
          %2701 = vmatpush.msra.mxu0 %v2700
          %v2702 = vsub.f32 %v2066, %v2066
          %v2703 = vand.u32 %v2702, 4294901760
          %v2704 = vsub.f32 %v2702, %v2703
          %v2705 = vand.u32 %v2704, 4294901760
          %2706 = vmatpush.msra.mxu0 %v2705
          %v2707 = vsub.f32 %v2063, %v2063
          %v2708 = vand.u32 %v2707, 4294901760
          %v2709 = vsub.f32 %v2707, %v2708
          %v2710 = vand.u32 %v2709, 4294901760
          %2711 = vmatpush.msra.mxu0 %v2710
          %v2712 = vsub.f32 %v2060, %v2060
          %v2713 = vand.u32 %v2712, 4294901760
          %v2714 = vsub.f32 %v2712, %v2713
          %v2715 = vand.u32 %v2714, 4294901760
          %2716 = vmatpush.msra.mxu0 %v2715
          %v2717 = vand.u32 %v2120, 4294901760
          %2718 = vmatmul.f32.gmra.mxu0 %v2717
          %v2719 = vpop.f32.mrf.mxu0
          %v2720 = vadd.f32 %v2635, %v2719
          %2721 = vdwg.mxu0
          %v2722 = vsub.f32 %v2105, %v2105
          %2723 = vmatpush.msra.mxu0 %v2722
          %v2724 = vsub.f32 %v2102, %v2102
          %2725 = vmatpush.msra.mxu0 %v2724
          %v2726 = vsub.f32 %v2099, %v2099
          %2727 = vmatpush.msra.mxu0 %v2726
          %v2728 = vsub.f32 %v2096, %v2096
          %2729 = vmatpush.msra.mxu0 %v2728
          %v2730 = vsub.f32 %v2093, %v2093
          %2731 = vmatpush.msra.mxu0 %v2730
          %v2732 = vsub.f32 %v2090, %v2090
          %2733 = vmatpush.msra.mxu0 %v2732
          %v2734 = vsub.f32 %v2087, %v2087
          %2735 = vmatpush.msra.mxu0 %v2734
          %v2736 = vsub.f32 %v2084, %v2084
          %2737 = vmatpush.msra.mxu0 %v2736
          %v2738 = vsub.f32 %v2081, %v2081
          %2739 = vmatpush.msra.mxu0 %v2738
          %v2740 = vsub.f32 %v2078, %v2078
          %2741 = vmatpush.msra.mxu0 %v2740
          %v2742 = vsub.f32 %v2075, %v2075
          %2743 = vmatpush.msra.mxu0 %v2742
          %v2744 = vsub.f32 %v2072, %v2072
          %2745 = vmatpush.msra.mxu0 %v2744
          %v2746 = vsub.f32 %v2069, %v2069
          %2747 = vmatpush.msra.mxu0 %v2746
          %v2748 = vsub.f32 %v2066, %v2066
          %2749 = vmatpush.msra.mxu0 %v2748
          %v2750 = vsub.f32 %v2063, %v2063
          %2751 = vmatpush.msra.mxu0 %v2750
          %v2752 = vsub.f32 %v2060, %v2060
          %2753 = vmatpush.msra.mxu0 %v2752
          %v2754 = vand.u32 %v2120, 4294901760
          %v2755 = vsub.f32 %v2120, %v2754
          %2756 = vmatmul.f32.gmra.mxu0 %v2755
          %v2757 = vpop.f32.mrf.mxu0
          %v2758 = vadd.f32 %v2720, %v2757
          %2759 = vdwg.mxu0
          %2760 = vmatpush.msra.mxu0 %v2105
          %2761 = vmatpush.msra.mxu0 %v2102
          %2762 = vmatpush.msra.mxu0 %v2099
          %2763 = vmatpush.msra.mxu0 %v2096
          %2764 = vmatpush.msra.mxu0 %v2093
          %2765 = vmatpush.msra.mxu0 %v2090
          %2766 = vmatpush.msra.mxu0 %v2087
          %2767 = vmatpush.msra.mxu0 %v2084
          %2768 = vmatpush.msra.mxu0 %v2081
          %2769 = vmatpush.msra.mxu0 %v2078
          %2770 = vmatpush.msra.mxu0 %v2075
          %2771 = vmatpush.msra.mxu0 %v2072
          %2772 = vmatpush.msra.mxu0 %v2069
          %2773 = vmatpush.msra.mxu0 %v2066
          %2774 = vmatpush.msra.mxu0 %v2063
          %2775 = vmatpush.msra.mxu0 %v2060
          %v2776 = vand.u32 %v2120, 4294901760
          %v2777 = vsub.f32 %v2120, %v2776
          %v2778 = vand.u32 %v2777, 4294901760
          %2779 = vmatmul.f32.gmra.mxu0 %v2778
          %v2780 = vpop.f32.mrf.mxu0
          %v2781 = vadd.f32 %v2758, %v2780
          %2782 = vdwg.mxu0
          %v2783 = vsub.f32 %v2105, %v2105
          %v2784 = vand.u32 %v2783, 4294901760
          %2785 = vmatpush.msra.mxu0 %v2784
          %v2786 = vsub.f32 %v2102, %v2102
          %v2787 = vand.u32 %v2786, 4294901760
          %2788 = vmatpush.msra.mxu0 %v2787
          %v2789 = vsub.f32 %v2099, %v2099
          %v2790 = vand.u32 %v2789, 4294901760
          %2791 = vmatpush.msra.mxu0 %v2790
          %v2792 = vsub.f32 %v2096, %v2096
          %v2793 = vand.u32 %v2792, 4294901760
          %2794 = vmatpush.msra.mxu0 %v2793
          %v2795 = vsub.f32 %v2093, %v2093
          %v2796 = vand.u32 %v2795, 4294901760
          %2797 = vmatpush.msra.mxu0 %v2796
          %v2798 = vsub.f32 %v2090, %v2090
          %v2799 = vand.u32 %v2798, 4294901760
          %2800 = vmatpush.msra.mxu0 %v2799
          %v2801 = vsub.f32 %v2087, %v2087
          %v2802 = vand.u32 %v2801, 4294901760
          %2803 = vmatpush.msra.mxu0 %v2802
          %v2804 = vsub.f32 %v2084, %v2084
          %v2805 = vand.u32 %v2804, 4294901760
          %2806 = vmatpush.msra.mxu0 %v2805
          %v2807 = vsub.f32 %v2081, %v2081
          %v2808 = vand.u32 %v2807, 4294901760
          %2809 = vmatpush.msra.mxu0 %v2808
          %v2810 = vsub.f32 %v2078, %v2078
          %v2811 = vand.u32 %v2810, 4294901760
          %2812 = vmatpush.msra.mxu0 %v2811
          %v2813 = vsub.f32 %v2075, %v2075
          %v2814 = vand.u32 %v2813, 4294901760
          %2815 = vmatpush.msra.mxu0 %v2814
          %v2816 = vsub.f32 %v2072, %v2072
          %v2817 = vand.u32 %v2816, 4294901760
          %2818 = vmatpush.msra.mxu0 %v2817
          %v2819 = vsub.f32 %v2069, %v2069
          %v2820 = vand.u32 %v2819, 4294901760
          %2821 = vmatpush.msra.mxu0 %v2820
          %v2822 = vsub.f32 %v2066, %v2066
          %v2823 = vand.u32 %v2822, 4294901760
          %2824 = vmatpush.msra.mxu0 %v2823
          %v2825 = vsub.f32 %v2063, %v2063
          %v2826 = vand.u32 %v2825, 4294901760
          %2827 = vmatpush.msra.mxu0 %v2826
          %v2828 = vsub.f32 %v2060, %v2060
          %v2829 = vand.u32 %v2828, 4294901760
          %2830 = vmatpush.msra.mxu0 %v2829
          %v2831 = vand.u32 %v2120, 4294901760
          %2832 = vmatmul.f32.gmra.mxu0 %v2831
          %v2833 = vpop.f32.mrf.mxu0
          %v2834 = vadd.f32 %v2781, %v2833
          %2835 = vdwg.mxu0
          %2836 = vmatpush.msra.mxu0 %v2105
          %2837 = vmatpush.msra.mxu0 %v2102
          %2838 = vmatpush.msra.mxu0 %v2099
          %2839 = vmatpush.msra.mxu0 %v2096
          %2840 = vmatpush.msra.mxu0 %v2093
          %2841 = vmatpush.msra.mxu0 %v2090
          %2842 = vmatpush.msra.mxu0 %v2087
          %2843 = vmatpush.msra.mxu0 %v2084
          %2844 = vmatpush.msra.mxu0 %v2081
          %2845 = vmatpush.msra.mxu0 %v2078
          %2846 = vmatpush.msra.mxu0 %v2075
          %2847 = vmatpush.msra.mxu0 %v2072
          %2848 = vmatpush.msra.mxu0 %v2069
          %2849 = vmatpush.msra.mxu0 %v2066
          %2850 = vmatpush.msra.mxu0 %v2063
          %2851 = vmatpush.msra.mxu0 %v2060
          %v2852 = vand.u32 %v2120, 4294901760
          %2853 = vmatmul.f32.gmra.mxu0 %v2852
          %v2854 = vpop.f32.mrf.mxu0
          %v2855 = vadd.f32 %v2834, %v2854
          %2856 = vdwg.mxu0
          %v2857 = vadd.f32 %v1534, %v2365
          %v2858 = vadd.f32 %v1779, %v2610
          %v2859 = vadd.f32 %v2024, %v2855
          %v2860 = vld [vmem:[#allocation10] sm:$0xff]
          %v2861 = vld [vmem:[#allocation10 + $0x8] sm:$0xf]
          %v2862 = vld [vmem:[#allocation10 + $0xc] sm:$0xff]
          %v2863 = vld [vmem:[#allocation10 + $0x14] sm:$0xf]
          %v2864 = vld [vmem:[#allocation10 + $0x18] sm:$0xff]
          %v2865 = vld [vmem:[#allocation10 + $0x20] sm:$0xf]
          %v2866 = vld [vmem:[#allocation10 + $0x24] sm:$0xff]
          %v2867 = vld [vmem:[#allocation10 + $0x2c] sm:$0xf]
          %v2868 = vld [vmem:[#allocation10 + $0x30] sm:$0xff]
          %v2869 = vld [vmem:[#allocation10 + $0x38] sm:$0xf]
          %v2870 = vld [vmem:[#allocation10 + $0x3c] sm:$0xff]
          %v2871 = vld [vmem:[#allocation10 + $0x44] sm:$0xf]
          %v2872 = vld [vmem:[#allocation10 + $0x48] sm:$0xff]
          %v2873 = vld [vmem:[#allocation10 + $0x50] sm:$0xf]
          %v2874 = vld [vmem:[#allocation10 + $0x54] sm:$0xff]
          %v2875 = vld [vmem:[#allocation10 + $0x5c] sm:$0xf]
          %v2876 = vld [vmem:[#allocation10 + $0x60] sm:$0xff]
          %v2877 = vld [vmem:[#allocation10 + $0x68] sm:$0xf]
          %v2878 = vld [vmem:[#allocation10 + $0x6c] sm:$0xff]
          %v2879 = vld [vmem:[#allocation10 + $0x74] sm:$0xf]
          %v2880 = vld [vmem:[#allocation10 + $0x78] sm:$0xff]
          %v2881 = vld [vmem:[#allocation10 + $0x80] sm:$0xf]
          %v2882 = vld [vmem:[#allocation10 + $0x84] sm:$0xff]
          %v2883 = vld [vmem:[#allocation10 + $0x8c] sm:$0xf]
          %v2884 = vld [vmem:[#allocation10 + $0x90] sm:$0xff]
          %v2885 = vld [vmem:[#allocation10 + $0x98] sm:$0xf]
          %v2886 = vld [vmem:[#allocation10 + $0x9c] sm:$0xff]
          %v2887 = vld [vmem:[#allocation10 + $0xa4] sm:$0xf]
          %v2888 = vld [vmem:[#allocation10 + $0xa8] sm:$0xff]
          %v2889 = vld [vmem:[#allocation10 + $0xb0] sm:$0xf]
          %v2890 = vld [vmem:[#allocation10 + $0xb4] sm:$0xff]
          %v2891 = vld [vmem:[#allocation10 + $0xbc] sm:$0xf]
          %v2892 = vunpack.c.l.bf16 %v2860
          %v2893 = vunpack.c.h.bf16 %v2860
          %v2894 = vunpack.c.l.bf16 %v2861
          %v2895 = vunpack.c.l.bf16 %v2862
          %v2896 = vunpack.c.h.bf16 %v2862
          %v2897 = vunpack.c.l.bf16 %v2863
          %v2898 = vunpack.c.l.bf16 %v2864
          %v2899 = vunpack.c.h.bf16 %v2864
          %v2900 = vunpack.c.l.bf16 %v2865
          %v2901 = vunpack.c.l.bf16 %v2866
          %v2902 = vunpack.c.h.bf16 %v2866
          %v2903 = vunpack.c.l.bf16 %v2867
          %v2904 = vunpack.c.l.bf16 %v2868
          %v2905 = vunpack.c.h.bf16 %v2868
          %v2906 = vunpack.c.l.bf16 %v2869
          %v2907 = vunpack.c.l.bf16 %v2870
          %v2908 = vunpack.c.h.bf16 %v2870
          %v2909 = vunpack.c.l.bf16 %v2871
          %v2910 = vunpack.c.l.bf16 %v2872
          %v2911 = vunpack.c.h.bf16 %v2872
          %v2912 = vunpack.c.l.bf16 %v2873
          %v2913 = vunpack.c.l.bf16 %v2874
          %v2914 = vunpack.c.h.bf16 %v2874
          %v2915 = vunpack.c.l.bf16 %v2875
          %v2916 = vunpack.c.l.bf16 %v2876
          %v2917 = vunpack.c.h.bf16 %v2876
          %v2918 = vunpack.c.l.bf16 %v2877
          %v2919 = vunpack.c.l.bf16 %v2878
          %v2920 = vunpack.c.h.bf16 %v2878
          %v2921 = vunpack.c.l.bf16 %v2879
          %v2922 = vunpack.c.l.bf16 %v2880
          %v2923 = vunpack.c.h.bf16 %v2880
          %v2924 = vunpack.c.l.bf16 %v2881
          %v2925 = vunpack.c.l.bf16 %v2882
          %v2926 = vunpack.c.h.bf16 %v2882
          %v2927 = vunpack.c.l.bf16 %v2883
          %v2928 = vunpack.c.l.bf16 %v2884
          %v2929 = vunpack.c.h.bf16 %v2884
          %v2930 = vunpack.c.l.bf16 %v2885
          %v2931 = vunpack.c.l.bf16 %v2886
          %v2932 = vunpack.c.h.bf16 %v2886
          %v2933 = vunpack.c.l.bf16 %v2887
          %v2934 = vunpack.c.l.bf16 %v2888
          %v2935 = vunpack.c.h.bf16 %v2888
          %v2936 = vunpack.c.l.bf16 %v2889
          %v2937 = vunpack.c.l.bf16 %v2890
          %v2938 = vunpack.c.h.bf16 %v2890
          %v2939 = vunpack.c.l.bf16 %v2891
          %v2940 = vld [vmem:[%s10] sm:$0x7]
          %v2942 = vperm.slane %v2940, 0
          %v2943 = vperm.slane %v2940, 1
          %v2944 = vperm.slane %v2940, 2
          %2948 = vmatpush.msra.mxu0 %v2937
          %2949 = vmatpush.msra.mxu0 %v2934
          %2950 = vmatpush.msra.mxu0 %v2931
          %2951 = vmatpush.msra.mxu0 %v2928
          %2952 = vmatpush.msra.mxu0 %v2925
          %2953 = vmatpush.msra.mxu0 %v2922
          %2954 = vmatpush.msra.mxu0 %v2919
          %2955 = vmatpush.msra.mxu0 %v2916
          %2956 = vmatpush.msra.mxu0 %v2913
          %2957 = vmatpush.msra.mxu0 %v2910
          %2958 = vmatpush.msra.mxu0 %v2907
          %2959 = vmatpush.msra.mxu0 %v2904
          %2960 = vmatpush.msra.mxu0 %v2901
          %2961 = vmatpush.msra.mxu0 %v2898
          %2962 = vmatpush.msra.mxu0 %v2895
          %2963 = vmatpush.msra.mxu0 %v2892
          %v2964 = vand.u32 %v1202, 4294901760
          %v2965 = vsub.f32 %v1202, %v2964
          %v2966 = vand.u32 %v2965, 4294901760
          %v2967 = vsub.f32 %v2965, %v2966
          %v2968 = vand.u32 %v2967, 4294901760
          %2969 = vmatmul.f32.gmra.mxu0 %v2968
          %v2970 = vpop.f32.mrf.mxu0
          %v2971 = vadd.f32 %v2942, %v2970
          %2972 = vdwg.mxu0
          %v2973 = vsub.f32 %v2937, %v2937
          %v2974 = vand.u32 %v2973, 4294901760
          %v2975 = vsub.f32 %v2973, %v2974
          %v2976 = vand.u32 %v2975, 4294901760
          %2977 = vmatpush.msra.mxu0 %v2976
          %v2978 = vsub.f32 %v2934, %v2934
          %v2979 = vand.u32 %v2978, 4294901760
          %v2980 = vsub.f32 %v2978, %v2979
          %v2981 = vand.u32 %v2980, 4294901760
          %2982 = vmatpush.msra.mxu0 %v2981
          %v2983 = vsub.f32 %v2931, %v2931
          %v2984 = vand.u32 %v2983, 4294901760
          %v2985 = vsub.f32 %v2983, %v2984
          %v2986 = vand.u32 %v2985, 4294901760
          %2987 = vmatpush.msra.mxu0 %v2986
          %v2988 = vsub.f32 %v2928, %v2928
          %v2989 = vand.u32 %v2988, 4294901760
          %v2990 = vsub.f32 %v2988, %v2989
          %v2991 = vand.u32 %v2990, 4294901760
          %2992 = vmatpush.msra.mxu0 %v2991
          %v2993 = vsub.f32 %v2925, %v2925
          %v2994 = vand.u32 %v2993, 4294901760
          %v2995 = vsub.f32 %v2993, %v2994
          %v2996 = vand.u32 %v2995, 4294901760
          %2997 = vmatpush.msra.mxu0 %v2996
          %v2998 = vsub.f32 %v2922, %v2922
          %v2999 = vand.u32 %v2998, 4294901760
          %v3000 = vsub.f32 %v2998, %v2999
          %v3001 = vand.u32 %v3000, 4294901760
          %3002 = vmatpush.msra.mxu0 %v3001
          %v3003 = vsub.f32 %v2919, %v2919
          %v3004 = vand.u32 %v3003, 4294901760
          %v3005 = vsub.f32 %v3003, %v3004
          %v3006 = vand.u32 %v3005, 4294901760
          %3007 = vmatpush.msra.mxu0 %v3006
          %v3008 = vsub.f32 %v2916, %v2916
          %v3009 = vand.u32 %v3008, 4294901760
          %v3010 = vsub.f32 %v3008, %v3009
          %v3011 = vand.u32 %v3010, 4294901760
          %3012 = vmatpush.msra.mxu0 %v3011
          %v3013 = vsub.f32 %v2913, %v2913
          %v3014 = vand.u32 %v3013, 4294901760
          %v3015 = vsub.f32 %v3013, %v3014
          %v3016 = vand.u32 %v3015, 4294901760
          %3017 = vmatpush.msra.mxu0 %v3016
          %v3018 = vsub.f32 %v2910, %v2910
          %v3019 = vand.u32 %v3018, 4294901760
          %v3020 = vsub.f32 %v3018, %v3019
          %v3021 = vand.u32 %v3020, 4294901760
          %3022 = vmatpush.msra.mxu0 %v3021
          %v3023 = vsub.f32 %v2907, %v2907
          %v3024 = vand.u32 %v3023, 4294901760
          %v3025 = vsub.f32 %v3023, %v3024
          %v3026 = vand.u32 %v3025, 4294901760
          %3027 = vmatpush.msra.mxu0 %v3026
          %v3028 = vsub.f32 %v2904, %v2904
          %v3029 = vand.u32 %v3028, 4294901760
          %v3030 = vsub.f32 %v3028, %v3029
          %v3031 = vand.u32 %v3030, 4294901760
          %3032 = vmatpush.msra.mxu0 %v3031
          %v3033 = vsub.f32 %v2901, %v2901
          %v3034 = vand.u32 %v3033, 4294901760
          %v3035 = vsub.f32 %v3033, %v3034
          %v3036 = vand.u32 %v3035, 4294901760
          %3037 = vmatpush.msra.mxu0 %v3036
          %v3038 = vsub.f32 %v2898, %v2898
          %v3039 = vand.u32 %v3038, 4294901760
          %v3040 = vsub.f32 %v3038, %v3039
          %v3041 = vand.u32 %v3040, 4294901760
          %3042 = vmatpush.msra.mxu0 %v3041
          %v3043 = vsub.f32 %v2895, %v2895
          %v3044 = vand.u32 %v3043, 4294901760
          %v3045 = vsub.f32 %v3043, %v3044
          %v3046 = vand.u32 %v3045, 4294901760
          %3047 = vmatpush.msra.mxu0 %v3046
          %v3048 = vsub.f32 %v2892, %v2892
          %v3049 = vand.u32 %v3048, 4294901760
          %v3050 = vsub.f32 %v3048, %v3049
          %v3051 = vand.u32 %v3050, 4294901760
          %3052 = vmatpush.msra.mxu0 %v3051
          %v3053 = vand.u32 %v1202, 4294901760
          %3054 = vmatmul.f32.gmra.mxu0 %v3053
          %v3055 = vpop.f32.mrf.mxu0
          %v3056 = vadd.f32 %v2971, %v3055
          %3057 = vdwg.mxu0
          %v3058 = vsub.f32 %v2937, %v2937
          %3059 = vmatpush.msra.mxu0 %v3058
          %v3060 = vsub.f32 %v2934, %v2934
          %3061 = vmatpush.msra.mxu0 %v3060
          %v3062 = vsub.f32 %v2931, %v2931
          %3063 = vmatpush.msra.mxu0 %v3062
          %v3064 = vsub.f32 %v2928, %v2928
          %3065 = vmatpush.msra.mxu0 %v3064
          %v3066 = vsub.f32 %v2925, %v2925
          %3067 = vmatpush.msra.mxu0 %v3066
          %v3068 = vsub.f32 %v2922, %v2922
          %3069 = vmatpush.msra.mxu0 %v3068
          %v3070 = vsub.f32 %v2919, %v2919
          %3071 = vmatpush.msra.mxu0 %v3070
          %v3072 = vsub.f32 %v2916, %v2916
          %3073 = vmatpush.msra.mxu0 %v3072
          %v3074 = vsub.f32 %v2913, %v2913
          %3075 = vmatpush.msra.mxu0 %v3074
          %v3076 = vsub.f32 %v2910, %v2910
          %3077 = vmatpush.msra.mxu0 %v3076
          %v3078 = vsub.f32 %v2907, %v2907
          %3079 = vmatpush.msra.mxu0 %v3078
          %v3080 = vsub.f32 %v2904, %v2904
          %3081 = vmatpush.msra.mxu0 %v3080
          %v3082 = vsub.f32 %v2901, %v2901
          %3083 = vmatpush.msra.mxu0 %v3082
          %v3084 = vsub.f32 %v2898, %v2898
          %3085 = vmatpush.msra.mxu0 %v3084
          %v3086 = vsub.f32 %v2895, %v2895
          %3087 = vmatpush.msra.mxu0 %v3086
          %v3088 = vsub.f32 %v2892, %v2892
          %3089 = vmatpush.msra.mxu0 %v3088
          %v3090 = vand.u32 %v1202, 4294901760
          %v3091 = vsub.f32 %v1202, %v3090
          %3092 = vmatmul.f32.gmra.mxu0 %v3091
          %v3093 = vpop.f32.mrf.mxu0
          %v3094 = vadd.f32 %v3056, %v3093
          %3095 = vdwg.mxu0
          %3096 = vmatpush.msra.mxu0 %v2937
          %3097 = vmatpush.msra.mxu0 %v2934
          %3098 = vmatpush.msra.mxu0 %v2931
          %3099 = vmatpush.msra.mxu0 %v2928
          %3100 = vmatpush.msra.mxu0 %v2925
          %3101 = vmatpush.msra.mxu0 %v2922
          %3102 = vmatpush.msra.mxu0 %v2919
          %3103 = vmatpush.msra.mxu0 %v2916
          %3104 = vmatpush.msra.mxu0 %v2913
          %3105 = vmatpush.msra.mxu0 %v2910
          %3106 = vmatpush.msra.mxu0 %v2907
          %3107 = vmatpush.msra.mxu0 %v2904
          %3108 = vmatpush.msra.mxu0 %v2901
          %3109 = vmatpush.msra.mxu0 %v2898
          %3110 = vmatpush.msra.mxu0 %v2895
          %3111 = vmatpush.msra.mxu0 %v2892
          %v3112 = vand.u32 %v1202, 4294901760
          %v3113 = vsub.f32 %v1202, %v3112
          %v3114 = vand.u32 %v3113, 4294901760
          %3115 = vmatmul.f32.gmra.mxu0 %v3114
          %v3116 = vpop.f32.mrf.mxu0
          %v3117 = vadd.f32 %v3094, %v3116
          %3118 = vdwg.mxu0
          %v3119 = vsub.f32 %v2937, %v2937
          %v3120 = vand.u32 %v3119, 4294901760
          %3121 = vmatpush.msra.mxu0 %v3120
          %v3122 = vsub.f32 %v2934, %v2934
          %v3123 = vand.u32 %v3122, 4294901760
          %3124 = vmatpush.msra.mxu0 %v3123
          %v3125 = vsub.f32 %v2931, %v2931
          %v3126 = vand.u32 %v3125, 4294901760
          %3127 = vmatpush.msra.mxu0 %v3126
          %v3128 = vsub.f32 %v2928, %v2928
          %v3129 = vand.u32 %v3128, 4294901760
          %3130 = vmatpush.msra.mxu0 %v3129
          %v3131 = vsub.f32 %v2925, %v2925
          %v3132 = vand.u32 %v3131, 4294901760
          %3133 = vmatpush.msra.mxu0 %v3132
          %v3134 = vsub.f32 %v2922, %v2922
          %v3135 = vand.u32 %v3134, 4294901760
          %3136 = vmatpush.msra.mxu0 %v3135
          %v3137 = vsub.f32 %v2919, %v2919
          %v3138 = vand.u32 %v3137, 4294901760
          %3139 = vmatpush.msra.mxu0 %v3138
          %v3140 = vsub.f32 %v2916, %v2916
          %v3141 = vand.u32 %v3140, 4294901760
          %3142 = vmatpush.msra.mxu0 %v3141
          %v3143 = vsub.f32 %v2913, %v2913
          %v3144 = vand.u32 %v3143, 4294901760
          %3145 = vmatpush.msra.mxu0 %v3144
          %v3146 = vsub.f32 %v2910, %v2910
          %v3147 = vand.u32 %v3146, 4294901760
          %3148 = vmatpush.msra.mxu0 %v3147
          %v3149 = vsub.f32 %v2907, %v2907
          %v3150 = vand.u32 %v3149, 4294901760
          %3151 = vmatpush.msra.mxu0 %v3150
          %v3152 = vsub.f32 %v2904, %v2904
          %v3153 = vand.u32 %v3152, 4294901760
          %3154 = vmatpush.msra.mxu0 %v3153
          %v3155 = vsub.f32 %v2901, %v2901
          %v3156 = vand.u32 %v3155, 4294901760
          %3157 = vmatpush.msra.mxu0 %v3156
          %v3158 = vsub.f32 %v2898, %v2898
          %v3159 = vand.u32 %v3158, 4294901760
          %3160 = vmatpush.msra.mxu0 %v3159
          %v3161 = vsub.f32 %v2895, %v2895
          %v3162 = vand.u32 %v3161, 4294901760
          %3163 = vmatpush.msra.mxu0 %v3162
          %v3164 = vsub.f32 %v2892, %v2892
          %v3165 = vand.u32 %v3164, 4294901760
          %3166 = vmatpush.msra.mxu0 %v3165
          %v3167 = vand.u32 %v1202, 4294901760
          %3168 = vmatmul.f32.gmra.mxu0 %v3167
          %v3169 = vpop.f32.mrf.mxu0
          %v3170 = vadd.f32 %v3117, %v3169
          %3171 = vdwg.mxu0
          %3172 = vmatpush.msra.mxu0 %v2937
          %3173 = vmatpush.msra.mxu0 %v2934
          %3174 = vmatpush.msra.mxu0 %v2931
          %3175 = vmatpush.msra.mxu0 %v2928
          %3176 = vmatpush.msra.mxu0 %v2925
          %3177 = vmatpush.msra.mxu0 %v2922
          %3178 = vmatpush.msra.mxu0 %v2919
          %3179 = vmatpush.msra.mxu0 %v2916
          %3180 = vmatpush.msra.mxu0 %v2913
          %3181 = vmatpush.msra.mxu0 %v2910
          %3182 = vmatpush.msra.mxu0 %v2907
          %3183 = vmatpush.msra.mxu0 %v2904
          %3184 = vmatpush.msra.mxu0 %v2901
          %3185 = vmatpush.msra.mxu0 %v2898
          %3186 = vmatpush.msra.mxu0 %v2895
          %3187 = vmatpush.msra.mxu0 %v2892
          %v3188 = vand.u32 %v1202, 4294901760
          %3189 = vmatmul.f32.gmra.mxu0 %v3188
          %v3190 = vpop.f32.mrf.mxu0
          %v3191 = vadd.f32 %v3170, %v3190
          %3192 = vdwg.mxu0
          %3193 = vmatpush.msra.mxu0 %v2938
          %3194 = vmatpush.msra.mxu0 %v2935
          %3195 = vmatpush.msra.mxu0 %v2932
          %3196 = vmatpush.msra.mxu0 %v2929
          %3197 = vmatpush.msra.mxu0 %v2926
          %3198 = vmatpush.msra.mxu0 %v2923
          %3199 = vmatpush.msra.mxu0 %v2920
          %3200 = vmatpush.msra.mxu0 %v2917
          %3201 = vmatpush.msra.mxu0 %v2914
          %3202 = vmatpush.msra.mxu0 %v2911
          %3203 = vmatpush.msra.mxu0 %v2908
          %3204 = vmatpush.msra.mxu0 %v2905
          %3205 = vmatpush.msra.mxu0 %v2902
          %3206 = vmatpush.msra.mxu0 %v2899
          %3207 = vmatpush.msra.mxu0 %v2896
          %3208 = vmatpush.msra.mxu0 %v2893
          %v3209 = vand.u32 %v1202, 4294901760
          %v3210 = vsub.f32 %v1202, %v3209
          %v3211 = vand.u32 %v3210, 4294901760
          %v3212 = vsub.f32 %v3210, %v3211
          %v3213 = vand.u32 %v3212, 4294901760
          %3214 = vmatmul.f32.gmra.mxu0 %v3213
          %v3215 = vpop.f32.mrf.mxu0
          %v3216 = vadd.f32 %v2943, %v3215
          %3217 = vdwg.mxu0
          %v3218 = vsub.f32 %v2938, %v2938
          %v3219 = vand.u32 %v3218, 4294901760
          %v3220 = vsub.f32 %v3218, %v3219
          %v3221 = vand.u32 %v3220, 4294901760
          %3222 = vmatpush.msra.mxu0 %v3221
          %v3223 = vsub.f32 %v2935, %v2935
          %v3224 = vand.u32 %v3223, 4294901760
          %v3225 = vsub.f32 %v3223, %v3224
          %v3226 = vand.u32 %v3225, 4294901760
          %3227 = vmatpush.msra.mxu0 %v3226
          %v3228 = vsub.f32 %v2932, %v2932
          %v3229 = vand.u32 %v3228, 4294901760
          %v3230 = vsub.f32 %v3228, %v3229
          %v3231 = vand.u32 %v3230, 4294901760
          %3232 = vmatpush.msra.mxu0 %v3231
          %v3233 = vsub.f32 %v2929, %v2929
          %v3234 = vand.u32 %v3233, 4294901760
          %v3235 = vsub.f32 %v3233, %v3234
          %v3236 = vand.u32 %v3235, 4294901760
          %3237 = vmatpush.msra.mxu0 %v3236
          %v3238 = vsub.f32 %v2926, %v2926
          %v3239 = vand.u32 %v3238, 4294901760
          %v3240 = vsub.f32 %v3238, %v3239
          %v3241 = vand.u32 %v3240, 4294901760
          %3242 = vmatpush.msra.mxu0 %v3241
          %v3243 = vsub.f32 %v2923, %v2923
          %v3244 = vand.u32 %v3243, 4294901760
          %v3245 = vsub.f32 %v3243, %v3244
          %v3246 = vand.u32 %v3245, 4294901760
          %3247 = vmatpush.msra.mxu0 %v3246
          %v3248 = vsub.f32 %v2920, %v2920
          %v3249 = vand.u32 %v3248, 4294901760
          %v3250 = vsub.f32 %v3248, %v3249
          %v3251 = vand.u32 %v3250, 4294901760
          %3252 = vmatpush.msra.mxu0 %v3251
          %v3253 = vsub.f32 %v2917, %v2917
          %v3254 = vand.u32 %v3253, 4294901760
          %v3255 = vsub.f32 %v3253, %v3254
          %v3256 = vand.u32 %v3255, 4294901760
          %3257 = vmatpush.msra.mxu0 %v3256
          %v3258 = vsub.f32 %v2914, %v2914
          %v3259 = vand.u32 %v3258, 4294901760
          %v3260 = vsub.f32 %v3258, %v3259
          %v3261 = vand.u32 %v3260, 4294901760
          %3262 = vmatpush.msra.mxu0 %v3261
          %v3263 = vsub.f32 %v2911, %v2911
          %v3264 = vand.u32 %v3263, 4294901760
          %v3265 = vsub.f32 %v3263, %v3264
          %v3266 = vand.u32 %v3265, 4294901760
          %3267 = vmatpush.msra.mxu0 %v3266
          %v3268 = vsub.f32 %v2908, %v2908
          %v3269 = vand.u32 %v3268, 4294901760
          %v3270 = vsub.f32 %v3268, %v3269
          %v3271 = vand.u32 %v3270, 4294901760
          %3272 = vmatpush.msra.mxu0 %v3271
          %v3273 = vsub.f32 %v2905, %v2905
          %v3274 = vand.u32 %v3273, 4294901760
          %v3275 = vsub.f32 %v3273, %v3274
          %v3276 = vand.u32 %v3275, 4294901760
          %3277 = vmatpush.msra.mxu0 %v3276
          %v3278 = vsub.f32 %v2902, %v2902
          %v3279 = vand.u32 %v3278, 4294901760
          %v3280 = vsub.f32 %v3278, %v3279
          %v3281 = vand.u32 %v3280, 4294901760
          %3282 = vmatpush.msra.mxu0 %v3281
          %v3283 = vsub.f32 %v2899, %v2899
          %v3284 = vand.u32 %v3283, 4294901760
          %v3285 = vsub.f32 %v3283, %v3284
          %v3286 = vand.u32 %v3285, 4294901760
          %3287 = vmatpush.msra.mxu0 %v3286
          %v3288 = vsub.f32 %v2896, %v2896
          %v3289 = vand.u32 %v3288, 4294901760
          %v3290 = vsub.f32 %v3288, %v3289
          %v3291 = vand.u32 %v3290, 4294901760
          %3292 = vmatpush.msra.mxu0 %v3291
          %v3293 = vsub.f32 %v2893, %v2893
          %v3294 = vand.u32 %v3293, 4294901760
          %v3295 = vsub.f32 %v3293, %v3294
          %v3296 = vand.u32 %v3295, 4294901760
          %3297 = vmatpush.msra.mxu0 %v3296
          %v3298 = vand.u32 %v1202, 4294901760
          %3299 = vmatmul.f32.gmra.mxu0 %v3298
          %v3300 = vpop.f32.mrf.mxu0
          %v3301 = vadd.f32 %v3216, %v3300
          %3302 = vdwg.mxu0
          %v3303 = vsub.f32 %v2938, %v2938
          %3304 = vmatpush.msra.mxu0 %v3303
          %v3305 = vsub.f32 %v2935, %v2935
          %3306 = vmatpush.msra.mxu0 %v3305
          %v3307 = vsub.f32 %v2932, %v2932
          %3308 = vmatpush.msra.mxu0 %v3307
          %v3309 = vsub.f32 %v2929, %v2929
          %3310 = vmatpush.msra.mxu0 %v3309
          %v3311 = vsub.f32 %v2926, %v2926
          %3312 = vmatpush.msra.mxu0 %v3311
          %v3313 = vsub.f32 %v2923, %v2923
          %3314 = vmatpush.msra.mxu0 %v3313
          %v3315 = vsub.f32 %v2920, %v2920
          %3316 = vmatpush.msra.mxu0 %v3315
          %v3317 = vsub.f32 %v2917, %v2917
          %3318 = vmatpush.msra.mxu0 %v3317
          %v3319 = vsub.f32 %v2914, %v2914
          %3320 = vmatpush.msra.mxu0 %v3319
          %v3321 = vsub.f32 %v2911, %v2911
          %3322 = vmatpush.msra.mxu0 %v3321
          %v3323 = vsub.f32 %v2908, %v2908
          %3324 = vmatpush.msra.mxu0 %v3323
          %v3325 = vsub.f32 %v2905, %v2905
          %3326 = vmatpush.msra.mxu0 %v3325
          %v3327 = vsub.f32 %v2902, %v2902
          %3328 = vmatpush.msra.mxu0 %v3327
          %v3329 = vsub.f32 %v2899, %v2899
          %3330 = vmatpush.msra.mxu0 %v3329
          %v3331 = vsub.f32 %v2896, %v2896
          %3332 = vmatpush.msra.mxu0 %v3331
          %v3333 = vsub.f32 %v2893, %v2893
          %3334 = vmatpush.msra.mxu0 %v3333
          %v3335 = vand.u32 %v1202, 4294901760
          %v3336 = vsub.f32 %v1202, %v3335
          %3337 = vmatmul.f32.gmra.mxu0 %v3336
          %v3338 = vpop.f32.mrf.mxu0
          %v3339 = vadd.f32 %v3301, %v3338
          %3340 = vdwg.mxu0
          %3341 = vmatpush.msra.mxu0 %v2938
          %3342 = vmatpush.msra.mxu0 %v2935
          %3343 = vmatpush.msra.mxu0 %v2932
          %3344 = vmatpush.msra.mxu0 %v2929
          %3345 = vmatpush.msra.mxu0 %v2926
          %3346 = vmatpush.msra.mxu0 %v2923
          %3347 = vmatpush.msra.mxu0 %v2920
          %3348 = vmatpush.msra.mxu0 %v2917
          %3349 = vmatpush.msra.mxu0 %v2914
          %3350 = vmatpush.msra.mxu0 %v2911
          %3351 = vmatpush.msra.mxu0 %v2908
          %3352 = vmatpush.msra.mxu0 %v2905
          %3353 = vmatpush.msra.mxu0 %v2902
          %3354 = vmatpush.msra.mxu0 %v2899
          %3355 = vmatpush.msra.mxu0 %v2896
          %3356 = vmatpush.msra.mxu0 %v2893
          %v3357 = vand.u32 %v1202, 4294901760
          %v3358 = vsub.f32 %v1202, %v3357
          %v3359 = vand.u32 %v3358, 4294901760
          %3360 = vmatmul.f32.gmra.mxu0 %v3359
          %v3361 = vpop.f32.mrf.mxu0
          %v3362 = vadd.f32 %v3339, %v3361
          %3363 = vdwg.mxu0
          %v3364 = vsub.f32 %v2938, %v2938
          %v3365 = vand.u32 %v3364, 4294901760
          %3366 = vmatpush.msra.mxu0 %v3365
          %v3367 = vsub.f32 %v2935, %v2935
          %v3368 = vand.u32 %v3367, 4294901760
          %3369 = vmatpush.msra.mxu0 %v3368
          %v3370 = vsub.f32 %v2932, %v2932
          %v3371 = vand.u32 %v3370, 4294901760
          %3372 = vmatpush.msra.mxu0 %v3371
          %v3373 = vsub.f32 %v2929, %v2929
          %v3374 = vand.u32 %v3373, 4294901760
          %3375 = vmatpush.msra.mxu0 %v3374
          %v3376 = vsub.f32 %v2926, %v2926
          %v3377 = vand.u32 %v3376, 4294901760
          %3378 = vmatpush.msra.mxu0 %v3377
          %v3379 = vsub.f32 %v2923, %v2923
          %v3380 = vand.u32 %v3379, 4294901760
          %3381 = vmatpush.msra.mxu0 %v3380
          %v3382 = vsub.f32 %v2920, %v2920
          %v3383 = vand.u32 %v3382, 4294901760
          %3384 = vmatpush.msra.mxu0 %v3383
          %v3385 = vsub.f32 %v2917, %v2917
          %v3386 = vand.u32 %v3385, 4294901760
          %3387 = vmatpush.msra.mxu0 %v3386
          %v3388 = vsub.f32 %v2914, %v2914
          %v3389 = vand.u32 %v3388, 4294901760
          %3390 = vmatpush.msra.mxu0 %v3389
          %v3391 = vsub.f32 %v2911, %v2911
          %v3392 = vand.u32 %v3391, 4294901760
          %3393 = vmatpush.msra.mxu0 %v3392
          %v3394 = vsub.f32 %v2908, %v2908
          %v3395 = vand.u32 %v3394, 4294901760
          %3396 = vmatpush.msra.mxu0 %v3395
          %v3397 = vsub.f32 %v2905, %v2905
          %v3398 = vand.u32 %v3397, 4294901760
          %3399 = vmatpush.msra.mxu0 %v3398
          %v3400 = vsub.f32 %v2902, %v2902
          %v3401 = vand.u32 %v3400, 4294901760
          %3402 = vmatpush.msra.mxu0 %v3401
          %v3403 = vsub.f32 %v2899, %v2899
          %v3404 = vand.u32 %v3403, 4294901760
          %3405 = vmatpush.msra.mxu0 %v3404
          %v3406 = vsub.f32 %v2896, %v2896
          %v3407 = vand.u32 %v3406, 4294901760
          %3408 = vmatpush.msra.mxu0 %v3407
          %v3409 = vsub.f32 %v2893, %v2893
          %v3410 = vand.u32 %v3409, 4294901760
          %3411 = vmatpush.msra.mxu0 %v3410
          %v3412 = vand.u32 %v1202, 4294901760
          %3413 = vmatmul.f32.gmra.mxu0 %v3412
          %v3414 = vpop.f32.mrf.mxu0
          %v3415 = vadd.f32 %v3362, %v3414
          %3416 = vdwg.mxu0
          %3417 = vmatpush.msra.mxu0 %v2938
          %3418 = vmatpush.msra.mxu0 %v2935
          %3419 = vmatpush.msra.mxu0 %v2932
          %3420 = vmatpush.msra.mxu0 %v2929
          %3421 = vmatpush.msra.mxu0 %v2926
          %3422 = vmatpush.msra.mxu0 %v2923
          %3423 = vmatpush.msra.mxu0 %v2920
          %3424 = vmatpush.msra.mxu0 %v2917
          %3425 = vmatpush.msra.mxu0 %v2914
          %3426 = vmatpush.msra.mxu0 %v2911
          %3427 = vmatpush.msra.mxu0 %v2908
          %3428 = vmatpush.msra.mxu0 %v2905
          %3429 = vmatpush.msra.mxu0 %v2902
          %3430 = vmatpush.msra.mxu0 %v2899
          %3431 = vmatpush.msra.mxu0 %v2896
          %3432 = vmatpush.msra.mxu0 %v2893
          %v3433 = vand.u32 %v1202, 4294901760
          %3434 = vmatmul.f32.gmra.mxu0 %v3433
          %v3435 = vpop.f32.mrf.mxu0
          %v3436 = vadd.f32 %v3415, %v3435
          %3437 = vdwg.mxu0
          %3438 = vmatpush.msra.mxu0 %v2939
          %3439 = vmatpush.msra.mxu0 %v2936
          %3440 = vmatpush.msra.mxu0 %v2933
          %3441 = vmatpush.msra.mxu0 %v2930
          %3442 = vmatpush.msra.mxu0 %v2927
          %3443 = vmatpush.msra.mxu0 %v2924
          %3444 = vmatpush.msra.mxu0 %v2921
          %3445 = vmatpush.msra.mxu0 %v2918
          %3446 = vmatpush.msra.mxu0 %v2915
          %3447 = vmatpush.msra.mxu0 %v2912
          %3448 = vmatpush.msra.mxu0 %v2909
          %3449 = vmatpush.msra.mxu0 %v2906
          %3450 = vmatpush.msra.mxu0 %v2903
          %3451 = vmatpush.msra.mxu0 %v2900
          %3452 = vmatpush.msra.mxu0 %v2897
          %3453 = vmatpush.msra.mxu0 %v2894
          %v3454 = vand.u32 %v1202, 4294901760
          %v3455 = vsub.f32 %v1202, %v3454
          %v3456 = vand.u32 %v3455, 4294901760
          %v3457 = vsub.f32 %v3455, %v3456
          %v3458 = vand.u32 %v3457, 4294901760
          %3459 = vmatmul.f32.gmra.mxu0 %v3458
          %v3460 = vpop.f32.mrf.mxu0
          %v3461 = vadd.f32 %v2944, %v3460
          %3462 = vdwg.mxu0
          %v3463 = vsub.f32 %v2939, %v2939
          %v3464 = vand.u32 %v3463, 4294901760
          %v3465 = vsub.f32 %v3463, %v3464
          %v3466 = vand.u32 %v3465, 4294901760
          %3467 = vmatpush.msra.mxu0 %v3466
          %v3468 = vsub.f32 %v2936, %v2936
          %v3469 = vand.u32 %v3468, 4294901760
          %v3470 = vsub.f32 %v3468, %v3469
          %v3471 = vand.u32 %v3470, 4294901760
          %3472 = vmatpush.msra.mxu0 %v3471
          %v3473 = vsub.f32 %v2933, %v2933
          %v3474 = vand.u32 %v3473, 4294901760
          %v3475 = vsub.f32 %v3473, %v3474
          %v3476 = vand.u32 %v3475, 4294901760
          %3477 = vmatpush.msra.mxu0 %v3476
          %v3478 = vsub.f32 %v2930, %v2930
          %v3479 = vand.u32 %v3478, 4294901760
          %v3480 = vsub.f32 %v3478, %v3479
          %v3481 = vand.u32 %v3480, 4294901760
          %3482 = vmatpush.msra.mxu0 %v3481
          %v3483 = vsub.f32 %v2927, %v2927
          %v3484 = vand.u32 %v3483, 4294901760
          %v3485 = vsub.f32 %v3483, %v3484
          %v3486 = vand.u32 %v3485, 4294901760
          %3487 = vmatpush.msra.mxu0 %v3486
          %v3488 = vsub.f32 %v2924, %v2924
          %v3489 = vand.u32 %v3488, 4294901760
          %v3490 = vsub.f32 %v3488, %v3489
          %v3491 = vand.u32 %v3490, 4294901760
          %3492 = vmatpush.msra.mxu0 %v3491
          %v3493 = vsub.f32 %v2921, %v2921
          %v3494 = vand.u32 %v3493, 4294901760
          %v3495 = vsub.f32 %v3493, %v3494
          %v3496 = vand.u32 %v3495, 4294901760
          %3497 = vmatpush.msra.mxu0 %v3496
          %v3498 = vsub.f32 %v2918, %v2918
          %v3499 = vand.u32 %v3498, 4294901760
          %v3500 = vsub.f32 %v3498, %v3499
          %v3501 = vand.u32 %v3500, 4294901760
          %3502 = vmatpush.msra.mxu0 %v3501
          %v3503 = vsub.f32 %v2915, %v2915
          %v3504 = vand.u32 %v3503, 4294901760
          %v3505 = vsub.f32 %v3503, %v3504
          %v3506 = vand.u32 %v3505, 4294901760
          %3507 = vmatpush.msra.mxu0 %v3506
          %v3508 = vsub.f32 %v2912, %v2912
          %v3509 = vand.u32 %v3508, 4294901760
          %v3510 = vsub.f32 %v3508, %v3509
          %v3511 = vand.u32 %v3510, 4294901760
          %3512 = vmatpush.msra.mxu0 %v3511
          %v3513 = vsub.f32 %v2909, %v2909
          %v3514 = vand.u32 %v3513, 4294901760
          %v3515 = vsub.f32 %v3513, %v3514
          %v3516 = vand.u32 %v3515, 4294901760
          %3517 = vmatpush.msra.mxu0 %v3516
          %v3518 = vsub.f32 %v2906, %v2906
          %v3519 = vand.u32 %v3518, 4294901760
          %v3520 = vsub.f32 %v3518, %v3519
          %v3521 = vand.u32 %v3520, 4294901760
          %3522 = vmatpush.msra.mxu0 %v3521
          %v3523 = vsub.f32 %v2903, %v2903
          %v3524 = vand.u32 %v3523, 4294901760
          %v3525 = vsub.f32 %v3523, %v3524
          %v3526 = vand.u32 %v3525, 4294901760
          %3527 = vmatpush.msra.mxu0 %v3526
          %v3528 = vsub.f32 %v2900, %v2900
          %v3529 = vand.u32 %v3528, 4294901760
          %v3530 = vsub.f32 %v3528, %v3529
          %v3531 = vand.u32 %v3530, 4294901760
          %3532 = vmatpush.msra.mxu0 %v3531
          %v3533 = vsub.f32 %v2897, %v2897
          %v3534 = vand.u32 %v3533, 4294901760
          %v3535 = vsub.f32 %v3533, %v3534
          %v3536 = vand.u32 %v3535, 4294901760
          %3537 = vmatpush.msra.mxu0 %v3536
          %v3538 = vsub.f32 %v2894, %v2894
          %v3539 = vand.u32 %v3538, 4294901760
          %v3540 = vsub.f32 %v3538, %v3539
          %v3541 = vand.u32 %v3540, 4294901760
          %3542 = vmatpush.msra.mxu0 %v3541
          %v3543 = vand.u32 %v1202, 4294901760
          %3544 = vmatmul.f32.gmra.mxu0 %v3543
          %v3545 = vpop.f32.mrf.mxu0
          %v3546 = vadd.f32 %v3461, %v3545
          %3547 = vdwg.mxu0
          %v3548 = vsub.f32 %v2939, %v2939
          %3549 = vmatpush.msra.mxu0 %v3548
          %v3550 = vsub.f32 %v2936, %v2936
          %3551 = vmatpush.msra.mxu0 %v3550
          %v3552 = vsub.f32 %v2933, %v2933
          %3553 = vmatpush.msra.mxu0 %v3552
          %v3554 = vsub.f32 %v2930, %v2930
          %3555 = vmatpush.msra.mxu0 %v3554
          %v3556 = vsub.f32 %v2927, %v2927
          %3557 = vmatpush.msra.mxu0 %v3556
          %v3558 = vsub.f32 %v2924, %v2924
          %3559 = vmatpush.msra.mxu0 %v3558
          %v3560 = vsub.f32 %v2921, %v2921
          %3561 = vmatpush.msra.mxu0 %v3560
          %v3562 = vsub.f32 %v2918, %v2918
          %3563 = vmatpush.msra.mxu0 %v3562
          %v3564 = vsub.f32 %v2915, %v2915
          %3565 = vmatpush.msra.mxu0 %v3564
          %v3566 = vsub.f32 %v2912, %v2912
          %3567 = vmatpush.msra.mxu0 %v3566
          %v3568 = vsub.f32 %v2909, %v2909
          %3569 = vmatpush.msra.mxu0 %v3568
          %v3570 = vsub.f32 %v2906, %v2906
          %3571 = vmatpush.msra.mxu0 %v3570
          %v3572 = vsub.f32 %v2903, %v2903
          %3573 = vmatpush.msra.mxu0 %v3572
          %v3574 = vsub.f32 %v2900, %v2900
          %3575 = vmatpush.msra.mxu0 %v3574
          %v3576 = vsub.f32 %v2897, %v2897
          %3577 = vmatpush.msra.mxu0 %v3576
          %v3578 = vsub.f32 %v2894, %v2894
          %3579 = vmatpush.msra.mxu0 %v3578
          %v3580 = vand.u32 %v1202, 4294901760
          %v3581 = vsub.f32 %v1202, %v3580
          %3582 = vmatmul.f32.gmra.mxu0 %v3581
          %v3583 = vpop.f32.mrf.mxu0
          %v3584 = vadd.f32 %v3546, %v3583
          %3585 = vdwg.mxu0
          %3586 = vmatpush.msra.mxu0 %v2939
          %3587 = vmatpush.msra.mxu0 %v2936
          %3588 = vmatpush.msra.mxu0 %v2933
          %3589 = vmatpush.msra.mxu0 %v2930
          %3590 = vmatpush.msra.mxu0 %v2927
          %3591 = vmatpush.msra.mxu0 %v2924
          %3592 = vmatpush.msra.mxu0 %v2921
          %3593 = vmatpush.msra.mxu0 %v2918
          %3594 = vmatpush.msra.mxu0 %v2915
          %3595 = vmatpush.msra.mxu0 %v2912
          %3596 = vmatpush.msra.mxu0 %v2909
          %3597 = vmatpush.msra.mxu0 %v2906
          %3598 = vmatpush.msra.mxu0 %v2903
          %3599 = vmatpush.msra.mxu0 %v2900
          %3600 = vmatpush.msra.mxu0 %v2897
          %3601 = vmatpush.msra.mxu0 %v2894
          %v3602 = vand.u32 %v1202, 4294901760
          %v3603 = vsub.f32 %v1202, %v3602
          %v3604 = vand.u32 %v3603, 4294901760
          %3605 = vmatmul.f32.gmra.mxu0 %v3604
          %v3606 = vpop.f32.mrf.mxu0
          %v3607 = vadd.f32 %v3584, %v3606
          %3608 = vdwg.mxu0
          %v3609 = vsub.f32 %v2939, %v2939
          %v3610 = vand.u32 %v3609, 4294901760
          %3611 = vmatpush.msra.mxu0 %v3610
          %v3612 = vsub.f32 %v2936, %v2936
          %v3613 = vand.u32 %v3612, 4294901760
          %3614 = vmatpush.msra.mxu0 %v3613
          %v3615 = vsub.f32 %v2933, %v2933
          %v3616 = vand.u32 %v3615, 4294901760
          %3617 = vmatpush.msra.mxu0 %v3616
          %v3618 = vsub.f32 %v2930, %v2930
          %v3619 = vand.u32 %v3618, 4294901760
          %3620 = vmatpush.msra.mxu0 %v3619
          %v3621 = vsub.f32 %v2927, %v2927
          %v3622 = vand.u32 %v3621, 4294901760
          %3623 = vmatpush.msra.mxu0 %v3622
          %v3624 = vsub.f32 %v2924, %v2924
          %v3625 = vand.u32 %v3624, 4294901760
          %3626 = vmatpush.msra.mxu0 %v3625
          %v3627 = vsub.f32 %v2921, %v2921
          %v3628 = vand.u32 %v3627, 4294901760
          %3629 = vmatpush.msra.mxu0 %v3628
          %v3630 = vsub.f32 %v2918, %v2918
          %v3631 = vand.u32 %v3630, 4294901760
          %3632 = vmatpush.msra.mxu0 %v3631
          %v3633 = vsub.f32 %v2915, %v2915
          %v3634 = vand.u32 %v3633, 4294901760
          %3635 = vmatpush.msra.mxu0 %v3634
          %v3636 = vsub.f32 %v2912, %v2912
          %v3637 = vand.u32 %v3636, 4294901760
          %3638 = vmatpush.msra.mxu0 %v3637
          %v3639 = vsub.f32 %v2909, %v2909
          %v3640 = vand.u32 %v3639, 4294901760
          %3641 = vmatpush.msra.mxu0 %v3640
          %v3642 = vsub.f32 %v2906, %v2906
          %v3643 = vand.u32 %v3642, 4294901760
          %3644 = vmatpush.msra.mxu0 %v3643
          %v3645 = vsub.f32 %v2903, %v2903
          %v3646 = vand.u32 %v3645, 4294901760
          %3647 = vmatpush.msra.mxu0 %v3646
          %v3648 = vsub.f32 %v2900, %v2900
          %v3649 = vand.u32 %v3648, 4294901760
          %3650 = vmatpush.msra.mxu0 %v3649
          %v3651 = vsub.f32 %v2897, %v2897
          %v3652 = vand.u32 %v3651, 4294901760
          %3653 = vmatpush.msra.mxu0 %v3652
          %v3654 = vsub.f32 %v2894, %v2894
          %v3655 = vand.u32 %v3654, 4294901760
          %3656 = vmatpush.msra.mxu0 %v3655
          %v3657 = vand.u32 %v1202, 4294901760
          %3658 = vmatmul.f32.gmra.mxu0 %v3657
          %v3659 = vpop.f32.mrf.mxu0
          %v3660 = vadd.f32 %v3607, %v3659
          %3661 = vdwg.mxu0
          %3662 = vmatpush.msra.mxu0 %v2939
          %3663 = vmatpush.msra.mxu0 %v2936
          %3664 = vmatpush.msra.mxu0 %v2933
          %3665 = vmatpush.msra.mxu0 %v2930
          %3666 = vmatpush.msra.mxu0 %v2927
          %3667 = vmatpush.msra.mxu0 %v2924
          %3668 = vmatpush.msra.mxu0 %v2921
          %3669 = vmatpush.msra.mxu0 %v2918
          %3670 = vmatpush.msra.mxu0 %v2915
          %3671 = vmatpush.msra.mxu0 %v2912
          %3672 = vmatpush.msra.mxu0 %v2909
          %3673 = vmatpush.msra.mxu0 %v2906
          %3674 = vmatpush.msra.mxu0 %v2903
          %3675 = vmatpush.msra.mxu0 %v2900
          %3676 = vmatpush.msra.mxu0 %v2897
          %3677 = vmatpush.msra.mxu0 %v2894
          %v3678 = vand.u32 %v1202, 4294901760
          %3679 = vmatmul.f32.gmra.mxu0 %v3678
          %v3680 = vpop.f32.mrf.mxu0
          %v3681 = vadd.f32 %v3660, %v3680
          %3682 = vdwg.mxu0
          %v3683 = vadd.f32 %v2857, %v3191
          %v3684 = vxor.u32 %v3683, 2147483648
          %v3685 = vmul.f32 %v3684, 1.442695
          %v3686 = vpow.pop %v3685
          %v3687 = vadd.f32 %v3686, 1.0
          %v3688 = vrcp.pop %v3687
          %v3689 = vmul.f32 %v3687, %v3688
          %v3690 = vsub.f32 1.0, %v3689
          %v3691 = vmul.f32 %v3688, %v3690
          %v3692 = vadd.f32 %v3688, %v3691
          %vm3693 = vweird.f32 %v3687
          %vm3694 = vweird.f32 %v3688
          %vm3695 = vmor %vm3693, %vm3694
          %v3696 = vsel %vm3695, %v3688, %v3692
          %v3697 = vand.u32 2147483647, %v3687
          %vm3698 = vcmp.eq.f32.partialorder %v3697, 8.507059e+37
          %v3699 = vand.u32 %v3687, 2147483648
          %v3700 = vor.u32 1.1754944e-38, %v3699
          %v3701 = vsel %vm3698, %v3700, %v3696
          %v3702 = vmul.f32 1.0, %v3701
          %v3703 = vadd.f32 %v2858, %v3436
          %v3704 = vxor.u32 %v3703, 2147483648
          %v3705 = vmul.f32 %v3704, 1.442695
          %v3706 = vpow.pop %v3705
          %v3707 = vadd.f32 %v3706, 1.0
          %v3708 = vrcp.pop %v3707
          %v3709 = vmul.f32 %v3707, %v3708
          %v3710 = vsub.f32 1.0, %v3709
          %v3711 = vmul.f32 %v3708, %v3710
          %v3712 = vadd.f32 %v3708, %v3711
          %vm3713 = vweird.f32 %v3707
          %vm3714 = vweird.f32 %v3708
          %vm3715 = vmor %vm3713, %vm3714
          %v3716 = vsel %vm3715, %v3708, %v3712
          %v3717 = vand.u32 2147483647, %v3707
          %vm3718 = vcmp.eq.f32.partialorder %v3717, 8.507059e+37
          %v3719 = vand.u32 %v3707, 2147483648
          %v3720 = vor.u32 1.1754944e-38, %v3719
          %v3721 = vsel %vm3718, %v3720, %v3716
          %v3722 = vmul.f32 1.0, %v3721
          %v3723 = vmul.f32 %v3702, %v3681
          %v3724 = vadd.f32 %v2859, %v3723
          %v3725 = vtanh.pop %v3724
          %v3726 = vsub.f32 1.0, %v3722
          %v3727 = vmul.f32 %v3726, %v3725
          %v3728 = vmul.f32 %v3722, %v1202
          %v3729 = vadd.f32 %v3727, %v3728
          %3730 = vst [vmem:[#allocation2] sm:$0xff] %v3729
          %v3731 = vld [vmem:[%s729] sm:$0xff]
          %v3732 = vld [vmem:[#allocation11] sm:$0xff]
          %v3733 = vld [vmem:[#allocation11 + $0x8] sm:$0xf]
          %v3734 = vld [vmem:[#allocation11 + $0xc] sm:$0xff]
          %v3735 = vld [vmem:[#allocation11 + $0x14] sm:$0xf]
          %v3736 = vld [vmem:[#allocation11 + $0x18] sm:$0xff]
          %v3737 = vld [vmem:[#allocation11 + $0x20] sm:$0xf]
          %v3738 = vld [vmem:[#allocation11 + $0x24] sm:$0xff]
          %v3739 = vld [vmem:[#allocation11 + $0x2c] sm:$0xf]
          %v3740 = vld [vmem:[#allocation11 + $0x30] sm:$0xff]
          %v3741 = vld [vmem:[#allocation11 + $0x38] sm:$0xf]
          %v3742 = vld [vmem:[#allocation11 + $0x3c] sm:$0xff]
          %v3743 = vld [vmem:[#allocation11 + $0x44] sm:$0xf]
          %v3744 = vld [vmem:[#allocation11 + $0x48] sm:$0xff]
          %v3745 = vld [vmem:[#allocation11 + $0x50] sm:$0xf]
          %v3746 = vld [vmem:[#allocation11 + $0x54] sm:$0xff]
          %v3747 = vld [vmem:[#allocation11 + $0x5c] sm:$0xf]
          %v3748 = vld [vmem:[#allocation11 + $0x60] sm:$0xff]
          %v3749 = vld [vmem:[#allocation11 + $0x68] sm:$0xf]
          %v3750 = vld [vmem:[#allocation11 + $0x6c] sm:$0xff]
          %v3751 = vld [vmem:[#allocation11 + $0x74] sm:$0xf]
          %v3752 = vld [vmem:[#allocation11 + $0x78] sm:$0xff]
          %v3753 = vld [vmem:[#allocation11 + $0x80] sm:$0xf]
          %v3754 = vld [vmem:[#allocation11 + $0x84] sm:$0xff]
          %v3755 = vld [vmem:[#allocation11 + $0x8c] sm:$0xf]
          %v3756 = vld [vmem:[#allocation11 + $0x90] sm:$0xff]
          %v3757 = vld [vmem:[#allocation11 + $0x98] sm:$0xf]
          %v3758 = vld [vmem:[#allocation11 + $0x9c] sm:$0xff]
          %v3759 = vld [vmem:[#allocation11 + $0xa4] sm:$0xf]
          %v3760 = vld [vmem:[#allocation11 + $0xa8] sm:$0xff]
          %v3761 = vld [vmem:[#allocation11 + $0xb0] sm:$0xf]
          %v3762 = vld [vmem:[#allocation11 + $0xb4] sm:$0xff]
          %v3763 = vld [vmem:[#allocation11 + $0xbc] sm:$0xf]
          %v3764 = vunpack.c.l.bf16 %v3732
          %v3765 = vunpack.c.h.bf16 %v3732
          %v3766 = vunpack.c.l.bf16 %v3733
          %v3767 = vunpack.c.l.bf16 %v3734
          %v3768 = vunpack.c.h.bf16 %v3734
          %v3769 = vunpack.c.l.bf16 %v3735
          %v3770 = vunpack.c.l.bf16 %v3736
          %v3771 = vunpack.c.h.bf16 %v3736
          %v3772 = vunpack.c.l.bf16 %v3737
          %v3773 = vunpack.c.l.bf16 %v3738
          %v3774 = vunpack.c.h.bf16 %v3738
          %v3775 = vunpack.c.l.bf16 %v3739
          %v3776 = vunpack.c.l.bf16 %v3740
          %v3777 = vunpack.c.h.bf16 %v3740
          %v3778 = vunpack.c.l.bf16 %v3741
          %v3779 = vunpack.c.l.bf16 %v3742
          %v3780 = vunpack.c.h.bf16 %v3742
          %v3781 = vunpack.c.l.bf16 %v3743
          %v3782 = vunpack.c.l.bf16 %v3744
          %v3783 = vunpack.c.h.bf16 %v3744
          %v3784 = vunpack.c.l.bf16 %v3745
          %v3785 = vunpack.c.l.bf16 %v3746
          %v3786 = vunpack.c.h.bf16 %v3746
          %v3787 = vunpack.c.l.bf16 %v3747
          %v3788 = vunpack.c.l.bf16 %v3748
          %v3789 = vunpack.c.h.bf16 %v3748
          %v3790 = vunpack.c.l.bf16 %v3749
          %v3791 = vunpack.c.l.bf16 %v3750
          %v3792 = vunpack.c.h.bf16 %v3750
          %v3793 = vunpack.c.l.bf16 %v3751
          %v3794 = vunpack.c.l.bf16 %v3752
          %v3795 = vunpack.c.h.bf16 %v3752
          %v3796 = vunpack.c.l.bf16 %v3753
          %v3797 = vunpack.c.l.bf16 %v3754
          %v3798 = vunpack.c.h.bf16 %v3754
          %v3799 = vunpack.c.l.bf16 %v3755
          %v3800 = vunpack.c.l.bf16 %v3756
          %v3801 = vunpack.c.h.bf16 %v3756
          %v3802 = vunpack.c.l.bf16 %v3757
          %v3803 = vunpack.c.l.bf16 %v3758
          %v3804 = vunpack.c.h.bf16 %v3758
          %v3805 = vunpack.c.l.bf16 %v3759
          %v3806 = vunpack.c.l.bf16 %v3760
          %v3807 = vunpack.c.h.bf16 %v3760
          %v3808 = vunpack.c.l.bf16 %v3761
          %v3809 = vunpack.c.l.bf16 %v3762
          %v3810 = vunpack.c.h.bf16 %v3762
          %v3811 = vunpack.c.l.bf16 %v3763
          %v3812 = vld [vmem:[%s13] sm:$0x7]
          %v3814 = vperm.slane %v3812, 0
          %v3815 = vperm.slane %v3812, 1
          %v3816 = vperm.slane %v3812, 2
          %3820 = vmatpush.msra.mxu0 %v3809
          %3821 = vmatpush.msra.mxu0 %v3806
          %3822 = vmatpush.msra.mxu0 %v3803
          %3823 = vmatpush.msra.mxu0 %v3800
          %3824 = vmatpush.msra.mxu0 %v3797
          %3825 = vmatpush.msra.mxu0 %v3794
          %3826 = vmatpush.msra.mxu0 %v3791
          %3827 = vmatpush.msra.mxu0 %v3788
          %3828 = vmatpush.msra.mxu0 %v3785
          %3829 = vmatpush.msra.mxu0 %v3782
          %3830 = vmatpush.msra.mxu0 %v3779
          %3831 = vmatpush.msra.mxu0 %v3776
          %3832 = vmatpush.msra.mxu0 %v3773
          %3833 = vmatpush.msra.mxu0 %v3770
          %3834 = vmatpush.msra.mxu0 %v3767
          %3835 = vmatpush.msra.mxu0 %v3764
          %v3836 = vand.u32 %v3729, 4294901760
          %v3837 = vsub.f32 %v3729, %v3836
          %v3838 = vand.u32 %v3837, 4294901760
          %v3839 = vsub.f32 %v3837, %v3838
          %v3840 = vand.u32 %v3839, 4294901760
          %3841 = vmatmul.f32.gmra.mxu0 %v3840
          %v3842 = vpop.f32.mrf.mxu0
          %v3843 = vadd.f32 %v3814, %v3842
          %3844 = vdwg.mxu0
          %v3845 = vsub.f32 %v3809, %v3809
          %v3846 = vand.u32 %v3845, 4294901760
          %v3847 = vsub.f32 %v3845, %v3846
          %v3848 = vand.u32 %v3847, 4294901760
          %3849 = vmatpush.msra.mxu0 %v3848
          %v3850 = vsub.f32 %v3806, %v3806
          %v3851 = vand.u32 %v3850, 4294901760
          %v3852 = vsub.f32 %v3850, %v3851
          %v3853 = vand.u32 %v3852, 4294901760
          %3854 = vmatpush.msra.mxu0 %v3853
          %v3855 = vsub.f32 %v3803, %v3803
          %v3856 = vand.u32 %v3855, 4294901760
          %v3857 = vsub.f32 %v3855, %v3856
          %v3858 = vand.u32 %v3857, 4294901760
          %3859 = vmatpush.msra.mxu0 %v3858
          %v3860 = vsub.f32 %v3800, %v3800
          %v3861 = vand.u32 %v3860, 4294901760
          %v3862 = vsub.f32 %v3860, %v3861
          %v3863 = vand.u32 %v3862, 4294901760
          %3864 = vmatpush.msra.mxu0 %v3863
          %v3865 = vsub.f32 %v3797, %v3797
          %v3866 = vand.u32 %v3865, 4294901760
          %v3867 = vsub.f32 %v3865, %v3866
          %v3868 = vand.u32 %v3867, 4294901760
          %3869 = vmatpush.msra.mxu0 %v3868
          %v3870 = vsub.f32 %v3794, %v3794
          %v3871 = vand.u32 %v3870, 4294901760
          %v3872 = vsub.f32 %v3870, %v3871
          %v3873 = vand.u32 %v3872, 4294901760
          %3874 = vmatpush.msra.mxu0 %v3873
          %v3875 = vsub.f32 %v3791, %v3791
          %v3876 = vand.u32 %v3875, 4294901760
          %v3877 = vsub.f32 %v3875, %v3876
          %v3878 = vand.u32 %v3877, 4294901760
          %3879 = vmatpush.msra.mxu0 %v3878
          %v3880 = vsub.f32 %v3788, %v3788
          %v3881 = vand.u32 %v3880, 4294901760
          %v3882 = vsub.f32 %v3880, %v3881
          %v3883 = vand.u32 %v3882, 4294901760
          %3884 = vmatpush.msra.mxu0 %v3883
          %v3885 = vsub.f32 %v3785, %v3785
          %v3886 = vand.u32 %v3885, 4294901760
          %v3887 = vsub.f32 %v3885, %v3886
          %v3888 = vand.u32 %v3887, 4294901760
          %3889 = vmatpush.msra.mxu0 %v3888
          %v3890 = vsub.f32 %v3782, %v3782
          %v3891 = vand.u32 %v3890, 4294901760
          %v3892 = vsub.f32 %v3890, %v3891
          %v3893 = vand.u32 %v3892, 4294901760
          %3894 = vmatpush.msra.mxu0 %v3893
          %v3895 = vsub.f32 %v3779, %v3779
          %v3896 = vand.u32 %v3895, 4294901760
          %v3897 = vsub.f32 %v3895, %v3896
          %v3898 = vand.u32 %v3897, 4294901760
          %3899 = vmatpush.msra.mxu0 %v3898
          %v3900 = vsub.f32 %v3776, %v3776
          %v3901 = vand.u32 %v3900, 4294901760
          %v3902 = vsub.f32 %v3900, %v3901
          %v3903 = vand.u32 %v3902, 4294901760
          %3904 = vmatpush.msra.mxu0 %v3903
          %v3905 = vsub.f32 %v3773, %v3773
          %v3906 = vand.u32 %v3905, 4294901760
          %v3907 = vsub.f32 %v3905, %v3906
          %v3908 = vand.u32 %v3907, 4294901760
          %3909 = vmatpush.msra.mxu0 %v3908
          %v3910 = vsub.f32 %v3770, %v3770
          %v3911 = vand.u32 %v3910, 4294901760
          %v3912 = vsub.f32 %v3910, %v3911
          %v3913 = vand.u32 %v3912, 4294901760
          %3914 = vmatpush.msra.mxu0 %v3913
          %v3915 = vsub.f32 %v3767, %v3767
          %v3916 = vand.u32 %v3915, 4294901760
          %v3917 = vsub.f32 %v3915, %v3916
          %v3918 = vand.u32 %v3917, 4294901760
          %3919 = vmatpush.msra.mxu0 %v3918
          %v3920 = vsub.f32 %v3764, %v3764
          %v3921 = vand.u32 %v3920, 4294901760
          %v3922 = vsub.f32 %v3920, %v3921
          %v3923 = vand.u32 %v3922, 4294901760
          %3924 = vmatpush.msra.mxu0 %v3923
          %v3925 = vand.u32 %v3729, 4294901760
          %3926 = vmatmul.f32.gmra.mxu0 %v3925
          %v3927 = vpop.f32.mrf.mxu0
          %v3928 = vadd.f32 %v3843, %v3927
          %3929 = vdwg.mxu0
          %v3930 = vsub.f32 %v3809, %v3809
          %3931 = vmatpush.msra.mxu0 %v3930
          %v3932 = vsub.f32 %v3806, %v3806
          %3933 = vmatpush.msra.mxu0 %v3932
          %v3934 = vsub.f32 %v3803, %v3803
          %3935 = vmatpush.msra.mxu0 %v3934
          %v3936 = vsub.f32 %v3800, %v3800
          %3937 = vmatpush.msra.mxu0 %v3936
          %v3938 = vsub.f32 %v3797, %v3797
          %3939 = vmatpush.msra.mxu0 %v3938
          %v3940 = vsub.f32 %v3794, %v3794
          %3941 = vmatpush.msra.mxu0 %v3940
          %v3942 = vsub.f32 %v3791, %v3791
          %3943 = vmatpush.msra.mxu0 %v3942
          %v3944 = vsub.f32 %v3788, %v3788
          %3945 = vmatpush.msra.mxu0 %v3944
          %v3946 = vsub.f32 %v3785, %v3785
          %3947 = vmatpush.msra.mxu0 %v3946
          %v3948 = vsub.f32 %v3782, %v3782
          %3949 = vmatpush.msra.mxu0 %v3948
          %v3950 = vsub.f32 %v3779, %v3779
          %3951 = vmatpush.msra.mxu0 %v3950
          %v3952 = vsub.f32 %v3776, %v3776
          %3953 = vmatpush.msra.mxu0 %v3952
          %v3954 = vsub.f32 %v3773, %v3773
          %3955 = vmatpush.msra.mxu0 %v3954
          %v3956 = vsub.f32 %v3770, %v3770
          %3957 = vmatpush.msra.mxu0 %v3956
          %v3958 = vsub.f32 %v3767, %v3767
          %3959 = vmatpush.msra.mxu0 %v3958
          %v3960 = vsub.f32 %v3764, %v3764
          %3961 = vmatpush.msra.mxu0 %v3960
          %v3962 = vand.u32 %v3729, 4294901760
          %v3963 = vsub.f32 %v3729, %v3962
          %3964 = vmatmul.f32.gmra.mxu0 %v3963
          %v3965 = vpop.f32.mrf.mxu0
          %v3966 = vadd.f32 %v3928, %v3965
          %3967 = vdwg.mxu0
          %3968 = vmatpush.msra.mxu0 %v3809
          %3969 = vmatpush.msra.mxu0 %v3806
          %3970 = vmatpush.msra.mxu0 %v3803
          %3971 = vmatpush.msra.mxu0 %v3800
          %3972 = vmatpush.msra.mxu0 %v3797
          %3973 = vmatpush.msra.mxu0 %v3794
          %3974 = vmatpush.msra.mxu0 %v3791
          %3975 = vmatpush.msra.mxu0 %v3788
          %3976 = vmatpush.msra.mxu0 %v3785
          %3977 = vmatpush.msra.mxu0 %v3782
          %3978 = vmatpush.msra.mxu0 %v3779
          %3979 = vmatpush.msra.mxu0 %v3776
          %3980 = vmatpush.msra.mxu0 %v3773
          %3981 = vmatpush.msra.mxu0 %v3770
          %3982 = vmatpush.msra.mxu0 %v3767
          %3983 = vmatpush.msra.mxu0 %v3764
          %v3984 = vand.u32 %v3729, 4294901760
          %v3985 = vsub.f32 %v3729, %v3984
          %v3986 = vand.u32 %v3985, 4294901760
          %3987 = vmatmul.f32.gmra.mxu0 %v3986
          %v3988 = vpop.f32.mrf.mxu0
          %v3989 = vadd.f32 %v3966, %v3988
          %3990 = vdwg.mxu0
          %v3991 = vsub.f32 %v3809, %v3809
          %v3992 = vand.u32 %v3991, 4294901760
          %3993 = vmatpush.msra.mxu0 %v3992
          %v3994 = vsub.f32 %v3806, %v3806
          %v3995 = vand.u32 %v3994, 4294901760
          %3996 = vmatpush.msra.mxu0 %v3995
          %v3997 = vsub.f32 %v3803, %v3803
          %v3998 = vand.u32 %v3997, 4294901760
          %3999 = vmatpush.msra.mxu0 %v3998
          %v4000 = vsub.f32 %v3800, %v3800
          %v4001 = vand.u32 %v4000, 4294901760
          %4002 = vmatpush.msra.mxu0 %v4001
          %v4003 = vsub.f32 %v3797, %v3797
          %v4004 = vand.u32 %v4003, 4294901760
          %4005 = vmatpush.msra.mxu0 %v4004
          %v4006 = vsub.f32 %v3794, %v3794
          %v4007 = vand.u32 %v4006, 4294901760
          %4008 = vmatpush.msra.mxu0 %v4007
          %v4009 = vsub.f32 %v3791, %v3791
          %v4010 = vand.u32 %v4009, 4294901760
          %4011 = vmatpush.msra.mxu0 %v4010
          %v4012 = vsub.f32 %v3788, %v3788
          %v4013 = vand.u32 %v4012, 4294901760
          %4014 = vmatpush.msra.mxu0 %v4013
          %v4015 = vsub.f32 %v3785, %v3785
          %v4016 = vand.u32 %v4015, 4294901760
          %4017 = vmatpush.msra.mxu0 %v4016
          %v4018 = vsub.f32 %v3782, %v3782
          %v4019 = vand.u32 %v4018, 4294901760
          %4020 = vmatpush.msra.mxu0 %v4019
          %v4021 = vsub.f32 %v3779, %v3779
          %v4022 = vand.u32 %v4021, 4294901760
          %4023 = vmatpush.msra.mxu0 %v4022
          %v4024 = vsub.f32 %v3776, %v3776
          %v4025 = vand.u32 %v4024, 4294901760
          %4026 = vmatpush.msra.mxu0 %v4025
          %v4027 = vsub.f32 %v3773, %v3773
          %v4028 = vand.u32 %v4027, 4294901760
          %4029 = vmatpush.msra.mxu0 %v4028
          %v4030 = vsub.f32 %v3770, %v3770
          %v4031 = vand.u32 %v4030, 4294901760
          %4032 = vmatpush.msra.mxu0 %v4031
          %v4033 = vsub.f32 %v3767, %v3767
          %v4034 = vand.u32 %v4033, 4294901760
          %4035 = vmatpush.msra.mxu0 %v4034
          %v4036 = vsub.f32 %v3764, %v3764
          %v4037 = vand.u32 %v4036, 4294901760
          %4038 = vmatpush.msra.mxu0 %v4037
          %v4039 = vand.u32 %v3729, 4294901760
          %4040 = vmatmul.f32.gmra.mxu0 %v4039
          %v4041 = vpop.f32.mrf.mxu0
          %v4042 = vadd.f32 %v3989, %v4041
          %4043 = vdwg.mxu0
          %4044 = vmatpush.msra.mxu0 %v3809
          %4045 = vmatpush.msra.mxu0 %v3806
          %4046 = vmatpush.msra.mxu0 %v3803
          %4047 = vmatpush.msra.mxu0 %v3800
          %4048 = vmatpush.msra.mxu0 %v3797
          %4049 = vmatpush.msra.mxu0 %v3794
          %4050 = vmatpush.msra.mxu0 %v3791
          %4051 = vmatpush.msra.mxu0 %v3788
          %4052 = vmatpush.msra.mxu0 %v3785
          %4053 = vmatpush.msra.mxu0 %v3782
          %4054 = vmatpush.msra.mxu0 %v3779
          %4055 = vmatpush.msra.mxu0 %v3776
          %4056 = vmatpush.msra.mxu0 %v3773
          %4057 = vmatpush.msra.mxu0 %v3770
          %4058 = vmatpush.msra.mxu0 %v3767
          %4059 = vmatpush.msra.mxu0 %v3764
          %v4060 = vand.u32 %v3729, 4294901760
          %4061 = vmatmul.f32.gmra.mxu0 %v4060
          %v4062 = vpop.f32.mrf.mxu0
          %v4063 = vadd.f32 %v4042, %v4062
          %4064 = vdwg.mxu0
          %4065 = vmatpush.msra.mxu0 %v3810
          %4066 = vmatpush.msra.mxu0 %v3807
          %4067 = vmatpush.msra.mxu0 %v3804
          %4068 = vmatpush.msra.mxu0 %v3801
          %4069 = vmatpush.msra.mxu0 %v3798
          %4070 = vmatpush.msra.mxu0 %v3795
          %4071 = vmatpush.msra.mxu0 %v3792
          %4072 = vmatpush.msra.mxu0 %v3789
          %4073 = vmatpush.msra.mxu0 %v3786
          %4074 = vmatpush.msra.mxu0 %v3783
          %4075 = vmatpush.msra.mxu0 %v3780
          %4076 = vmatpush.msra.mxu0 %v3777
          %4077 = vmatpush.msra.mxu0 %v3774
          %4078 = vmatpush.msra.mxu0 %v3771
          %4079 = vmatpush.msra.mxu0 %v3768
          %4080 = vmatpush.msra.mxu0 %v3765
          %v4081 = vand.u32 %v3729, 4294901760
          %v4082 = vsub.f32 %v3729, %v4081
          %v4083 = vand.u32 %v4082, 4294901760
          %v4084 = vsub.f32 %v4082, %v4083
          %v4085 = vand.u32 %v4084, 4294901760
          %4086 = vmatmul.f32.gmra.mxu0 %v4085
          %v4087 = vpop.f32.mrf.mxu0
          %v4088 = vadd.f32 %v3815, %v4087
          %4089 = vdwg.mxu0
          %v4090 = vsub.f32 %v3810, %v3810
          %v4091 = vand.u32 %v4090, 4294901760
          %v4092 = vsub.f32 %v4090, %v4091
          %v4093 = vand.u32 %v4092, 4294901760
          %4094 = vmatpush.msra.mxu0 %v4093
          %v4095 = vsub.f32 %v3807, %v3807
          %v4096 = vand.u32 %v4095, 4294901760
          %v4097 = vsub.f32 %v4095, %v4096
          %v4098 = vand.u32 %v4097, 4294901760
          %4099 = vmatpush.msra.mxu0 %v4098
          %v4100 = vsub.f32 %v3804, %v3804
          %v4101 = vand.u32 %v4100, 4294901760
          %v4102 = vsub.f32 %v4100, %v4101
          %v4103 = vand.u32 %v4102, 4294901760
          %4104 = vmatpush.msra.mxu0 %v4103
          %v4105 = vsub.f32 %v3801, %v3801
          %v4106 = vand.u32 %v4105, 4294901760
          %v4107 = vsub.f32 %v4105, %v4106
          %v4108 = vand.u32 %v4107, 4294901760
          %4109 = vmatpush.msra.mxu0 %v4108
          %v4110 = vsub.f32 %v3798, %v3798
          %v4111 = vand.u32 %v4110, 4294901760
          %v4112 = vsub.f32 %v4110, %v4111
          %v4113 = vand.u32 %v4112, 4294901760
          %4114 = vmatpush.msra.mxu0 %v4113
          %v4115 = vsub.f32 %v3795, %v3795
          %v4116 = vand.u32 %v4115, 4294901760
          %v4117 = vsub.f32 %v4115, %v4116
          %v4118 = vand.u32 %v4117, 4294901760
          %4119 = vmatpush.msra.mxu0 %v4118
          %v4120 = vsub.f32 %v3792, %v3792
          %v4121 = vand.u32 %v4120, 4294901760
          %v4122 = vsub.f32 %v4120, %v4121
          %v4123 = vand.u32 %v4122, 4294901760
          %4124 = vmatpush.msra.mxu0 %v4123
          %v4125 = vsub.f32 %v3789, %v3789
          %v4126 = vand.u32 %v4125, 4294901760
          %v4127 = vsub.f32 %v4125, %v4126
          %v4128 = vand.u32 %v4127, 4294901760
          %4129 = vmatpush.msra.mxu0 %v4128
          %v4130 = vsub.f32 %v3786, %v3786
          %v4131 = vand.u32 %v4130, 4294901760
          %v4132 = vsub.f32 %v4130, %v4131
          %v4133 = vand.u32 %v4132, 4294901760
          %4134 = vmatpush.msra.mxu0 %v4133
          %v4135 = vsub.f32 %v3783, %v3783
          %v4136 = vand.u32 %v4135, 4294901760
          %v4137 = vsub.f32 %v4135, %v4136
          %v4138 = vand.u32 %v4137, 4294901760
          %4139 = vmatpush.msra.mxu0 %v4138
          %v4140 = vsub.f32 %v3780, %v3780
          %v4141 = vand.u32 %v4140, 4294901760
          %v4142 = vsub.f32 %v4140, %v4141
          %v4143 = vand.u32 %v4142, 4294901760
          %4144 = vmatpush.msra.mxu0 %v4143
          %v4145 = vsub.f32 %v3777, %v3777
          %v4146 = vand.u32 %v4145, 4294901760
          %v4147 = vsub.f32 %v4145, %v4146
          %v4148 = vand.u32 %v4147, 4294901760
          %4149 = vmatpush.msra.mxu0 %v4148
          %v4150 = vsub.f32 %v3774, %v3774
          %v4151 = vand.u32 %v4150, 4294901760
          %v4152 = vsub.f32 %v4150, %v4151
          %v4153 = vand.u32 %v4152, 4294901760
          %4154 = vmatpush.msra.mxu0 %v4153
          %v4155 = vsub.f32 %v3771, %v3771
          %v4156 = vand.u32 %v4155, 4294901760
          %v4157 = vsub.f32 %v4155, %v4156
          %v4158 = vand.u32 %v4157, 4294901760
          %4159 = vmatpush.msra.mxu0 %v4158
          %v4160 = vsub.f32 %v3768, %v3768
          %v4161 = vand.u32 %v4160, 4294901760
          %v4162 = vsub.f32 %v4160, %v4161
          %v4163 = vand.u32 %v4162, 4294901760
          %4164 = vmatpush.msra.mxu0 %v4163
          %v4165 = vsub.f32 %v3765, %v3765
          %v4166 = vand.u32 %v4165, 4294901760
          %v4167 = vsub.f32 %v4165, %v4166
          %v4168 = vand.u32 %v4167, 4294901760
          %4169 = vmatpush.msra.mxu0 %v4168
          %v4170 = vand.u32 %v3729, 4294901760
          %4171 = vmatmul.f32.gmra.mxu0 %v4170
          %v4172 = vpop.f32.mrf.mxu0
          %v4173 = vadd.f32 %v4088, %v4172
          %4174 = vdwg.mxu0
          %v4175 = vsub.f32 %v3810, %v3810
          %4176 = vmatpush.msra.mxu0 %v4175
          %v4177 = vsub.f32 %v3807, %v3807
          %4178 = vmatpush.msra.mxu0 %v4177
          %v4179 = vsub.f32 %v3804, %v3804
          %4180 = vmatpush.msra.mxu0 %v4179
          %v4181 = vsub.f32 %v3801, %v3801
          %4182 = vmatpush.msra.mxu0 %v4181
          %v4183 = vsub.f32 %v3798, %v3798
          %4184 = vmatpush.msra.mxu0 %v4183
          %v4185 = vsub.f32 %v3795, %v3795
          %4186 = vmatpush.msra.mxu0 %v4185
          %v4187 = vsub.f32 %v3792, %v3792
          %4188 = vmatpush.msra.mxu0 %v4187
          %v4189 = vsub.f32 %v3789, %v3789
          %4190 = vmatpush.msra.mxu0 %v4189
          %v4191 = vsub.f32 %v3786, %v3786
          %4192 = vmatpush.msra.mxu0 %v4191
          %v4193 = vsub.f32 %v3783, %v3783
          %4194 = vmatpush.msra.mxu0 %v4193
          %v4195 = vsub.f32 %v3780, %v3780
          %4196 = vmatpush.msra.mxu0 %v4195
          %v4197 = vsub.f32 %v3777, %v3777
          %4198 = vmatpush.msra.mxu0 %v4197
          %v4199 = vsub.f32 %v3774, %v3774
          %4200 = vmatpush.msra.mxu0 %v4199
          %v4201 = vsub.f32 %v3771, %v3771
          %4202 = vmatpush.msra.mxu0 %v4201
          %v4203 = vsub.f32 %v3768, %v3768
          %4204 = vmatpush.msra.mxu0 %v4203
          %v4205 = vsub.f32 %v3765, %v3765
          %4206 = vmatpush.msra.mxu0 %v4205
          %v4207 = vand.u32 %v3729, 4294901760
          %v4208 = vsub.f32 %v3729, %v4207
          %4209 = vmatmul.f32.gmra.mxu0 %v4208
          %v4210 = vpop.f32.mrf.mxu0
          %v4211 = vadd.f32 %v4173, %v4210
          %4212 = vdwg.mxu0
          %4213 = vmatpush.msra.mxu0 %v3810
          %4214 = vmatpush.msra.mxu0 %v3807
          %4215 = vmatpush.msra.mxu0 %v3804
          %4216 = vmatpush.msra.mxu0 %v3801
          %4217 = vmatpush.msra.mxu0 %v3798
          %4218 = vmatpush.msra.mxu0 %v3795
          %4219 = vmatpush.msra.mxu0 %v3792
          %4220 = vmatpush.msra.mxu0 %v3789
          %4221 = vmatpush.msra.mxu0 %v3786
          %4222 = vmatpush.msra.mxu0 %v3783
          %4223 = vmatpush.msra.mxu0 %v3780
          %4224 = vmatpush.msra.mxu0 %v3777
          %4225 = vmatpush.msra.mxu0 %v3774
          %4226 = vmatpush.msra.mxu0 %v3771
          %4227 = vmatpush.msra.mxu0 %v3768
          %4228 = vmatpush.msra.mxu0 %v3765
          %v4229 = vand.u32 %v3729, 4294901760
          %v4230 = vsub.f32 %v3729, %v4229
          %v4231 = vand.u32 %v4230, 4294901760
          %4232 = vmatmul.f32.gmra.mxu0 %v4231
          %v4233 = vpop.f32.mrf.mxu0
          %v4234 = vadd.f32 %v4211, %v4233
          %4235 = vdwg.mxu0
          %v4236 = vsub.f32 %v3810, %v3810
          %v4237 = vand.u32 %v4236, 4294901760
          %4238 = vmatpush.msra.mxu0 %v4237
          %v4239 = vsub.f32 %v3807, %v3807
          %v4240 = vand.u32 %v4239, 4294901760
          %4241 = vmatpush.msra.mxu0 %v4240
          %v4242 = vsub.f32 %v3804, %v3804
          %v4243 = vand.u32 %v4242, 4294901760
          %4244 = vmatpush.msra.mxu0 %v4243
          %v4245 = vsub.f32 %v3801, %v3801
          %v4246 = vand.u32 %v4245, 4294901760
          %4247 = vmatpush.msra.mxu0 %v4246
          %v4248 = vsub.f32 %v3798, %v3798
          %v4249 = vand.u32 %v4248, 4294901760
          %4250 = vmatpush.msra.mxu0 %v4249
          %v4251 = vsub.f32 %v3795, %v3795
          %v4252 = vand.u32 %v4251, 4294901760
          %4253 = vmatpush.msra.mxu0 %v4252
          %v4254 = vsub.f32 %v3792, %v3792
          %v4255 = vand.u32 %v4254, 4294901760
          %4256 = vmatpush.msra.mxu0 %v4255
          %v4257 = vsub.f32 %v3789, %v3789
          %v4258 = vand.u32 %v4257, 4294901760
          %4259 = vmatpush.msra.mxu0 %v4258
          %v4260 = vsub.f32 %v3786, %v3786
          %v4261 = vand.u32 %v4260, 4294901760
          %4262 = vmatpush.msra.mxu0 %v4261
          %v4263 = vsub.f32 %v3783, %v3783
          %v4264 = vand.u32 %v4263, 4294901760
          %4265 = vmatpush.msra.mxu0 %v4264
          %v4266 = vsub.f32 %v3780, %v3780
          %v4267 = vand.u32 %v4266, 4294901760
          %4268 = vmatpush.msra.mxu0 %v4267
          %v4269 = vsub.f32 %v3777, %v3777
          %v4270 = vand.u32 %v4269, 4294901760
          %4271 = vmatpush.msra.mxu0 %v4270
          %v4272 = vsub.f32 %v3774, %v3774
          %v4273 = vand.u32 %v4272, 4294901760
          %4274 = vmatpush.msra.mxu0 %v4273
          %v4275 = vsub.f32 %v3771, %v3771
          %v4276 = vand.u32 %v4275, 4294901760
          %4277 = vmatpush.msra.mxu0 %v4276
          %v4278 = vsub.f32 %v3768, %v3768
          %v4279 = vand.u32 %v4278, 4294901760
          %4280 = vmatpush.msra.mxu0 %v4279
          %v4281 = vsub.f32 %v3765, %v3765
          %v4282 = vand.u32 %v4281, 4294901760
          %4283 = vmatpush.msra.mxu0 %v4282
          %v4284 = vand.u32 %v3729, 4294901760
          %4285 = vmatmul.f32.gmra.mxu0 %v4284
          %v4286 = vpop.f32.mrf.mxu0
          %v4287 = vadd.f32 %v4234, %v4286
          %4288 = vdwg.mxu0
          %4289 = vmatpush.msra.mxu0 %v3810
          %4290 = vmatpush.msra.mxu0 %v3807
          %4291 = vmatpush.msra.mxu0 %v3804
          %4292 = vmatpush.msra.mxu0 %v3801
          %4293 = vmatpush.msra.mxu0 %v3798
          %4294 = vmatpush.msra.mxu0 %v3795
          %4295 = vmatpush.msra.mxu0 %v3792
          %4296 = vmatpush.msra.mxu0 %v3789
          %4297 = vmatpush.msra.mxu0 %v3786
          %4298 = vmatpush.msra.mxu0 %v3783
          %4299 = vmatpush.msra.mxu0 %v3780
          %4300 = vmatpush.msra.mxu0 %v3777
          %4301 = vmatpush.msra.mxu0 %v3774
          %4302 = vmatpush.msra.mxu0 %v3771
          %4303 = vmatpush.msra.mxu0 %v3768
          %4304 = vmatpush.msra.mxu0 %v3765
          %v4305 = vand.u32 %v3729, 4294901760
          %4306 = vmatmul.f32.gmra.mxu0 %v4305
          %v4307 = vpop.f32.mrf.mxu0
          %v4308 = vadd.f32 %v4287, %v4307
          %4309 = vdwg.mxu0
          %4310 = vmatpush.msra.mxu0 %v3811
          %4311 = vmatpush.msra.mxu0 %v3808
          %4312 = vmatpush.msra.mxu0 %v3805
          %4313 = vmatpush.msra.mxu0 %v3802
          %4314 = vmatpush.msra.mxu0 %v3799
          %4315 = vmatpush.msra.mxu0 %v3796
          %4316 = vmatpush.msra.mxu0 %v3793
          %4317 = vmatpush.msra.mxu0 %v3790
          %4318 = vmatpush.msra.mxu0 %v3787
          %4319 = vmatpush.msra.mxu0 %v3784
          %4320 = vmatpush.msra.mxu0 %v3781
          %4321 = vmatpush.msra.mxu0 %v3778
          %4322 = vmatpush.msra.mxu0 %v3775
          %4323 = vmatpush.msra.mxu0 %v3772
          %4324 = vmatpush.msra.mxu0 %v3769
          %4325 = vmatpush.msra.mxu0 %v3766
          %v4326 = vand.u32 %v3729, 4294901760
          %v4327 = vsub.f32 %v3729, %v4326
          %v4328 = vand.u32 %v4327, 4294901760
          %v4329 = vsub.f32 %v4327, %v4328
          %v4330 = vand.u32 %v4329, 4294901760
          %4331 = vmatmul.f32.gmra.mxu0 %v4330
          %v4332 = vpop.f32.mrf.mxu0
          %v4333 = vadd.f32 %v3816, %v4332
          %4334 = vdwg.mxu0
          %v4335 = vsub.f32 %v3811, %v3811
          %v4336 = vand.u32 %v4335, 4294901760
          %v4337 = vsub.f32 %v4335, %v4336
          %v4338 = vand.u32 %v4337, 4294901760
          %4339 = vmatpush.msra.mxu0 %v4338
          %v4340 = vsub.f32 %v3808, %v3808
          %v4341 = vand.u32 %v4340, 4294901760
          %v4342 = vsub.f32 %v4340, %v4341
          %v4343 = vand.u32 %v4342, 4294901760
          %4344 = vmatpush.msra.mxu0 %v4343
          %v4345 = vsub.f32 %v3805, %v3805
          %v4346 = vand.u32 %v4345, 4294901760
          %v4347 = vsub.f32 %v4345, %v4346
          %v4348 = vand.u32 %v4347, 4294901760
          %4349 = vmatpush.msra.mxu0 %v4348
          %v4350 = vsub.f32 %v3802, %v3802
          %v4351 = vand.u32 %v4350, 4294901760
          %v4352 = vsub.f32 %v4350, %v4351
          %v4353 = vand.u32 %v4352, 4294901760
          %4354 = vmatpush.msra.mxu0 %v4353
          %v4355 = vsub.f32 %v3799, %v3799
          %v4356 = vand.u32 %v4355, 4294901760
          %v4357 = vsub.f32 %v4355, %v4356
          %v4358 = vand.u32 %v4357, 4294901760
          %4359 = vmatpush.msra.mxu0 %v4358
          %v4360 = vsub.f32 %v3796, %v3796
          %v4361 = vand.u32 %v4360, 4294901760
          %v4362 = vsub.f32 %v4360, %v4361
          %v4363 = vand.u32 %v4362, 4294901760
          %4364 = vmatpush.msra.mxu0 %v4363
          %v4365 = vsub.f32 %v3793, %v3793
          %v4366 = vand.u32 %v4365, 4294901760
          %v4367 = vsub.f32 %v4365, %v4366
          %v4368 = vand.u32 %v4367, 4294901760
          %4369 = vmatpush.msra.mxu0 %v4368
          %v4370 = vsub.f32 %v3790, %v3790
          %v4371 = vand.u32 %v4370, 4294901760
          %v4372 = vsub.f32 %v4370, %v4371
          %v4373 = vand.u32 %v4372, 4294901760
          %4374 = vmatpush.msra.mxu0 %v4373
          %v4375 = vsub.f32 %v3787, %v3787
          %v4376 = vand.u32 %v4375, 4294901760
          %v4377 = vsub.f32 %v4375, %v4376
          %v4378 = vand.u32 %v4377, 4294901760
          %4379 = vmatpush.msra.mxu0 %v4378
          %v4380 = vsub.f32 %v3784, %v3784
          %v4381 = vand.u32 %v4380, 4294901760
          %v4382 = vsub.f32 %v4380, %v4381
          %v4383 = vand.u32 %v4382, 4294901760
          %4384 = vmatpush.msra.mxu0 %v4383
          %v4385 = vsub.f32 %v3781, %v3781
          %v4386 = vand.u32 %v4385, 4294901760
          %v4387 = vsub.f32 %v4385, %v4386
          %v4388 = vand.u32 %v4387, 4294901760
          %4389 = vmatpush.msra.mxu0 %v4388
          %v4390 = vsub.f32 %v3778, %v3778
          %v4391 = vand.u32 %v4390, 4294901760
          %v4392 = vsub.f32 %v4390, %v4391
          %v4393 = vand.u32 %v4392, 4294901760
          %4394 = vmatpush.msra.mxu0 %v4393
          %v4395 = vsub.f32 %v3775, %v3775
          %v4396 = vand.u32 %v4395, 4294901760
          %v4397 = vsub.f32 %v4395, %v4396
          %v4398 = vand.u32 %v4397, 4294901760
          %4399 = vmatpush.msra.mxu0 %v4398
          %v4400 = vsub.f32 %v3772, %v3772
          %v4401 = vand.u32 %v4400, 4294901760
          %v4402 = vsub.f32 %v4400, %v4401
          %v4403 = vand.u32 %v4402, 4294901760
          %4404 = vmatpush.msra.mxu0 %v4403
          %v4405 = vsub.f32 %v3769, %v3769
          %v4406 = vand.u32 %v4405, 4294901760
          %v4407 = vsub.f32 %v4405, %v4406
          %v4408 = vand.u32 %v4407, 4294901760
          %4409 = vmatpush.msra.mxu0 %v4408
          %v4410 = vsub.f32 %v3766, %v3766
          %v4411 = vand.u32 %v4410, 4294901760
          %v4412 = vsub.f32 %v4410, %v4411
          %v4413 = vand.u32 %v4412, 4294901760
          %4414 = vmatpush.msra.mxu0 %v4413
          %v4415 = vand.u32 %v3729, 4294901760
          %4416 = vmatmul.f32.gmra.mxu0 %v4415
          %v4417 = vpop.f32.mrf.mxu0
          %v4418 = vadd.f32 %v4333, %v4417
          %4419 = vdwg.mxu0
          %v4420 = vsub.f32 %v3811, %v3811
          %4421 = vmatpush.msra.mxu0 %v4420
          %v4422 = vsub.f32 %v3808, %v3808
          %4423 = vmatpush.msra.mxu0 %v4422
          %v4424 = vsub.f32 %v3805, %v3805
          %4425 = vmatpush.msra.mxu0 %v4424
          %v4426 = vsub.f32 %v3802, %v3802
          %4427 = vmatpush.msra.mxu0 %v4426
          %v4428 = vsub.f32 %v3799, %v3799
          %4429 = vmatpush.msra.mxu0 %v4428
          %v4430 = vsub.f32 %v3796, %v3796
          %4431 = vmatpush.msra.mxu0 %v4430
          %v4432 = vsub.f32 %v3793, %v3793
          %4433 = vmatpush.msra.mxu0 %v4432
          %v4434 = vsub.f32 %v3790, %v3790
          %4435 = vmatpush.msra.mxu0 %v4434
          %v4436 = vsub.f32 %v3787, %v3787
          %4437 = vmatpush.msra.mxu0 %v4436
          %v4438 = vsub.f32 %v3784, %v3784
          %4439 = vmatpush.msra.mxu0 %v4438
          %v4440 = vsub.f32 %v3781, %v3781
          %4441 = vmatpush.msra.mxu0 %v4440
          %v4442 = vsub.f32 %v3778, %v3778
          %4443 = vmatpush.msra.mxu0 %v4442
          %v4444 = vsub.f32 %v3775, %v3775
          %4445 = vmatpush.msra.mxu0 %v4444
          %v4446 = vsub.f32 %v3772, %v3772
          %4447 = vmatpush.msra.mxu0 %v4446
          %v4448 = vsub.f32 %v3769, %v3769
          %4449 = vmatpush.msra.mxu0 %v4448
          %v4450 = vsub.f32 %v3766, %v3766
          %4451 = vmatpush.msra.mxu0 %v4450
          %v4452 = vand.u32 %v3729, 4294901760
          %v4453 = vsub.f32 %v3729, %v4452
          %4454 = vmatmul.f32.gmra.mxu0 %v4453
          %v4455 = vpop.f32.mrf.mxu0
          %v4456 = vadd.f32 %v4418, %v4455
          %4457 = vdwg.mxu0
          %4458 = vmatpush.msra.mxu0 %v3811
          %4459 = vmatpush.msra.mxu0 %v3808
          %4460 = vmatpush.msra.mxu0 %v3805
          %4461 = vmatpush.msra.mxu0 %v3802
          %4462 = vmatpush.msra.mxu0 %v3799
          %4463 = vmatpush.msra.mxu0 %v3796
          %4464 = vmatpush.msra.mxu0 %v3793
          %4465 = vmatpush.msra.mxu0 %v3790
          %4466 = vmatpush.msra.mxu0 %v3787
          %4467 = vmatpush.msra.mxu0 %v3784
          %4468 = vmatpush.msra.mxu0 %v3781
          %4469 = vmatpush.msra.mxu0 %v3778
          %4470 = vmatpush.msra.mxu0 %v3775
          %4471 = vmatpush.msra.mxu0 %v3772
          %4472 = vmatpush.msra.mxu0 %v3769
          %4473 = vmatpush.msra.mxu0 %v3766
          %v4474 = vand.u32 %v3729, 4294901760
          %v4475 = vsub.f32 %v3729, %v4474
          %v4476 = vand.u32 %v4475, 4294901760
          %4477 = vmatmul.f32.gmra.mxu0 %v4476
          %v4478 = vpop.f32.mrf.mxu0
          %v4479 = vadd.f32 %v4456, %v4478
          %4480 = vdwg.mxu0
          %v4481 = vsub.f32 %v3811, %v3811
          %v4482 = vand.u32 %v4481, 4294901760
          %4483 = vmatpush.msra.mxu0 %v4482
          %v4484 = vsub.f32 %v3808, %v3808
          %v4485 = vand.u32 %v4484, 4294901760
          %4486 = vmatpush.msra.mxu0 %v4485
          %v4487 = vsub.f32 %v3805, %v3805
          %v4488 = vand.u32 %v4487, 4294901760
          %4489 = vmatpush.msra.mxu0 %v4488
          %v4490 = vsub.f32 %v3802, %v3802
          %v4491 = vand.u32 %v4490, 4294901760
          %4492 = vmatpush.msra.mxu0 %v4491
          %v4493 = vsub.f32 %v3799, %v3799
          %v4494 = vand.u32 %v4493, 4294901760
          %4495 = vmatpush.msra.mxu0 %v4494
          %v4496 = vsub.f32 %v3796, %v3796
          %v4497 = vand.u32 %v4496, 4294901760
          %4498 = vmatpush.msra.mxu0 %v4497
          %v4499 = vsub.f32 %v3793, %v3793
          %v4500 = vand.u32 %v4499, 4294901760
          %4501 = vmatpush.msra.mxu0 %v4500
          %v4502 = vsub.f32 %v3790, %v3790
          %v4503 = vand.u32 %v4502, 4294901760
          %4504 = vmatpush.msra.mxu0 %v4503
          %v4505 = vsub.f32 %v3787, %v3787
          %v4506 = vand.u32 %v4505, 4294901760
          %4507 = vmatpush.msra.mxu0 %v4506
          %v4508 = vsub.f32 %v3784, %v3784
          %v4509 = vand.u32 %v4508, 4294901760
          %4510 = vmatpush.msra.mxu0 %v4509
          %v4511 = vsub.f32 %v3781, %v3781
          %v4512 = vand.u32 %v4511, 4294901760
          %4513 = vmatpush.msra.mxu0 %v4512
          %v4514 = vsub.f32 %v3778, %v3778
          %v4515 = vand.u32 %v4514, 4294901760
          %4516 = vmatpush.msra.mxu0 %v4515
          %v4517 = vsub.f32 %v3775, %v3775
          %v4518 = vand.u32 %v4517, 4294901760
          %4519 = vmatpush.msra.mxu0 %v4518
          %v4520 = vsub.f32 %v3772, %v3772
          %v4521 = vand.u32 %v4520, 4294901760
          %4522 = vmatpush.msra.mxu0 %v4521
          %v4523 = vsub.f32 %v3769, %v3769
          %v4524 = vand.u32 %v4523, 4294901760
          %4525 = vmatpush.msra.mxu0 %v4524
          %v4526 = vsub.f32 %v3766, %v3766
          %v4527 = vand.u32 %v4526, 4294901760
          %4528 = vmatpush.msra.mxu0 %v4527
          %v4529 = vand.u32 %v3729, 4294901760
          %4530 = vmatmul.f32.gmra.mxu0 %v4529
          %v4531 = vpop.f32.mrf.mxu0
          %v4532 = vadd.f32 %v4479, %v4531
          %4533 = vdwg.mxu0
          %4534 = vmatpush.msra.mxu0 %v3811
          %4535 = vmatpush.msra.mxu0 %v3808
          %4536 = vmatpush.msra.mxu0 %v3805
          %4537 = vmatpush.msra.mxu0 %v3802
          %4538 = vmatpush.msra.mxu0 %v3799
          %4539 = vmatpush.msra.mxu0 %v3796
          %4540 = vmatpush.msra.mxu0 %v3793
          %4541 = vmatpush.msra.mxu0 %v3790
          %4542 = vmatpush.msra.mxu0 %v3787
          %4543 = vmatpush.msra.mxu0 %v3784
          %4544 = vmatpush.msra.mxu0 %v3781
          %4545 = vmatpush.msra.mxu0 %v3778
          %4546 = vmatpush.msra.mxu0 %v3775
          %4547 = vmatpush.msra.mxu0 %v3772
          %4548 = vmatpush.msra.mxu0 %v3769
          %4549 = vmatpush.msra.mxu0 %v3766
          %v4550 = vand.u32 %v3729, 4294901760
          %4551 = vmatmul.f32.gmra.mxu0 %v4550
          %v4552 = vpop.f32.mrf.mxu0
          %v4553 = vadd.f32 %v4532, %v4552
          %4554 = vdwg.mxu0
          %v4555 = vld [vmem:[#allocation13] sm:$0xff]
          %v4556 = vld [vmem:[#allocation13 + $0x8] sm:$0xf]
          %v4557 = vld [vmem:[#allocation13 + $0xc] sm:$0xff]
          %v4558 = vld [vmem:[#allocation13 + $0x14] sm:$0xf]
          %v4559 = vld [vmem:[#allocation13 + $0x18] sm:$0xff]
          %v4560 = vld [vmem:[#allocation13 + $0x20] sm:$0xf]
          %v4561 = vld [vmem:[#allocation13 + $0x24] sm:$0xff]
          %v4562 = vld [vmem:[#allocation13 + $0x2c] sm:$0xf]
          %v4563 = vld [vmem:[#allocation13 + $0x30] sm:$0xff]
          %v4564 = vld [vmem:[#allocation13 + $0x38] sm:$0xf]
          %v4565 = vld [vmem:[#allocation13 + $0x3c] sm:$0xff]
          %v4566 = vld [vmem:[#allocation13 + $0x44] sm:$0xf]
          %v4567 = vld [vmem:[#allocation13 + $0x48] sm:$0xff]
          %v4568 = vld [vmem:[#allocation13 + $0x50] sm:$0xf]
          %v4569 = vld [vmem:[#allocation13 + $0x54] sm:$0xff]
          %v4570 = vld [vmem:[#allocation13 + $0x5c] sm:$0xf]
          %v4571 = vld [vmem:[#allocation13 + $0x60] sm:$0xff]
          %v4572 = vld [vmem:[#allocation13 + $0x68] sm:$0xf]
          %v4573 = vld [vmem:[#allocation13 + $0x6c] sm:$0xff]
          %v4574 = vld [vmem:[#allocation13 + $0x74] sm:$0xf]
          %v4575 = vld [vmem:[#allocation13 + $0x78] sm:$0xff]
          %v4576 = vld [vmem:[#allocation13 + $0x80] sm:$0xf]
          %v4577 = vld [vmem:[#allocation13 + $0x84] sm:$0xff]
          %v4578 = vld [vmem:[#allocation13 + $0x8c] sm:$0xf]
          %v4579 = vld [vmem:[#allocation13 + $0x90] sm:$0xff]
          %v4580 = vld [vmem:[#allocation13 + $0x98] sm:$0xf]
          %v4581 = vld [vmem:[#allocation13 + $0x9c] sm:$0xff]
          %v4582 = vld [vmem:[#allocation13 + $0xa4] sm:$0xf]
          %v4583 = vld [vmem:[#allocation13 + $0xa8] sm:$0xff]
          %v4584 = vld [vmem:[#allocation13 + $0xb0] sm:$0xf]
          %v4585 = vld [vmem:[#allocation13 + $0xb4] sm:$0xff]
          %v4586 = vld [vmem:[#allocation13 + $0xbc] sm:$0xf]
          %v4587 = vunpack.c.l.bf16 %v4555
          %v4588 = vunpack.c.h.bf16 %v4555
          %v4589 = vunpack.c.l.bf16 %v4556
          %v4590 = vunpack.c.l.bf16 %v4557
          %v4591 = vunpack.c.h.bf16 %v4557
          %v4592 = vunpack.c.l.bf16 %v4558
          %v4593 = vunpack.c.l.bf16 %v4559
          %v4594 = vunpack.c.h.bf16 %v4559
          %v4595 = vunpack.c.l.bf16 %v4560
          %v4596 = vunpack.c.l.bf16 %v4561
          %v4597 = vunpack.c.h.bf16 %v4561
          %v4598 = vunpack.c.l.bf16 %v4562
          %v4599 = vunpack.c.l.bf16 %v4563
          %v4600 = vunpack.c.h.bf16 %v4563
          %v4601 = vunpack.c.l.bf16 %v4564
          %v4602 = vunpack.c.l.bf16 %v4565
          %v4603 = vunpack.c.h.bf16 %v4565
          %v4604 = vunpack.c.l.bf16 %v4566
          %v4605 = vunpack.c.l.bf16 %v4567
          %v4606 = vunpack.c.h.bf16 %v4567
          %v4607 = vunpack.c.l.bf16 %v4568
          %v4608 = vunpack.c.l.bf16 %v4569
          %v4609 = vunpack.c.h.bf16 %v4569
          %v4610 = vunpack.c.l.bf16 %v4570
          %v4611 = vunpack.c.l.bf16 %v4571
          %v4612 = vunpack.c.h.bf16 %v4571
          %v4613 = vunpack.c.l.bf16 %v4572
          %v4614 = vunpack.c.l.bf16 %v4573
          %v4615 = vunpack.c.h.bf16 %v4573
          %v4616 = vunpack.c.l.bf16 %v4574
          %v4617 = vunpack.c.l.bf16 %v4575
          %v4618 = vunpack.c.h.bf16 %v4575
          %v4619 = vunpack.c.l.bf16 %v4576
          %v4620 = vunpack.c.l.bf16 %v4577
          %v4621 = vunpack.c.h.bf16 %v4577
          %v4622 = vunpack.c.l.bf16 %v4578
          %v4623 = vunpack.c.l.bf16 %v4579
          %v4624 = vunpack.c.h.bf16 %v4579
          %v4625 = vunpack.c.l.bf16 %v4580
          %v4626 = vunpack.c.l.bf16 %v4581
          %v4627 = vunpack.c.h.bf16 %v4581
          %v4628 = vunpack.c.l.bf16 %v4582
          %v4629 = vunpack.c.l.bf16 %v4583
          %v4630 = vunpack.c.h.bf16 %v4583
          %v4631 = vunpack.c.l.bf16 %v4584
          %v4632 = vunpack.c.l.bf16 %v4585
          %v4633 = vunpack.c.h.bf16 %v4585
          %v4634 = vunpack.c.l.bf16 %v4586
          %v4635 = vld [vmem:[%s14] sm:$0x7]
          %v4637 = vperm.slane %v4635, 0
          %v4638 = vperm.slane %v4635, 1
          %v4639 = vperm.slane %v4635, 2
          %4643 = vmatpush.msra.mxu0 %v4632
          %4644 = vmatpush.msra.mxu0 %v4629
          %4645 = vmatpush.msra.mxu0 %v4626
          %4646 = vmatpush.msra.mxu0 %v4623
          %4647 = vmatpush.msra.mxu0 %v4620
          %4648 = vmatpush.msra.mxu0 %v4617
          %4649 = vmatpush.msra.mxu0 %v4614
          %4650 = vmatpush.msra.mxu0 %v4611
          %4651 = vmatpush.msra.mxu0 %v4608
          %4652 = vmatpush.msra.mxu0 %v4605
          %4653 = vmatpush.msra.mxu0 %v4602
          %4654 = vmatpush.msra.mxu0 %v4599
          %4655 = vmatpush.msra.mxu0 %v4596
          %4656 = vmatpush.msra.mxu0 %v4593
          %4657 = vmatpush.msra.mxu0 %v4590
          %4658 = vmatpush.msra.mxu0 %v4587
          %v4659 = vand.u32 %v3731, 4294901760
          %v4660 = vsub.f32 %v3731, %v4659
          %v4661 = vand.u32 %v4660, 4294901760
          %v4662 = vsub.f32 %v4660, %v4661
          %v4663 = vand.u32 %v4662, 4294901760
          %4664 = vmatmul.f32.gmra.mxu0 %v4663
          %v4665 = vpop.f32.mrf.mxu0
          %v4666 = vadd.f32 %v4637, %v4665
          %4667 = vdwg.mxu0
          %v4668 = vsub.f32 %v4632, %v4632
          %v4669 = vand.u32 %v4668, 4294901760
          %v4670 = vsub.f32 %v4668, %v4669
          %v4671 = vand.u32 %v4670, 4294901760
          %4672 = vmatpush.msra.mxu0 %v4671
          %v4673 = vsub.f32 %v4629, %v4629
          %v4674 = vand.u32 %v4673, 4294901760
          %v4675 = vsub.f32 %v4673, %v4674
          %v4676 = vand.u32 %v4675, 4294901760
          %4677 = vmatpush.msra.mxu0 %v4676
          %v4678 = vsub.f32 %v4626, %v4626
          %v4679 = vand.u32 %v4678, 4294901760
          %v4680 = vsub.f32 %v4678, %v4679
          %v4681 = vand.u32 %v4680, 4294901760
          %4682 = vmatpush.msra.mxu0 %v4681
          %v4683 = vsub.f32 %v4623, %v4623
          %v4684 = vand.u32 %v4683, 4294901760
          %v4685 = vsub.f32 %v4683, %v4684
          %v4686 = vand.u32 %v4685, 4294901760
          %4687 = vmatpush.msra.mxu0 %v4686
          %v4688 = vsub.f32 %v4620, %v4620
          %v4689 = vand.u32 %v4688, 4294901760
          %v4690 = vsub.f32 %v4688, %v4689
          %v4691 = vand.u32 %v4690, 4294901760
          %4692 = vmatpush.msra.mxu0 %v4691
          %v4693 = vsub.f32 %v4617, %v4617
          %v4694 = vand.u32 %v4693, 4294901760
          %v4695 = vsub.f32 %v4693, %v4694
          %v4696 = vand.u32 %v4695, 4294901760
          %4697 = vmatpush.msra.mxu0 %v4696
          %v4698 = vsub.f32 %v4614, %v4614
          %v4699 = vand.u32 %v4698, 4294901760
          %v4700 = vsub.f32 %v4698, %v4699
          %v4701 = vand.u32 %v4700, 4294901760
          %4702 = vmatpush.msra.mxu0 %v4701
          %v4703 = vsub.f32 %v4611, %v4611
          %v4704 = vand.u32 %v4703, 4294901760
          %v4705 = vsub.f32 %v4703, %v4704
          %v4706 = vand.u32 %v4705, 4294901760
          %4707 = vmatpush.msra.mxu0 %v4706
          %v4708 = vsub.f32 %v4608, %v4608
          %v4709 = vand.u32 %v4708, 4294901760
          %v4710 = vsub.f32 %v4708, %v4709
          %v4711 = vand.u32 %v4710, 4294901760
          %4712 = vmatpush.msra.mxu0 %v4711
          %v4713 = vsub.f32 %v4605, %v4605
          %v4714 = vand.u32 %v4713, 4294901760
          %v4715 = vsub.f32 %v4713, %v4714
          %v4716 = vand.u32 %v4715, 4294901760
          %4717 = vmatpush.msra.mxu0 %v4716
          %v4718 = vsub.f32 %v4602, %v4602
          %v4719 = vand.u32 %v4718, 4294901760
          %v4720 = vsub.f32 %v4718, %v4719
          %v4721 = vand.u32 %v4720, 4294901760
          %4722 = vmatpush.msra.mxu0 %v4721
          %v4723 = vsub.f32 %v4599, %v4599
          %v4724 = vand.u32 %v4723, 4294901760
          %v4725 = vsub.f32 %v4723, %v4724
          %v4726 = vand.u32 %v4725, 4294901760
          %4727 = vmatpush.msra.mxu0 %v4726
          %v4728 = vsub.f32 %v4596, %v4596
          %v4729 = vand.u32 %v4728, 4294901760
          %v4730 = vsub.f32 %v4728, %v4729
          %v4731 = vand.u32 %v4730, 4294901760
          %4732 = vmatpush.msra.mxu0 %v4731
          %v4733 = vsub.f32 %v4593, %v4593
          %v4734 = vand.u32 %v4733, 4294901760
          %v4735 = vsub.f32 %v4733, %v4734
          %v4736 = vand.u32 %v4735, 4294901760
          %4737 = vmatpush.msra.mxu0 %v4736
          %v4738 = vsub.f32 %v4590, %v4590
          %v4739 = vand.u32 %v4738, 4294901760
          %v4740 = vsub.f32 %v4738, %v4739
          %v4741 = vand.u32 %v4740, 4294901760
          %4742 = vmatpush.msra.mxu0 %v4741
          %v4743 = vsub.f32 %v4587, %v4587
          %v4744 = vand.u32 %v4743, 4294901760
          %v4745 = vsub.f32 %v4743, %v4744
          %v4746 = vand.u32 %v4745, 4294901760
          %4747 = vmatpush.msra.mxu0 %v4746
          %v4748 = vand.u32 %v3731, 4294901760
          %4749 = vmatmul.f32.gmra.mxu0 %v4748
          %v4750 = vpop.f32.mrf.mxu0
          %v4751 = vadd.f32 %v4666, %v4750
          %4752 = vdwg.mxu0
          %v4753 = vsub.f32 %v4632, %v4632
          %4754 = vmatpush.msra.mxu0 %v4753
          %v4755 = vsub.f32 %v4629, %v4629
          %4756 = vmatpush.msra.mxu0 %v4755
          %v4757 = vsub.f32 %v4626, %v4626
          %4758 = vmatpush.msra.mxu0 %v4757
          %v4759 = vsub.f32 %v4623, %v4623
          %4760 = vmatpush.msra.mxu0 %v4759
          %v4761 = vsub.f32 %v4620, %v4620
          %4762 = vmatpush.msra.mxu0 %v4761
          %v4763 = vsub.f32 %v4617, %v4617
          %4764 = vmatpush.msra.mxu0 %v4763
          %v4765 = vsub.f32 %v4614, %v4614
          %4766 = vmatpush.msra.mxu0 %v4765
          %v4767 = vsub.f32 %v4611, %v4611
          %4768 = vmatpush.msra.mxu0 %v4767
          %v4769 = vsub.f32 %v4608, %v4608
          %4770 = vmatpush.msra.mxu0 %v4769
          %v4771 = vsub.f32 %v4605, %v4605
          %4772 = vmatpush.msra.mxu0 %v4771
          %v4773 = vsub.f32 %v4602, %v4602
          %4774 = vmatpush.msra.mxu0 %v4773
          %v4775 = vsub.f32 %v4599, %v4599
          %4776 = vmatpush.msra.mxu0 %v4775
          %v4777 = vsub.f32 %v4596, %v4596
          %4778 = vmatpush.msra.mxu0 %v4777
          %v4779 = vsub.f32 %v4593, %v4593
          %4780 = vmatpush.msra.mxu0 %v4779
          %v4781 = vsub.f32 %v4590, %v4590
          %4782 = vmatpush.msra.mxu0 %v4781
          %v4783 = vsub.f32 %v4587, %v4587
          %4784 = vmatpush.msra.mxu0 %v4783
          %v4785 = vand.u32 %v3731, 4294901760
          %v4786 = vsub.f32 %v3731, %v4785
          %4787 = vmatmul.f32.gmra.mxu0 %v4786
          %v4788 = vpop.f32.mrf.mxu0
          %v4789 = vadd.f32 %v4751, %v4788
          %4790 = vdwg.mxu0
          %4791 = vmatpush.msra.mxu0 %v4632
          %4792 = vmatpush.msra.mxu0 %v4629
          %4793 = vmatpush.msra.mxu0 %v4626
          %4794 = vmatpush.msra.mxu0 %v4623
          %4795 = vmatpush.msra.mxu0 %v4620
          %4796 = vmatpush.msra.mxu0 %v4617
          %4797 = vmatpush.msra.mxu0 %v4614
          %4798 = vmatpush.msra.mxu0 %v4611
          %4799 = vmatpush.msra.mxu0 %v4608
          %4800 = vmatpush.msra.mxu0 %v4605
          %4801 = vmatpush.msra.mxu0 %v4602
          %4802 = vmatpush.msra.mxu0 %v4599
          %4803 = vmatpush.msra.mxu0 %v4596
          %4804 = vmatpush.msra.mxu0 %v4593
          %4805 = vmatpush.msra.mxu0 %v4590
          %4806 = vmatpush.msra.mxu0 %v4587
          %v4807 = vand.u32 %v3731, 4294901760
          %v4808 = vsub.f32 %v3731, %v4807
          %v4809 = vand.u32 %v4808, 4294901760
          %4810 = vmatmul.f32.gmra.mxu0 %v4809
          %v4811 = vpop.f32.mrf.mxu0
          %v4812 = vadd.f32 %v4789, %v4811
          %4813 = vdwg.mxu0
          %v4814 = vsub.f32 %v4632, %v4632
          %v4815 = vand.u32 %v4814, 4294901760
          %4816 = vmatpush.msra.mxu0 %v4815
          %v4817 = vsub.f32 %v4629, %v4629
          %v4818 = vand.u32 %v4817, 4294901760
          %4819 = vmatpush.msra.mxu0 %v4818
          %v4820 = vsub.f32 %v4626, %v4626
          %v4821 = vand.u32 %v4820, 4294901760
          %4822 = vmatpush.msra.mxu0 %v4821
          %v4823 = vsub.f32 %v4623, %v4623
          %v4824 = vand.u32 %v4823, 4294901760
          %4825 = vmatpush.msra.mxu0 %v4824
          %v4826 = vsub.f32 %v4620, %v4620
          %v4827 = vand.u32 %v4826, 4294901760
          %4828 = vmatpush.msra.mxu0 %v4827
          %v4829 = vsub.f32 %v4617, %v4617
          %v4830 = vand.u32 %v4829, 4294901760
          %4831 = vmatpush.msra.mxu0 %v4830
          %v4832 = vsub.f32 %v4614, %v4614
          %v4833 = vand.u32 %v4832, 4294901760
          %4834 = vmatpush.msra.mxu0 %v4833
          %v4835 = vsub.f32 %v4611, %v4611
          %v4836 = vand.u32 %v4835, 4294901760
          %4837 = vmatpush.msra.mxu0 %v4836
          %v4838 = vsub.f32 %v4608, %v4608
          %v4839 = vand.u32 %v4838, 4294901760
          %4840 = vmatpush.msra.mxu0 %v4839
          %v4841 = vsub.f32 %v4605, %v4605
          %v4842 = vand.u32 %v4841, 4294901760
          %4843 = vmatpush.msra.mxu0 %v4842
          %v4844 = vsub.f32 %v4602, %v4602
          %v4845 = vand.u32 %v4844, 4294901760
          %4846 = vmatpush.msra.mxu0 %v4845
          %v4847 = vsub.f32 %v4599, %v4599
          %v4848 = vand.u32 %v4847, 4294901760
          %4849 = vmatpush.msra.mxu0 %v4848
          %v4850 = vsub.f32 %v4596, %v4596
          %v4851 = vand.u32 %v4850, 4294901760
          %4852 = vmatpush.msra.mxu0 %v4851
          %v4853 = vsub.f32 %v4593, %v4593
          %v4854 = vand.u32 %v4853, 4294901760
          %4855 = vmatpush.msra.mxu0 %v4854
          %v4856 = vsub.f32 %v4590, %v4590
          %v4857 = vand.u32 %v4856, 4294901760
          %4858 = vmatpush.msra.mxu0 %v4857
          %v4859 = vsub.f32 %v4587, %v4587
          %v4860 = vand.u32 %v4859, 4294901760
          %4861 = vmatpush.msra.mxu0 %v4860
          %v4862 = vand.u32 %v3731, 4294901760
          %4863 = vmatmul.f32.gmra.mxu0 %v4862
          %v4864 = vpop.f32.mrf.mxu0
          %v4865 = vadd.f32 %v4812, %v4864
          %4866 = vdwg.mxu0
          %4867 = vmatpush.msra.mxu0 %v4632
          %4868 = vmatpush.msra.mxu0 %v4629
          %4869 = vmatpush.msra.mxu0 %v4626
          %4870 = vmatpush.msra.mxu0 %v4623
          %4871 = vmatpush.msra.mxu0 %v4620
          %4872 = vmatpush.msra.mxu0 %v4617
          %4873 = vmatpush.msra.mxu0 %v4614
          %4874 = vmatpush.msra.mxu0 %v4611
          %4875 = vmatpush.msra.mxu0 %v4608
          %4876 = vmatpush.msra.mxu0 %v4605
          %4877 = vmatpush.msra.mxu0 %v4602
          %4878 = vmatpush.msra.mxu0 %v4599
          %4879 = vmatpush.msra.mxu0 %v4596
          %4880 = vmatpush.msra.mxu0 %v4593
          %4881 = vmatpush.msra.mxu0 %v4590
          %4882 = vmatpush.msra.mxu0 %v4587
          %v4883 = vand.u32 %v3731, 4294901760
          %4884 = vmatmul.f32.gmra.mxu0 %v4883
          %v4885 = vpop.f32.mrf.mxu0
          %v4886 = vadd.f32 %v4865, %v4885
          %4887 = vdwg.mxu0
          %4888 = vmatpush.msra.mxu0 %v4633
          %4889 = vmatpush.msra.mxu0 %v4630
          %4890 = vmatpush.msra.mxu0 %v4627
          %4891 = vmatpush.msra.mxu0 %v4624
          %4892 = vmatpush.msra.mxu0 %v4621
          %4893 = vmatpush.msra.mxu0 %v4618
          %4894 = vmatpush.msra.mxu0 %v4615
          %4895 = vmatpush.msra.mxu0 %v4612
          %4896 = vmatpush.msra.mxu0 %v4609
          %4897 = vmatpush.msra.mxu0 %v4606
          %4898 = vmatpush.msra.mxu0 %v4603
          %4899 = vmatpush.msra.mxu0 %v4600
          %4900 = vmatpush.msra.mxu0 %v4597
          %4901 = vmatpush.msra.mxu0 %v4594
          %4902 = vmatpush.msra.mxu0 %v4591
          %4903 = vmatpush.msra.mxu0 %v4588
          %v4904 = vand.u32 %v3731, 4294901760
          %v4905 = vsub.f32 %v3731, %v4904
          %v4906 = vand.u32 %v4905, 4294901760
          %v4907 = vsub.f32 %v4905, %v4906
          %v4908 = vand.u32 %v4907, 4294901760
          %4909 = vmatmul.f32.gmra.mxu0 %v4908
          %v4910 = vpop.f32.mrf.mxu0
          %v4911 = vadd.f32 %v4638, %v4910
          %4912 = vdwg.mxu0
          %v4913 = vsub.f32 %v4633, %v4633
          %v4914 = vand.u32 %v4913, 4294901760
          %v4915 = vsub.f32 %v4913, %v4914
          %v4916 = vand.u32 %v4915, 4294901760
          %4917 = vmatpush.msra.mxu0 %v4916
          %v4918 = vsub.f32 %v4630, %v4630
          %v4919 = vand.u32 %v4918, 4294901760
          %v4920 = vsub.f32 %v4918, %v4919
          %v4921 = vand.u32 %v4920, 4294901760
          %4922 = vmatpush.msra.mxu0 %v4921
          %v4923 = vsub.f32 %v4627, %v4627
          %v4924 = vand.u32 %v4923, 4294901760
          %v4925 = vsub.f32 %v4923, %v4924
          %v4926 = vand.u32 %v4925, 4294901760
          %4927 = vmatpush.msra.mxu0 %v4926
          %v4928 = vsub.f32 %v4624, %v4624
          %v4929 = vand.u32 %v4928, 4294901760
          %v4930 = vsub.f32 %v4928, %v4929
          %v4931 = vand.u32 %v4930, 4294901760
          %4932 = vmatpush.msra.mxu0 %v4931
          %v4933 = vsub.f32 %v4621, %v4621
          %v4934 = vand.u32 %v4933, 4294901760
          %v4935 = vsub.f32 %v4933, %v4934
          %v4936 = vand.u32 %v4935, 4294901760
          %4937 = vmatpush.msra.mxu0 %v4936
          %v4938 = vsub.f32 %v4618, %v4618
          %v4939 = vand.u32 %v4938, 4294901760
          %v4940 = vsub.f32 %v4938, %v4939
          %v4941 = vand.u32 %v4940, 4294901760
          %4942 = vmatpush.msra.mxu0 %v4941
          %v4943 = vsub.f32 %v4615, %v4615
          %v4944 = vand.u32 %v4943, 4294901760
          %v4945 = vsub.f32 %v4943, %v4944
          %v4946 = vand.u32 %v4945, 4294901760
          %4947 = vmatpush.msra.mxu0 %v4946
          %v4948 = vsub.f32 %v4612, %v4612
          %v4949 = vand.u32 %v4948, 4294901760
          %v4950 = vsub.f32 %v4948, %v4949
          %v4951 = vand.u32 %v4950, 4294901760
          %4952 = vmatpush.msra.mxu0 %v4951
          %v4953 = vsub.f32 %v4609, %v4609
          %v4954 = vand.u32 %v4953, 4294901760
          %v4955 = vsub.f32 %v4953, %v4954
          %v4956 = vand.u32 %v4955, 4294901760
          %4957 = vmatpush.msra.mxu0 %v4956
          %v4958 = vsub.f32 %v4606, %v4606
          %v4959 = vand.u32 %v4958, 4294901760
          %v4960 = vsub.f32 %v4958, %v4959
          %v4961 = vand.u32 %v4960, 4294901760
          %4962 = vmatpush.msra.mxu0 %v4961
          %v4963 = vsub.f32 %v4603, %v4603
          %v4964 = vand.u32 %v4963, 4294901760
          %v4965 = vsub.f32 %v4963, %v4964
          %v4966 = vand.u32 %v4965, 4294901760
          %4967 = vmatpush.msra.mxu0 %v4966
          %v4968 = vsub.f32 %v4600, %v4600
          %v4969 = vand.u32 %v4968, 4294901760
          %v4970 = vsub.f32 %v4968, %v4969
          %v4971 = vand.u32 %v4970, 4294901760
          %4972 = vmatpush.msra.mxu0 %v4971
          %v4973 = vsub.f32 %v4597, %v4597
          %v4974 = vand.u32 %v4973, 4294901760
          %v4975 = vsub.f32 %v4973, %v4974
          %v4976 = vand.u32 %v4975, 4294901760
          %4977 = vmatpush.msra.mxu0 %v4976
          %v4978 = vsub.f32 %v4594, %v4594
          %v4979 = vand.u32 %v4978, 4294901760
          %v4980 = vsub.f32 %v4978, %v4979
          %v4981 = vand.u32 %v4980, 4294901760
          %4982 = vmatpush.msra.mxu0 %v4981
          %v4983 = vsub.f32 %v4591, %v4591
          %v4984 = vand.u32 %v4983, 4294901760
          %v4985 = vsub.f32 %v4983, %v4984
          %v4986 = vand.u32 %v4985, 4294901760
          %4987 = vmatpush.msra.mxu0 %v4986
          %v4988 = vsub.f32 %v4588, %v4588
          %v4989 = vand.u32 %v4988, 4294901760
          %v4990 = vsub.f32 %v4988, %v4989
          %v4991 = vand.u32 %v4990, 4294901760
          %4992 = vmatpush.msra.mxu0 %v4991
          %v4993 = vand.u32 %v3731, 4294901760
          %4994 = vmatmul.f32.gmra.mxu0 %v4993
          %v4995 = vpop.f32.mrf.mxu0
          %v4996 = vadd.f32 %v4911, %v4995
          %4997 = vdwg.mxu0
          %v4998 = vsub.f32 %v4633, %v4633
          %4999 = vmatpush.msra.mxu0 %v4998
          %v5000 = vsub.f32 %v4630, %v4630
          %5001 = vmatpush.msra.mxu0 %v5000
          %v5002 = vsub.f32 %v4627, %v4627
          %5003 = vmatpush.msra.mxu0 %v5002
          %v5004 = vsub.f32 %v4624, %v4624
          %5005 = vmatpush.msra.mxu0 %v5004
          %v5006 = vsub.f32 %v4621, %v4621
          %5007 = vmatpush.msra.mxu0 %v5006
          %v5008 = vsub.f32 %v4618, %v4618
          %5009 = vmatpush.msra.mxu0 %v5008
          %v5010 = vsub.f32 %v4615, %v4615
          %5011 = vmatpush.msra.mxu0 %v5010
          %v5012 = vsub.f32 %v4612, %v4612
          %5013 = vmatpush.msra.mxu0 %v5012
          %v5014 = vsub.f32 %v4609, %v4609
          %5015 = vmatpush.msra.mxu0 %v5014
          %v5016 = vsub.f32 %v4606, %v4606
          %5017 = vmatpush.msra.mxu0 %v5016
          %v5018 = vsub.f32 %v4603, %v4603
          %5019 = vmatpush.msra.mxu0 %v5018
          %v5020 = vsub.f32 %v4600, %v4600
          %5021 = vmatpush.msra.mxu0 %v5020
          %v5022 = vsub.f32 %v4597, %v4597
          %5023 = vmatpush.msra.mxu0 %v5022
          %v5024 = vsub.f32 %v4594, %v4594
          %5025 = vmatpush.msra.mxu0 %v5024
          %v5026 = vsub.f32 %v4591, %v4591
          %5027 = vmatpush.msra.mxu0 %v5026
          %v5028 = vsub.f32 %v4588, %v4588
          %5029 = vmatpush.msra.mxu0 %v5028
          %v5030 = vand.u32 %v3731, 4294901760
          %v5031 = vsub.f32 %v3731, %v5030
          %5032 = vmatmul.f32.gmra.mxu0 %v5031
          %v5033 = vpop.f32.mrf.mxu0
          %v5034 = vadd.f32 %v4996, %v5033
          %5035 = vdwg.mxu0
          %5036 = vmatpush.msra.mxu0 %v4633
          %5037 = vmatpush.msra.mxu0 %v4630
          %5038 = vmatpush.msra.mxu0 %v4627
          %5039 = vmatpush.msra.mxu0 %v4624
          %5040 = vmatpush.msra.mxu0 %v4621
          %5041 = vmatpush.msra.mxu0 %v4618
          %5042 = vmatpush.msra.mxu0 %v4615
          %5043 = vmatpush.msra.mxu0 %v4612
          %5044 = vmatpush.msra.mxu0 %v4609
          %5045 = vmatpush.msra.mxu0 %v4606
          %5046 = vmatpush.msra.mxu0 %v4603
          %5047 = vmatpush.msra.mxu0 %v4600
          %5048 = vmatpush.msra.mxu0 %v4597
          %5049 = vmatpush.msra.mxu0 %v4594
          %5050 = vmatpush.msra.mxu0 %v4591
          %5051 = vmatpush.msra.mxu0 %v4588
          %v5052 = vand.u32 %v3731, 4294901760
          %v5053 = vsub.f32 %v3731, %v5052
          %v5054 = vand.u32 %v5053, 4294901760
          %5055 = vmatmul.f32.gmra.mxu0 %v5054
          %v5056 = vpop.f32.mrf.mxu0
          %v5057 = vadd.f32 %v5034, %v5056
          %5058 = vdwg.mxu0
          %v5059 = vsub.f32 %v4633, %v4633
          %v5060 = vand.u32 %v5059, 4294901760
          %5061 = vmatpush.msra.mxu0 %v5060
          %v5062 = vsub.f32 %v4630, %v4630
          %v5063 = vand.u32 %v5062, 4294901760
          %5064 = vmatpush.msra.mxu0 %v5063
          %v5065 = vsub.f32 %v4627, %v4627
          %v5066 = vand.u32 %v5065, 4294901760
          %5067 = vmatpush.msra.mxu0 %v5066
          %v5068 = vsub.f32 %v4624, %v4624
          %v5069 = vand.u32 %v5068, 4294901760
          %5070 = vmatpush.msra.mxu0 %v5069
          %v5071 = vsub.f32 %v4621, %v4621
          %v5072 = vand.u32 %v5071, 4294901760
          %5073 = vmatpush.msra.mxu0 %v5072
          %v5074 = vsub.f32 %v4618, %v4618
          %v5075 = vand.u32 %v5074, 4294901760
          %5076 = vmatpush.msra.mxu0 %v5075
          %v5077 = vsub.f32 %v4615, %v4615
          %v5078 = vand.u32 %v5077, 4294901760
          %5079 = vmatpush.msra.mxu0 %v5078
          %v5080 = vsub.f32 %v4612, %v4612
          %v5081 = vand.u32 %v5080, 4294901760
          %5082 = vmatpush.msra.mxu0 %v5081
          %v5083 = vsub.f32 %v4609, %v4609
          %v5084 = vand.u32 %v5083, 4294901760
          %5085 = vmatpush.msra.mxu0 %v5084
          %v5086 = vsub.f32 %v4606, %v4606
          %v5087 = vand.u32 %v5086, 4294901760
          %5088 = vmatpush.msra.mxu0 %v5087
          %v5089 = vsub.f32 %v4603, %v4603
          %v5090 = vand.u32 %v5089, 4294901760
          %5091 = vmatpush.msra.mxu0 %v5090
          %v5092 = vsub.f32 %v4600, %v4600
          %v5093 = vand.u32 %v5092, 4294901760
          %5094 = vmatpush.msra.mxu0 %v5093
          %v5095 = vsub.f32 %v4597, %v4597
          %v5096 = vand.u32 %v5095, 4294901760
          %5097 = vmatpush.msra.mxu0 %v5096
          %v5098 = vsub.f32 %v4594, %v4594
          %v5099 = vand.u32 %v5098, 4294901760
          %5100 = vmatpush.msra.mxu0 %v5099
          %v5101 = vsub.f32 %v4591, %v4591
          %v5102 = vand.u32 %v5101, 4294901760
          %5103 = vmatpush.msra.mxu0 %v5102
          %v5104 = vsub.f32 %v4588, %v4588
          %v5105 = vand.u32 %v5104, 4294901760
          %5106 = vmatpush.msra.mxu0 %v5105
          %v5107 = vand.u32 %v3731, 4294901760
          %5108 = vmatmul.f32.gmra.mxu0 %v5107
          %v5109 = vpop.f32.mrf.mxu0
          %v5110 = vadd.f32 %v5057, %v5109
          %5111 = vdwg.mxu0
          %5112 = vmatpush.msra.mxu0 %v4633
          %5113 = vmatpush.msra.mxu0 %v4630
          %5114 = vmatpush.msra.mxu0 %v4627
          %5115 = vmatpush.msra.mxu0 %v4624
          %5116 = vmatpush.msra.mxu0 %v4621
          %5117 = vmatpush.msra.mxu0 %v4618
          %5118 = vmatpush.msra.mxu0 %v4615
          %5119 = vmatpush.msra.mxu0 %v4612
          %5120 = vmatpush.msra.mxu0 %v4609
          %5121 = vmatpush.msra.mxu0 %v4606
          %5122 = vmatpush.msra.mxu0 %v4603
          %5123 = vmatpush.msra.mxu0 %v4600
          %5124 = vmatpush.msra.mxu0 %v4597
          %5125 = vmatpush.msra.mxu0 %v4594
          %5126 = vmatpush.msra.mxu0 %v4591
          %5127 = vmatpush.msra.mxu0 %v4588
          %v5128 = vand.u32 %v3731, 4294901760
          %5129 = vmatmul.f32.gmra.mxu0 %v5128
          %v5130 = vpop.f32.mrf.mxu0
          %v5131 = vadd.f32 %v5110, %v5130
          %5132 = vdwg.mxu0
          %5133 = vmatpush.msra.mxu0 %v4634
          %5134 = vmatpush.msra.mxu0 %v4631
          %5135 = vmatpush.msra.mxu0 %v4628
          %5136 = vmatpush.msra.mxu0 %v4625
          %5137 = vmatpush.msra.mxu0 %v4622
          %5138 = vmatpush.msra.mxu0 %v4619
          %5139 = vmatpush.msra.mxu0 %v4616
          %5140 = vmatpush.msra.mxu0 %v4613
          %5141 = vmatpush.msra.mxu0 %v4610
          %5142 = vmatpush.msra.mxu0 %v4607
          %5143 = vmatpush.msra.mxu0 %v4604
          %5144 = vmatpush.msra.mxu0 %v4601
          %5145 = vmatpush.msra.mxu0 %v4598
          %5146 = vmatpush.msra.mxu0 %v4595
          %5147 = vmatpush.msra.mxu0 %v4592
          %5148 = vmatpush.msra.mxu0 %v4589
          %v5149 = vand.u32 %v3731, 4294901760
          %v5150 = vsub.f32 %v3731, %v5149
          %v5151 = vand.u32 %v5150, 4294901760
          %v5152 = vsub.f32 %v5150, %v5151
          %v5153 = vand.u32 %v5152, 4294901760
          %5154 = vmatmul.f32.gmra.mxu0 %v5153
          %v5155 = vpop.f32.mrf.mxu0
          %v5156 = vadd.f32 %v4639, %v5155
          %5157 = vdwg.mxu0
          %v5158 = vsub.f32 %v4634, %v4634
          %v5159 = vand.u32 %v5158, 4294901760
          %v5160 = vsub.f32 %v5158, %v5159
          %v5161 = vand.u32 %v5160, 4294901760
          %5162 = vmatpush.msra.mxu0 %v5161
          %v5163 = vsub.f32 %v4631, %v4631
          %v5164 = vand.u32 %v5163, 4294901760
          %v5165 = vsub.f32 %v5163, %v5164
          %v5166 = vand.u32 %v5165, 4294901760
          %5167 = vmatpush.msra.mxu0 %v5166
          %v5168 = vsub.f32 %v4628, %v4628
          %v5169 = vand.u32 %v5168, 4294901760
          %v5170 = vsub.f32 %v5168, %v5169
          %v5171 = vand.u32 %v5170, 4294901760
          %5172 = vmatpush.msra.mxu0 %v5171
          %v5173 = vsub.f32 %v4625, %v4625
          %v5174 = vand.u32 %v5173, 4294901760
          %v5175 = vsub.f32 %v5173, %v5174
          %v5176 = vand.u32 %v5175, 4294901760
          %5177 = vmatpush.msra.mxu0 %v5176
          %v5178 = vsub.f32 %v4622, %v4622
          %v5179 = vand.u32 %v5178, 4294901760
          %v5180 = vsub.f32 %v5178, %v5179
          %v5181 = vand.u32 %v5180, 4294901760
          %5182 = vmatpush.msra.mxu0 %v5181
          %v5183 = vsub.f32 %v4619, %v4619
          %v5184 = vand.u32 %v5183, 4294901760
          %v5185 = vsub.f32 %v5183, %v5184
          %v5186 = vand.u32 %v5185, 4294901760
          %5187 = vmatpush.msra.mxu0 %v5186
          %v5188 = vsub.f32 %v4616, %v4616
          %v5189 = vand.u32 %v5188, 4294901760
          %v5190 = vsub.f32 %v5188, %v5189
          %v5191 = vand.u32 %v5190, 4294901760
          %5192 = vmatpush.msra.mxu0 %v5191
          %v5193 = vsub.f32 %v4613, %v4613
          %v5194 = vand.u32 %v5193, 4294901760
          %v5195 = vsub.f32 %v5193, %v5194
          %v5196 = vand.u32 %v5195, 4294901760
          %5197 = vmatpush.msra.mxu0 %v5196
          %v5198 = vsub.f32 %v4610, %v4610
          %v5199 = vand.u32 %v5198, 4294901760
          %v5200 = vsub.f32 %v5198, %v5199
          %v5201 = vand.u32 %v5200, 4294901760
          %5202 = vmatpush.msra.mxu0 %v5201
          %v5203 = vsub.f32 %v4607, %v4607
          %v5204 = vand.u32 %v5203, 4294901760
          %v5205 = vsub.f32 %v5203, %v5204
          %v5206 = vand.u32 %v5205, 4294901760
          %5207 = vmatpush.msra.mxu0 %v5206
          %v5208 = vsub.f32 %v4604, %v4604
          %v5209 = vand.u32 %v5208, 4294901760
          %v5210 = vsub.f32 %v5208, %v5209
          %v5211 = vand.u32 %v5210, 4294901760
          %5212 = vmatpush.msra.mxu0 %v5211
          %v5213 = vsub.f32 %v4601, %v4601
          %v5214 = vand.u32 %v5213, 4294901760
          %v5215 = vsub.f32 %v5213, %v5214
          %v5216 = vand.u32 %v5215, 4294901760
          %5217 = vmatpush.msra.mxu0 %v5216
          %v5218 = vsub.f32 %v4598, %v4598
          %v5219 = vand.u32 %v5218, 4294901760
          %v5220 = vsub.f32 %v5218, %v5219
          %v5221 = vand.u32 %v5220, 4294901760
          %5222 = vmatpush.msra.mxu0 %v5221
          %v5223 = vsub.f32 %v4595, %v4595
          %v5224 = vand.u32 %v5223, 4294901760
          %v5225 = vsub.f32 %v5223, %v5224
          %v5226 = vand.u32 %v5225, 4294901760
          %5227 = vmatpush.msra.mxu0 %v5226
          %v5228 = vsub.f32 %v4592, %v4592
          %v5229 = vand.u32 %v5228, 4294901760
          %v5230 = vsub.f32 %v5228, %v5229
          %v5231 = vand.u32 %v5230, 4294901760
          %5232 = vmatpush.msra.mxu0 %v5231
          %v5233 = vsub.f32 %v4589, %v4589
          %v5234 = vand.u32 %v5233, 4294901760
          %v5235 = vsub.f32 %v5233, %v5234
          %v5236 = vand.u32 %v5235, 4294901760
          %5237 = vmatpush.msra.mxu0 %v5236
          %v5238 = vand.u32 %v3731, 4294901760
          %5239 = vmatmul.f32.gmra.mxu0 %v5238
          %v5240 = vpop.f32.mrf.mxu0
          %v5241 = vadd.f32 %v5156, %v5240
          %5242 = vdwg.mxu0
          %v5243 = vsub.f32 %v4634, %v4634
          %5244 = vmatpush.msra.mxu0 %v5243
          %v5245 = vsub.f32 %v4631, %v4631
          %5246 = vmatpush.msra.mxu0 %v5245
          %v5247 = vsub.f32 %v4628, %v4628
          %5248 = vmatpush.msra.mxu0 %v5247
          %v5249 = vsub.f32 %v4625, %v4625
          %5250 = vmatpush.msra.mxu0 %v5249
          %v5251 = vsub.f32 %v4622, %v4622
          %5252 = vmatpush.msra.mxu0 %v5251
          %v5253 = vsub.f32 %v4619, %v4619
          %5254 = vmatpush.msra.mxu0 %v5253
          %v5255 = vsub.f32 %v4616, %v4616
          %5256 = vmatpush.msra.mxu0 %v5255
          %v5257 = vsub.f32 %v4613, %v4613
          %5258 = vmatpush.msra.mxu0 %v5257
          %v5259 = vsub.f32 %v4610, %v4610
          %5260 = vmatpush.msra.mxu0 %v5259
          %v5261 = vsub.f32 %v4607, %v4607
          %5262 = vmatpush.msra.mxu0 %v5261
          %v5263 = vsub.f32 %v4604, %v4604
          %5264 = vmatpush.msra.mxu0 %v5263
          %v5265 = vsub.f32 %v4601, %v4601
          %5266 = vmatpush.msra.mxu0 %v5265
          %v5267 = vsub.f32 %v4598, %v4598
          %5268 = vmatpush.msra.mxu0 %v5267
          %v5269 = vsub.f32 %v4595, %v4595
          %5270 = vmatpush.msra.mxu0 %v5269
          %v5271 = vsub.f32 %v4592, %v4592
          %5272 = vmatpush.msra.mxu0 %v5271
          %v5273 = vsub.f32 %v4589, %v4589
          %5274 = vmatpush.msra.mxu0 %v5273
          %v5275 = vand.u32 %v3731, 4294901760
          %v5276 = vsub.f32 %v3731, %v5275
          %5277 = vmatmul.f32.gmra.mxu0 %v5276
          %v5278 = vpop.f32.mrf.mxu0
          %v5279 = vadd.f32 %v5241, %v5278
          %5280 = vdwg.mxu0
          %5281 = vmatpush.msra.mxu0 %v4634
          %5282 = vmatpush.msra.mxu0 %v4631
          %5283 = vmatpush.msra.mxu0 %v4628
          %5284 = vmatpush.msra.mxu0 %v4625
          %5285 = vmatpush.msra.mxu0 %v4622
          %5286 = vmatpush.msra.mxu0 %v4619
          %5287 = vmatpush.msra.mxu0 %v4616
          %5288 = vmatpush.msra.mxu0 %v4613
          %5289 = vmatpush.msra.mxu0 %v4610
          %5290 = vmatpush.msra.mxu0 %v4607
          %5291 = vmatpush.msra.mxu0 %v4604
          %5292 = vmatpush.msra.mxu0 %v4601
          %5293 = vmatpush.msra.mxu0 %v4598
          %5294 = vmatpush.msra.mxu0 %v4595
          %5295 = vmatpush.msra.mxu0 %v4592
          %5296 = vmatpush.msra.mxu0 %v4589
          %v5297 = vand.u32 %v3731, 4294901760
          %v5298 = vsub.f32 %v3731, %v5297
          %v5299 = vand.u32 %v5298, 4294901760
          %5300 = vmatmul.f32.gmra.mxu0 %v5299
          %v5301 = vpop.f32.mrf.mxu0
          %v5302 = vadd.f32 %v5279, %v5301
          %5303 = vdwg.mxu0
          %v5304 = vsub.f32 %v4634, %v4634
          %v5305 = vand.u32 %v5304, 4294901760
          %5306 = vmatpush.msra.mxu0 %v5305
          %v5307 = vsub.f32 %v4631, %v4631
          %v5308 = vand.u32 %v5307, 4294901760
          %5309 = vmatpush.msra.mxu0 %v5308
          %v5310 = vsub.f32 %v4628, %v4628
          %v5311 = vand.u32 %v5310, 4294901760
          %5312 = vmatpush.msra.mxu0 %v5311
          %v5313 = vsub.f32 %v4625, %v4625
          %v5314 = vand.u32 %v5313, 4294901760
          %5315 = vmatpush.msra.mxu0 %v5314
          %v5316 = vsub.f32 %v4622, %v4622
          %v5317 = vand.u32 %v5316, 4294901760
          %5318 = vmatpush.msra.mxu0 %v5317
          %v5319 = vsub.f32 %v4619, %v4619
          %v5320 = vand.u32 %v5319, 4294901760
          %5321 = vmatpush.msra.mxu0 %v5320
          %v5322 = vsub.f32 %v4616, %v4616
          %v5323 = vand.u32 %v5322, 4294901760
          %5324 = vmatpush.msra.mxu0 %v5323
          %v5325 = vsub.f32 %v4613, %v4613
          %v5326 = vand.u32 %v5325, 4294901760
          %5327 = vmatpush.msra.mxu0 %v5326
          %v5328 = vsub.f32 %v4610, %v4610
          %v5329 = vand.u32 %v5328, 4294901760
          %5330 = vmatpush.msra.mxu0 %v5329
          %v5331 = vsub.f32 %v4607, %v4607
          %v5332 = vand.u32 %v5331, 4294901760
          %5333 = vmatpush.msra.mxu0 %v5332
          %v5334 = vsub.f32 %v4604, %v4604
          %v5335 = vand.u32 %v5334, 4294901760
          %5336 = vmatpush.msra.mxu0 %v5335
          %v5337 = vsub.f32 %v4601, %v4601
          %v5338 = vand.u32 %v5337, 4294901760
          %5339 = vmatpush.msra.mxu0 %v5338
          %v5340 = vsub.f32 %v4598, %v4598
          %v5341 = vand.u32 %v5340, 4294901760
          %5342 = vmatpush.msra.mxu0 %v5341
          %v5343 = vsub.f32 %v4595, %v4595
          %v5344 = vand.u32 %v5343, 4294901760
          %5345 = vmatpush.msra.mxu0 %v5344
          %v5346 = vsub.f32 %v4592, %v4592
          %v5347 = vand.u32 %v5346, 4294901760
          %5348 = vmatpush.msra.mxu0 %v5347
          %v5349 = vsub.f32 %v4589, %v4589
          %v5350 = vand.u32 %v5349, 4294901760
          %5351 = vmatpush.msra.mxu0 %v5350
          %v5352 = vand.u32 %v3731, 4294901760
          %5353 = vmatmul.f32.gmra.mxu0 %v5352
          %v5354 = vpop.f32.mrf.mxu0
          %v5355 = vadd.f32 %v5302, %v5354
          %5356 = vdwg.mxu0
          %5357 = vmatpush.msra.mxu0 %v4634
          %5358 = vmatpush.msra.mxu0 %v4631
          %5359 = vmatpush.msra.mxu0 %v4628
          %5360 = vmatpush.msra.mxu0 %v4625
          %5361 = vmatpush.msra.mxu0 %v4622
          %5362 = vmatpush.msra.mxu0 %v4619
          %5363 = vmatpush.msra.mxu0 %v4616
          %5364 = vmatpush.msra.mxu0 %v4613
          %5365 = vmatpush.msra.mxu0 %v4610
          %5366 = vmatpush.msra.mxu0 %v4607
          %5367 = vmatpush.msra.mxu0 %v4604
          %5368 = vmatpush.msra.mxu0 %v4601
          %5369 = vmatpush.msra.mxu0 %v4598
          %5370 = vmatpush.msra.mxu0 %v4595
          %5371 = vmatpush.msra.mxu0 %v4592
          %5372 = vmatpush.msra.mxu0 %v4589
          %v5373 = vand.u32 %v3731, 4294901760
          %5374 = vmatmul.f32.gmra.mxu0 %v5373
          %v5375 = vpop.f32.mrf.mxu0
          %v5376 = vadd.f32 %v5355, %v5375
          %5377 = vdwg.mxu0
          %v5378 = vadd.f32 %v4063, %v4886
          %v5379 = vxor.u32 %v5378, 2147483648
          %v5380 = vmul.f32 %v5379, 1.442695
          %v5381 = vpow.pop %v5380
          %v5382 = vadd.f32 %v5381, 1.0
          %v5383 = vrcp.pop %v5382
          %v5384 = vmul.f32 %v5382, %v5383
          %v5385 = vsub.f32 1.0, %v5384
          %v5386 = vmul.f32 %v5383, %v5385
          %v5387 = vadd.f32 %v5383, %v5386
          %vm5388 = vweird.f32 %v5382
          %vm5389 = vweird.f32 %v5383
          %vm5390 = vmor %vm5388, %vm5389
          %v5391 = vsel %vm5390, %v5383, %v5387
          %v5392 = vand.u32 2147483647, %v5382
          %vm5393 = vcmp.eq.f32.partialorder %v5392, 8.507059e+37
          %v5394 = vand.u32 %v5382, 2147483648
          %v5395 = vor.u32 1.1754944e-38, %v5394
          %v5396 = vsel %vm5393, %v5395, %v5391
          %v5397 = vmul.f32 1.0, %v5396
          %v5398 = vadd.f32 %v4308, %v5131
          %v5399 = vxor.u32 %v5398, 2147483648
          %v5400 = vmul.f32 %v5399, 1.442695
          %v5401 = vpow.pop %v5400
          %v5402 = vadd.f32 %v5401, 1.0
          %v5403 = vrcp.pop %v5402
          %v5404 = vmul.f32 %v5402, %v5403
          %v5405 = vsub.f32 1.0, %v5404
          %v5406 = vmul.f32 %v5403, %v5405
          %v5407 = vadd.f32 %v5403, %v5406
          %vm5408 = vweird.f32 %v5402
          %vm5409 = vweird.f32 %v5403
          %vm5410 = vmor %vm5408, %vm5409
          %v5411 = vsel %vm5410, %v5403, %v5407
          %v5412 = vand.u32 2147483647, %v5402
          %vm5413 = vcmp.eq.f32.partialorder %v5412, 8.507059e+37
          %v5414 = vand.u32 %v5402, 2147483648
          %v5415 = vor.u32 1.1754944e-38, %v5414
          %v5416 = vsel %vm5413, %v5415, %v5411
          %v5417 = vmul.f32 1.0, %v5416
          %v5418 = vmul.f32 %v5397, %v5376
          %v5419 = vadd.f32 %v4553, %v5418
          %v5420 = vtanh.pop %v5419
          %v5421 = vsub.f32 1.0, %v5417
          %v5422 = vmul.f32 %v5421, %v5420
          %v5423 = vmul.f32 %v5417, %v3731
          %v5424 = vadd.f32 %v5422, %v5423
          %5425 = vst [vmem:[%s729] sm:$0xff] %v5424
          %s5426 = scalar_lea.vmem [#allocation3], %s718
          %5427 = vst [vmem:[%s5426] sm:$0xff] %v5424
          %v5428 = vld [vmem:[#allocation2] sm:$0xff]
          %v5429 = vld [vmem:[#allocation2 + $0x8] sm:$0xff]
          %5430 = vst [vmem:[%s18] sm:$0xff] %v5428
          %5431 = vst [vmem:[%s18 + $0x8] sm:$0xff] %v5429
        $region120: #{decoder_forward.1} parent=87 // pred_fallthru
          _
        %s5432 = smul.u32 %s45, 8
        %s5433 = scalar_lea.vmem [#allocation3], %s5432
        %v5434 = vld [vmem:[%s5433] sm:$0xff]
        %v5435 = vld [vmem:[%s645] sm:$0xf]
        %v5436 = vld [vmem:[%s645 + $0x4] sm:$0xf]
        %v5437 = vld [vmem:[%s645 + $0x8] sm:$0xf]
        %v5438 = vld [vmem:[%s645 + $0xc] sm:$0xf]
        %v5439 = vld [vmem:[%s645 + $0x10] sm:$0xf]
        %v5440 = vld [vmem:[%s645 + $0x14] sm:$0xf]
        %v5441 = vld [vmem:[%s645 + $0x18] sm:$0xf]
        %v5442 = vld [vmem:[%s645 + $0x1c] sm:$0xf]
        %v5443 = vld [vmem:[%s645 + $0x20] sm:$0xf]
        %v5444 = vld [vmem:[%s645 + $0x24] sm:$0xf]
        %v5445 = vld [vmem:[%s645 + $0x28] sm:$0xf]
        %v5446 = vld [vmem:[%s645 + $0x2c] sm:$0xf]
        %v5447 = vld [vmem:[%s645 + $0x30] sm:$0xf]
        %v5448 = vld [vmem:[%s645 + $0x34] sm:$0xf]
        %v5449 = vld [vmem:[%s645 + $0x38] sm:$0xf]
        %v5450 = vld [vmem:[%s645 + $0x3c] sm:$0xf]
        %v5451 = vunpack.c.l.bf16 %v5435
        %v5452 = vunpack.c.l.bf16 %v5436
        %v5453 = vunpack.c.l.bf16 %v5437
        %v5454 = vunpack.c.l.bf16 %v5438
        %v5455 = vunpack.c.l.bf16 %v5439
        %v5456 = vunpack.c.l.bf16 %v5440
        %v5457 = vunpack.c.l.bf16 %v5441
        %v5458 = vunpack.c.l.bf16 %v5442
        %v5459 = vunpack.c.l.bf16 %v5443
        %v5460 = vunpack.c.l.bf16 %v5444
        %v5461 = vunpack.c.l.bf16 %v5445
        %v5462 = vunpack.c.l.bf16 %v5446
        %v5463 = vunpack.c.l.bf16 %v5447
        %v5464 = vunpack.c.l.bf16 %v5448
        %v5465 = vunpack.c.l.bf16 %v5449
        %v5466 = vunpack.c.l.bf16 %v5450
        %v5467 = vld [vmem:[%s704] sm:$0x1]
        %v5469 = vperm.slane %v5467, 0
        %5471 = vmatpush.msra.mxu0 %v5466
        %5472 = vmatpush.msra.mxu0 %v5465
        %5473 = vmatpush.msra.mxu0 %v5464
        %5474 = vmatpush.msra.mxu0 %v5463
        %5475 = vmatpush.msra.mxu0 %v5462
        %5476 = vmatpush.msra.mxu0 %v5461
        %5477 = vmatpush.msra.mxu0 %v5460
        %5478 = vmatpush.msra.mxu0 %v5459
        %5479 = vmatpush.msra.mxu0 %v5458
        %5480 = vmatpush.msra.mxu0 %v5457
        %5481 = vmatpush.msra.mxu0 %v5456
        %5482 = vmatpush.msra.mxu0 %v5455
        %5483 = vmatpush.msra.mxu0 %v5454
        %5484 = vmatpush.msra.mxu0 %v5453
        %5485 = vmatpush.msra.mxu0 %v5452
        %5486 = vmatpush.msra.mxu0 %v5451
        %v5487 = vand.u32 %v5434, 4294901760
        %v5488 = vsub.f32 %v5434, %v5487
        %v5489 = vand.u32 %v5488, 4294901760
        %v5490 = vsub.f32 %v5488, %v5489
        %v5491 = vand.u32 %v5490, 4294901760
        %5492 = vmatmul.f32.gmra.mxu0 %v5491
        %v5493 = vpop.f32.mrf.mxu0
        %v5494 = vadd.f32 %v5469, %v5493
        %5495 = vdwg.mxu0
        %v5496 = vsub.f32 %v5466, %v5466
        %v5497 = vand.u32 %v5496, 4294901760
        %v5498 = vsub.f32 %v5496, %v5497
        %v5499 = vand.u32 %v5498, 4294901760
        %5500 = vmatpush.msra.mxu0 %v5499
        %v5501 = vsub.f32 %v5465, %v5465
        %v5502 = vand.u32 %v5501, 4294901760
        %v5503 = vsub.f32 %v5501, %v5502
        %v5504 = vand.u32 %v5503, 4294901760
        %5505 = vmatpush.msra.mxu0 %v5504
        %v5506 = vsub.f32 %v5464, %v5464
        %v5507 = vand.u32 %v5506, 4294901760
        %v5508 = vsub.f32 %v5506, %v5507
        %v5509 = vand.u32 %v5508, 4294901760
        %5510 = vmatpush.msra.mxu0 %v5509
        %v5511 = vsub.f32 %v5463, %v5463
        %v5512 = vand.u32 %v5511, 4294901760
        %v5513 = vsub.f32 %v5511, %v5512
        %v5514 = vand.u32 %v5513, 4294901760
        %5515 = vmatpush.msra.mxu0 %v5514
        %v5516 = vsub.f32 %v5462, %v5462
        %v5517 = vand.u32 %v5516, 4294901760
        %v5518 = vsub.f32 %v5516, %v5517
        %v5519 = vand.u32 %v5518, 4294901760
        %5520 = vmatpush.msra.mxu0 %v5519
        %v5521 = vsub.f32 %v5461, %v5461
        %v5522 = vand.u32 %v5521, 4294901760
        %v5523 = vsub.f32 %v5521, %v5522
        %v5524 = vand.u32 %v5523, 4294901760
        %5525 = vmatpush.msra.mxu0 %v5524
        %v5526 = vsub.f32 %v5460, %v5460
        %v5527 = vand.u32 %v5526, 4294901760
        %v5528 = vsub.f32 %v5526, %v5527
        %v5529 = vand.u32 %v5528, 4294901760
        %5530 = vmatpush.msra.mxu0 %v5529
        %v5531 = vsub.f32 %v5459, %v5459
        %v5532 = vand.u32 %v5531, 4294901760
        %v5533 = vsub.f32 %v5531, %v5532
        %v5534 = vand.u32 %v5533, 4294901760
        %5535 = vmatpush.msra.mxu0 %v5534
        %v5536 = vsub.f32 %v5458, %v5458
        %v5537 = vand.u32 %v5536, 4294901760
        %v5538 = vsub.f32 %v5536, %v5537
        %v5539 = vand.u32 %v5538, 4294901760
        %5540 = vmatpush.msra.mxu0 %v5539
        %v5541 = vsub.f32 %v5457, %v5457
        %v5542 = vand.u32 %v5541, 4294901760
        %v5543 = vsub.f32 %v5541, %v5542
        %v5544 = vand.u32 %v5543, 4294901760
        %5545 = vmatpush.msra.mxu0 %v5544
        %v5546 = vsub.f32 %v5456, %v5456
        %v5547 = vand.u32 %v5546, 4294901760
        %v5548 = vsub.f32 %v5546, %v5547
        %v5549 = vand.u32 %v5548, 4294901760
        %5550 = vmatpush.msra.mxu0 %v5549
        %v5551 = vsub.f32 %v5455, %v5455
        %v5552 = vand.u32 %v5551, 4294901760
        %v5553 = vsub.f32 %v5551, %v5552
        %v5554 = vand.u32 %v5553, 4294901760
        %5555 = vmatpush.msra.mxu0 %v5554
        %v5556 = vsub.f32 %v5454, %v5454
        %v5557 = vand.u32 %v5556, 4294901760
        %v5558 = vsub.f32 %v5556, %v5557
        %v5559 = vand.u32 %v5558, 4294901760
        %5560 = vmatpush.msra.mxu0 %v5559
        %v5561 = vsub.f32 %v5453, %v5453
        %v5562 = vand.u32 %v5561, 4294901760
        %v5563 = vsub.f32 %v5561, %v5562
        %v5564 = vand.u32 %v5563, 4294901760
        %5565 = vmatpush.msra.mxu0 %v5564
        %v5566 = vsub.f32 %v5452, %v5452
        %v5567 = vand.u32 %v5566, 4294901760
        %v5568 = vsub.f32 %v5566, %v5567
        %v5569 = vand.u32 %v5568, 4294901760
        %5570 = vmatpush.msra.mxu0 %v5569
        %v5571 = vsub.f32 %v5451, %v5451
        %v5572 = vand.u32 %v5571, 4294901760
        %v5573 = vsub.f32 %v5571, %v5572
        %v5574 = vand.u32 %v5573, 4294901760
        %5575 = vmatpush.msra.mxu0 %v5574
        %v5576 = vand.u32 %v5434, 4294901760
        %5577 = vmatmul.f32.gmra.mxu0 %v5576
        %v5578 = vpop.f32.mrf.mxu0
        %v5579 = vadd.f32 %v5494, %v5578
        %5580 = vdwg.mxu0
        %v5581 = vsub.f32 %v5466, %v5466
        %5582 = vmatpush.msra.mxu0 %v5581
        %v5583 = vsub.f32 %v5465, %v5465
        %5584 = vmatpush.msra.mxu0 %v5583
        %v5585 = vsub.f32 %v5464, %v5464
        %5586 = vmatpush.msra.mxu0 %v5585
        %v5587 = vsub.f32 %v5463, %v5463
        %5588 = vmatpush.msra.mxu0 %v5587
        %v5589 = vsub.f32 %v5462, %v5462
        %5590 = vmatpush.msra.mxu0 %v5589
        %v5591 = vsub.f32 %v5461, %v5461
        %5592 = vmatpush.msra.mxu0 %v5591
        %v5593 = vsub.f32 %v5460, %v5460
        %5594 = vmatpush.msra.mxu0 %v5593
        %v5595 = vsub.f32 %v5459, %v5459
        %5596 = vmatpush.msra.mxu0 %v5595
        %v5597 = vsub.f32 %v5458, %v5458
        %5598 = vmatpush.msra.mxu0 %v5597
        %v5599 = vsub.f32 %v5457, %v5457
        %5600 = vmatpush.msra.mxu0 %v5599
        %v5601 = vsub.f32 %v5456, %v5456
        %5602 = vmatpush.msra.mxu0 %v5601
        %v5603 = vsub.f32 %v5455, %v5455
        %5604 = vmatpush.msra.mxu0 %v5603
        %v5605 = vsub.f32 %v5454, %v5454
        %5606 = vmatpush.msra.mxu0 %v5605
        %v5607 = vsub.f32 %v5453, %v5453
        %5608 = vmatpush.msra.mxu0 %v5607
        %v5609 = vsub.f32 %v5452, %v5452
        %5610 = vmatpush.msra.mxu0 %v5609
        %v5611 = vsub.f32 %v5451, %v5451
        %5612 = vmatpush.msra.mxu0 %v5611
        %v5613 = vand.u32 %v5434, 4294901760
        %v5614 = vsub.f32 %v5434, %v5613
        %5615 = vmatmul.f32.gmra.mxu0 %v5614
        %v5616 = vpop.f32.mrf.mxu0
        %v5617 = vadd.f32 %v5579, %v5616
        %5618 = vdwg.mxu0
        %5619 = vmatpush.msra.mxu0 %v5466
        %5620 = vmatpush.msra.mxu0 %v5465
        %5621 = vmatpush.msra.mxu0 %v5464
        %5622 = vmatpush.msra.mxu0 %v5463
        %5623 = vmatpush.msra.mxu0 %v5462
        %5624 = vmatpush.msra.mxu0 %v5461
        %5625 = vmatpush.msra.mxu0 %v5460
        %5626 = vmatpush.msra.mxu0 %v5459
        %5627 = vmatpush.msra.mxu0 %v5458
        %5628 = vmatpush.msra.mxu0 %v5457
        %5629 = vmatpush.msra.mxu0 %v5456
        %5630 = vmatpush.msra.mxu0 %v5455
        %5631 = vmatpush.msra.mxu0 %v5454
        %5632 = vmatpush.msra.mxu0 %v5453
        %5633 = vmatpush.msra.mxu0 %v5452
        %5634 = vmatpush.msra.mxu0 %v5451
        %v5635 = vand.u32 %v5434, 4294901760
        %v5636 = vsub.f32 %v5434, %v5635
        %v5637 = vand.u32 %v5636, 4294901760
        %5638 = vmatmul.f32.gmra.mxu0 %v5637
        %v5639 = vpop.f32.mrf.mxu0
        %v5640 = vadd.f32 %v5617, %v5639
        %5641 = vdwg.mxu0
        %v5642 = vsub.f32 %v5466, %v5466
        %v5643 = vand.u32 %v5642, 4294901760
        %5644 = vmatpush.msra.mxu0 %v5643
        %v5645 = vsub.f32 %v5465, %v5465
        %v5646 = vand.u32 %v5645, 4294901760
        %5647 = vmatpush.msra.mxu0 %v5646
        %v5648 = vsub.f32 %v5464, %v5464
        %v5649 = vand.u32 %v5648, 4294901760
        %5650 = vmatpush.msra.mxu0 %v5649
        %v5651 = vsub.f32 %v5463, %v5463
        %v5652 = vand.u32 %v5651, 4294901760
        %5653 = vmatpush.msra.mxu0 %v5652
        %v5654 = vsub.f32 %v5462, %v5462
        %v5655 = vand.u32 %v5654, 4294901760
        %5656 = vmatpush.msra.mxu0 %v5655
        %v5657 = vsub.f32 %v5461, %v5461
        %v5658 = vand.u32 %v5657, 4294901760
        %5659 = vmatpush.msra.mxu0 %v5658
        %v5660 = vsub.f32 %v5460, %v5460
        %v5661 = vand.u32 %v5660, 4294901760
        %5662 = vmatpush.msra.mxu0 %v5661
        %v5663 = vsub.f32 %v5459, %v5459
        %v5664 = vand.u32 %v5663, 4294901760
        %5665 = vmatpush.msra.mxu0 %v5664
        %v5666 = vsub.f32 %v5458, %v5458
        %v5667 = vand.u32 %v5666, 4294901760
        %5668 = vmatpush.msra.mxu0 %v5667
        %v5669 = vsub.f32 %v5457, %v5457
        %v5670 = vand.u32 %v5669, 4294901760
        %5671 = vmatpush.msra.mxu0 %v5670
        %v5672 = vsub.f32 %v5456, %v5456
        %v5673 = vand.u32 %v5672, 4294901760
        %5674 = vmatpush.msra.mxu0 %v5673
        %v5675 = vsub.f32 %v5455, %v5455
        %v5676 = vand.u32 %v5675, 4294901760
        %5677 = vmatpush.msra.mxu0 %v5676
        %v5678 = vsub.f32 %v5454, %v5454
        %v5679 = vand.u32 %v5678, 4294901760
        %5680 = vmatpush.msra.mxu0 %v5679
        %v5681 = vsub.f32 %v5453, %v5453
        %v5682 = vand.u32 %v5681, 4294901760
        %5683 = vmatpush.msra.mxu0 %v5682
        %v5684 = vsub.f32 %v5452, %v5452
        %v5685 = vand.u32 %v5684, 4294901760
        %5686 = vmatpush.msra.mxu0 %v5685
        %v5687 = vsub.f32 %v5451, %v5451
        %v5688 = vand.u32 %v5687, 4294901760
        %5689 = vmatpush.msra.mxu0 %v5688
        %v5690 = vand.u32 %v5434, 4294901760
        %5691 = vmatmul.f32.gmra.mxu0 %v5690
        %v5692 = vpop.f32.mrf.mxu0
        %v5693 = vadd.f32 %v5640, %v5692
        %5694 = vdwg.mxu0
        %5695 = vmatpush.msra.mxu0 %v5466
        %5696 = vmatpush.msra.mxu0 %v5465
        %5697 = vmatpush.msra.mxu0 %v5464
        %5698 = vmatpush.msra.mxu0 %v5463
        %5699 = vmatpush.msra.mxu0 %v5462
        %5700 = vmatpush.msra.mxu0 %v5461
        %5701 = vmatpush.msra.mxu0 %v5460
        %5702 = vmatpush.msra.mxu0 %v5459
        %5703 = vmatpush.msra.mxu0 %v5458
        %5704 = vmatpush.msra.mxu0 %v5457
        %5705 = vmatpush.msra.mxu0 %v5456
        %5706 = vmatpush.msra.mxu0 %v5455
        %5707 = vmatpush.msra.mxu0 %v5454
        %5708 = vmatpush.msra.mxu0 %v5453
        %5709 = vmatpush.msra.mxu0 %v5452
        %5710 = vmatpush.msra.mxu0 %v5451
        %v5711 = vand.u32 %v5434, 4294901760
        %5712 = vmatmul.f32.gmra.mxu0 %v5711
        %v5713 = vpop.f32.mrf.mxu0
        %v5714 = vadd.f32 %v5693, %v5713
        %5715 = vdwg.mxu0
        %5716 = vst [vmem:[%s699] sm:$0xff] %v5714
        %s5717 = sand.u32 %s429, 1
        %s5718 = scalar_lea.sflag [#allocation7], %s5717
        %s5719 = sand.u32 %s429, 1
        %s5720 = smul.addr %s5719, 8
        %s5721 = scalar_lea.vmem [#allocation16], %s5720
        // Predicated region
        $region121: #{decoder_forward.1} parent=87 // pred_check
          %p5722 = pneg %p439
        $region122: #{decoder_forward.1} parent=87 // pred_check_branch
          %5724 = sbr.rel (%p5722) target = $region124
        $region123: #{decoder_forward.1} parent=87 // pred_region
          %5726 = vsyncadd %s5718, 0
          %s5727 = smul.addr %s45, 2
          %s5728 = sadd.s32 %s44, %s5727
          %s5729 = smul.addr %s5728, 8
          %s5730 = scalar_lea.hbm %s17, %s5729
          %s5732 = sshll.u32 %s5721, 4
          %s5733 = int_to_ptr.vmem [resolvable:$true] %s5732
          %s5734 = sshll.u32 %s5730, 4
          %s5735 = int_to_ptr.hbm [resolvable:$true] %s5734
          %5737 = dma.vmem_to_hbm [thread:$0]  %s5733, 128, %s5735, %s5718
        $region124: #{decoder_forward.1} parent=87 // pred_fallthru
          _
        // Predicated region
        $region125: #{decoder_forward.1} parent=87 // pred_check
          %p5738 = pneg %p460
        $region126: #{decoder_forward.1} parent=87 // pred_check_branch
          %5740 = sbr.rel (%p5738) target = $region128
        $region127: #{decoder_forward.1} parent=87 // pred_region
          _
        $region128: #{decoder_forward.1} parent=87 // pred_fallthru
          _
        // Predicated region
        $region129: #{decoder_forward.1} parent=87 // pred_check
          %p5741 = pneg %p460
        $region130: #{decoder_forward.1} parent=87 // pred_check_branch
          %5743 = sbr.rel (%p5741) target = $region132
        $region131: #{decoder_forward.1} parent=87 // pred_region
          _
        $region132: #{decoder_forward.1} parent=87 // pred_fallthru
          _
      $region88: #{decoder_forward.1} parent=5 // pred_fallthru
        _
      %p5744 = scmp.le.s32.totalorder 2, %s35
      // Predicated region
      $region133: #{decoder_forward.1} parent=5 // pred_check
        %p5745 = pneg %p5744
      $region134: #{decoder_forward.1} parent=5 // pred_check_branch
        %5747 = sbr.rel (%p5745) target = $region136
      $region135: #{decoder_forward.1} parent=5 // pred_region
        %s5748 = ssub.s32 %s35, 2
        // Predicated region
        $region137: #{decoder_forward.1} parent=135 // pred_check
          %p5749 = pneg %p445
        $region138: #{decoder_forward.1} parent=135 // pred_check_branch
          %5751 = sbr.rel (%p5749) target = $region140
        $region139: #{decoder_forward.1} parent=135 // pred_region
          %s5752 = sand.u32 %s430, 1
          %s5753 = scalar_lea.sflag [#allocation7], %s5752
          %s5754 = sand.u32 %s430, 1
          %s5755 = smul.addr %s5754, 8
          %s5756 = scalar_lea.vmem [#allocation16], %s5755
          %5758 = dma.done %s5753, 128
        $region140: #{decoder_forward.1} parent=135 // pred_fallthru
          _
      $region136: #{decoder_forward.1} parent=5 // pred_fallthru
        _
    $region6: #{decoder_forward.1} parent=1 // loop_footer
      %s39 = sadd.s32 1, %s35
    $region7: #{decoder_forward.1} parent=1 // loop_footer_branch
      %34 = sbr.rel target = $region3
    $region8: #{decoder_forward.1} parent=1 // loop_exit
      _
    %5759 = vsyncpa [#allocation6], 1
    %s5760 = scalar_lea.sflag [#allocation6], 1
    %5761 = vsyncpa %s5760, 1
    %5762 = vsyncpa [#allocation9], 1
    %5763 = vsyncpa [#allocation12], 1
    %5764 = vsyncpa [#allocation15], 1
    %s5765 = scalar_lea.sflag [#allocation15], 1
    %5766 = vsyncpa %s5765, 1
    %5767 = vsyncpa [#allocation7], 1
    %s5768 = scalar_lea.sflag [#allocation7], 1
    %5769 = vsyncpa %s5768, 1

</llo_original>
